<compile_context>
chip_gen: v6e
topology: v6e:2x2x1
jax: 0.10.0
libtpu: 0.0.40
codegen_flags: <defaults>
</compile_context>

<pallas_src>
import functools

import jax
import jax.numpy as jnp
from jax.experimental import pallas as pl
from jax.experimental.pallas import tpu as pltpu


def _fused_upconv_matmul(x_ref, wc_ref, *, Wp, Lq):
    """3x3 conv (pad=1) of the nearest-x2-upsampled image, computed directly from the
    zero-padded ORIGINAL image with parity-collapsed weights.

    x_ref : (1, Cin, Lp) block, Lp = (H+3)*(W+2); flat padded image, row pitch Wp = W+2.
    wc_ref: (9, 4*Cout, Cin) block; tap k = r*3+s, rows = (row_parity a, col_parity b, co).
    returns (4*Cout, Lq) float32, Lq = H*Wp; lane t = i*Wp + j (lanes with j >= W are pad).
    """
    n_rows = wc_ref.shape[1]
    acc = jnp.zeros((n_rows, Lq), jnp.float32)
    for k in range(9):                                   # static unroll, 9 small MXU dots
        off = (k // 3) * Wp + (k % 3)
        tap = x_ref[0, :, pl.ds(off, Lq)]                # (Cin, Lq), lane-offset load
        acc = acc + jnp.dot(wc_ref[k], tap, preferred_element_type=jnp.float32)
    return acc


def _stats_kernel(x_ref, wc_ref, mask_ref, sum_ref, ssq_ref, *, Wp, Lq):
    # Pass 1: per-image per-(parity, channel) sum and sum-of-squares of the conv output
    # over valid lanes only.  y is never written to HBM.
    y = _fused_upconv_matmul(x_ref, wc_ref, Wp=Wp, Lq=Lq)
    ym = y * mask_ref[...]                               # zero the row-pitch pad lanes
    sum_ref[0] = jnp.sum(ym, axis=1, keepdims=True)      # (4*Cout, 1)
    ssq_ref[0] = jnp.sum(ym * ym, axis=1, keepdims=True)


def _conv_bn_relu_kernel(x_ref, wsc_ref, shift_ref, o_ref, *, Wp, Lq):
    # Pass 2: recompute the cheap conv with the BN scale pre-folded into the weights,
    # add the per-channel shift, ReLU, and store lane-dense (pixels in lanes).
    y = _fused_upconv_matmul(x_ref, wsc_ref, Wp=Wp, Lq=Lq)
    y = y + shift_ref[...]                               # (4*Cout, 1) broadcast over lanes
    o_ref[0] = jnp.maximum(y, 0.0).astype(o_ref.dtype)


def up_conv_forward(x_nchw, w, b, gamma, beta, *, eps=1e-5,
                    compute_dtype=jnp.float32):
    N, Cin, H, W = x_nchw.shape
    Cout = w.shape[0]
    Ho, Wo = 2 * H, 2 * W
    Wp = W + 2                      # padded row pitch
    Lp = (H + 3) * Wp               # 1 top pad row, 2 bottom pad rows (tap-slice slack)
    Lq = H * Wp                     # lanes per output-parity plane (W valid + 2 pad cols)
    n_rows = 4 * Cout               # (row_parity a, col_parity b, cout)

    # ---- input prep: only the ORIGINAL x is touched (no upsample / im2col in HBM) ----
    x = x_nchw.astype(compute_dtype)
    xpad = jnp.pad(x, ((0, 0), (0, 0), (1, 2), (1, 1)))          # (N, Cin, H+3, W+2)
    xflat = xpad.reshape(N, Cin, Lp)                             # free row-major reshape

    # ---- collapse (upsample x2 nearest o conv3x3 pad1) into 4 parity kernels ----
    # A[a, r, ky] = 1 iff original tap ky reads input-row offset (r-1) for output parity a.
    A = jnp.array([[[1., 0., 0.], [0., 1., 1.], [0., 0., 0.]],
                   [[0., 0., 0.], [1., 1., 0.], [0., 0., 1.]]], dtype=jnp.float32)
    wc = jnp.einsum('ark,bsl,oikl->rsaboi', A, A, w.astype(jnp.float32))
    wc = wc.reshape(9, n_rows, Cin).astype(compute_dtype)        # (tap, (a,b,co), ci)
    # Conv bias `b` is intentionally unused: it cancels exactly under training-mode BN.

    # valid-lane mask (columns j < W of each Wp-pitch row group)
    mask = ((jnp.arange(Lq, dtype=jnp.int32) % Wp) < W).astype(jnp.float32).reshape(1, Lq)

    # ---- pass 1: per-image channel statistics (no y written to HBM) ----
    s_part, q_part = pl.pallas_call(
        functools.partial(_stats_kernel, Wp=Wp, Lq=Lq),
        out_shape=(jax.ShapeDtypeStruct((N, n_rows, 1), jnp.float32),
                   jax.ShapeDtypeStruct((N, n_rows, 1), jnp.float32)),
        grid_spec=pltpu.PrefetchScalarGridSpec(
            num_scalar_prefetch=0,
            grid=(N,),
            in_specs=[
                pl.BlockSpec((1, Cin, Lp), lambda n: (n, 0, 0)),
                pl.BlockSpec((9, n_rows, Cin), lambda n: (0, 0, 0)),
                pl.BlockSpec((1, Lq), lambda n: (0, 0)),
            ],
            out_specs=[
                pl.BlockSpec((1, n_rows, 1), lambda n: (n, 0, 0)),
                pl.BlockSpec((1, n_rows, 1), lambda n: (n, 0, 0)),
            ],
        ),
        compiler_params=pltpu.CompilerParams(dimension_semantics=("parallel",)),
    )(xflat, wc, mask)

    # ---- tiny wrapper math: fold partials, BN scale/shift, fold scale into weights ----
    cnt = jnp.float32(N * Ho * Wo)
    s_tot = s_part.sum(axis=(0, 2)).reshape(2, 2, Cout).sum(axis=(0, 1))   # (Cout,)
    q_tot = q_part.sum(axis=(0, 2)).reshape(2, 2, Cout).sum(axis=(0, 1))
    mean = s_tot / cnt
    var = jnp.maximum(q_tot / cnt - mean * mean, 0.0)          # biased var, clamped at 0
    scale = gamma.astype(jnp.float32) * jax.lax.rsqrt(var + eps)
    shift = beta.astype(jnp.float32) - mean * scale

    wsc = (wc.astype(jnp.float32) * jnp.tile(scale, 4)[None, :, None]).astype(compute_dtype)
    shift_col = jnp.tile(shift, 4).reshape(n_rows, 1)

    # ---- pass 2: recompute conv + BN affine + ReLU, lane-dense stores ----
    out_k = pl.pallas_call(
        functools.partial(_conv_bn_relu_kernel, Wp=Wp, Lq=Lq),
        out_shape=jax.ShapeDtypeStruct((N, n_rows, Lq), jnp.float32),
        grid_spec=pltpu.PrefetchScalarGridSpec(
            num_scalar_prefetch=0,
            grid=(N,),
            in_specs=[
                pl.BlockSpec((1, Cin, Lp), lambda n: (n, 0, 0)),
                pl.BlockSpec((9, n_rows, Cin), lambda n: (0, 0, 0)),
                pl.BlockSpec((n_rows, 1), lambda n: (0, 0)),
            ],
            out_specs=pl.BlockSpec((1, n_rows, Lq), lambda n: (n, 0, 0)),
        ),
        compiler_params=pltpu.CompilerParams(dimension_semantics=("parallel",)),
    )(xflat, wsc, shift_col)

    # ---- wrapper: strip the 2 pad lanes per row group, interleave parities to NCHW ----
    out6 = out_k.reshape(N, 2, 2, Cout, H, Wp)[..., :W]          # axes (n, a, b, c, i, j)
    out = jnp.transpose(out6, (0, 3, 4, 1, 5, 2)).reshape(N, Cout, Ho, Wo)
    return out


def ref_forward(x, w, b, gamma, beta, eps=1e-5):
    # pure-JAX reference matching the PyTorch up_conv forward in training mode
    xu = jnp.repeat(jnp.repeat(x, 2, axis=2), 2, axis=3)
    y = jax.lax.conv_general_dilated(
        xu.astype(jnp.float32), w.astype(jnp.float32),
        window_strides=(1, 1), padding=((1, 1), (1, 1)),
        dimension_numbers=("NCHW", "OIHW", "NCHW"),
    ) + b.reshape(1, -1, 1, 1)
    mean = y.mean(axis=(0, 2, 3), keepdims=True)
    var = y.var(axis=(0, 2, 3), keepdims=True)
    yn = (y - mean) * jax.lax.rsqrt(var + eps)
    return jnp.maximum(yn * gamma.reshape(1, -1, 1, 1) + beta.reshape(1, -1, 1, 1), 0.0)


if __name__ == "__main__":
    # small shapes consistent with the module: up_conv(ch_in=4, ch_out=8)
    N, Cin, H, W = 2, 4, 16, 16
    Cout = 8

    key = jax.random.PRNGKey(0)
    kx, kw, kb = jax.random.split(key, 3)

    x = jax.random.normal(kx, (N, Cin, H, W), dtype=jnp.float32)
    fan_in = Cin * 3 * 3
    bound = 1.0 / (fan_in ** 0.5)
    w = jax.random.uniform(kw, (Cout, Cin, 3, 3), jnp.float32, -bound, bound)
    b = jax.random.uniform(kb, (Cout,), jnp.float32, -bound, bound)
    gamma = jnp.ones((Cout,), jnp.float32)   # BatchNorm2d default init
    beta = jnp.zeros((Cout,), jnp.float32)

    fwd = jax.jit(up_conv_forward)
    out = jax.block_until_ready(fwd(x, w, b, gamma, beta))

    ref = jax.block_until_ready(ref_forward(x, w, b, gamma, beta))
    assert out.shape == (N, Cout, 2 * H, 2 * W)
    assert jnp.allclose(out, ref, atol=1e-3, rtol=1e-3), "mismatch vs reference"

    print("KERNEL_OK")
</pallas_src>

<mosaic_0001>
module attributes {stable_mosaic.version = 11 : i64} {
  func.func @_stats_kernel(%arg0: i32, %arg1: memref<1x4x342xf32, #tpu.memory_space<vmem>>, %arg2: memref<9x32x4xf32, #tpu.memory_space<vmem>>, %arg3: memref<1x288xf32, #tpu.memory_space<vmem>>, %arg4: memref<1x32x1xf32, #tpu.memory_space<vmem>>, %arg5: memref<1x32x1xf32, #tpu.memory_space<vmem>>) attributes {dimension_semantics = [#tpu.dimension_semantics<parallel>], iteration_bounds = array<i64: 2>, scalar_prefetch = 0 : i64, scratch_operands = 0 : i64, tpu.core_type = #tpu.core_type<tc>, window_params = [{transform_indices = @transform_0, window_bounds = array<i64: 1, 4, 342>}, {pipeline_mode = #tpu.pipeline_mode<synchronous>, transform_indices = @transform_1, window_bounds = array<i64: 9, 32, 4>}, {pipeline_mode = #tpu.pipeline_mode<synchronous>, transform_indices = @transform_2, window_bounds = array<i64: 1, 288>}, {transform_indices = @transform_3, window_bounds = array<i64: 1, 32, 1>}, {transform_indices = @transform_4, window_bounds = array<i64: 1, 32, 1>}]} {
    %cst = arith.constant 0.000000e+00 : f32
    %0 = vector.broadcast %cst : f32 to vector<32x288xf32>
    %c0 = arith.constant 0 : index
    %c0_0 = arith.constant 0 : index
    %c0_1 = arith.constant 0 : index
    %1 = vector.load %arg1[%c0, %c0_0, %c0_1] : memref<1x4x342xf32, #tpu.memory_space<vmem>>, vector<1x4x288xf32>
    %2 = vector.shape_cast %1 : vector<1x4x288xf32> to vector<4x288xf32>
    %c0_2 = arith.constant 0 : index
    %c0_3 = arith.constant 0 : index
    %c0_4 = arith.constant 0 : index
    %3 = vector.load %arg2[%c0_2, %c0_3, %c0_4] : memref<9x32x4xf32, #tpu.memory_space<vmem>>, vector<1x32x4xf32>
    %4 = vector.shape_cast %3 : vector<1x32x4xf32> to vector<32x4xf32>
    %cst_5 = arith.constant dense<0.000000e+00> : vector<32x288xf32>
    %5 = tpu.matmul %4, %2, %cst_5 {dimension_numbers = #tpu.dot_dimension_numbers<[1], [0], [0], [1], [0, 0, 1, 1], [], []>} : vector<32x4xf32>, vector<4x288xf32>, vector<32x288xf32> -> vector<32x288xf32>
    %6 = arith.addf %0, %5 : vector<32x288xf32>
    %c0_6 = arith.constant 0 : index
    %c0_7 = arith.constant 0 : index
    %c1 = arith.constant 1 : index
    %7 = vector.load %arg1[%c0_6, %c0_7, %c1] : memref<1x4x342xf32, #tpu.memory_space<vmem>>, vector<1x4x288xf32>
    %8 = vector.shape_cast %7 : vector<1x4x288xf32> to vector<4x288xf32>
    %c1_8 = arith.constant 1 : index
    %c0_9 = arith.constant 0 : index
    %c0_10 = arith.constant 0 : index
    %9 = vector.load %arg2[%c1_8, %c0_9, %c0_10] : memref<9x32x4xf32, #tpu.memory_space<vmem>>, vector<1x32x4xf32>
    %10 = vector.shape_cast %9 : vector<1x32x4xf32> to vector<32x4xf32>
    %cst_11 = arith.constant dense<0.000000e+00> : vector<32x288xf32>
    %11 = tpu.matmul %10, %8, %cst_11 {dimension_numbers = #tpu.dot_dimension_numbers<[1], [0], [0], [1], [0, 0, 1, 1], [], []>} : vector<32x4xf32>, vector<4x288xf32>, vector<32x288xf32> -> vector<32x288xf32>
    %12 = arith.addf %6, %11 : vector<32x288xf32>
    %c0_12 = arith.constant 0 : index
    %c0_13 = arith.constant 0 : index
    %c2 = arith.constant 2 : index
    %13 = vector.load %arg1[%c0_12, %c0_13, %c2] : memref<1x4x342xf32, #tpu.memory_space<vmem>>, vector<1x4x288xf32>
    %14 = vector.shape_cast %13 : vector<1x4x288xf32> to vector<4x288xf32>
    %c2_14 = arith.constant 2 : index
    %c0_15 = arith.constant 0 : index
    %c0_16 = arith.constant 0 : index
    %15 = vector.load %arg2[%c2_14, %c0_15, %c0_16] : memref<9x32x4xf32, #tpu.memory_space<vmem>>, vector<1x32x4xf32>
    %16 = vector.shape_cast %15 : vector<1x32x4xf32> to vector<32x4xf32>
    %cst_17 = arith.constant dense<0.000000e+00> : vector<32x288xf32>
    %17 = tpu.matmul %16, %14, %cst_17 {dimension_numbers = #tpu.dot_dimension_numbers<[1], [0], [0], [1], [0, 0, 1, 1], [], []>} : vector<32x4xf32>, vector<4x288xf32>, vector<32x288xf32> -> vector<32x288xf32>
    %18 = arith.addf %12, %17 : vector<32x288xf32>
    %c0_18 = arith.constant 0 : index
    %c0_19 = arith.constant 0 : index
    %c18 = arith.constant 18 : index
    %19 = vector.load %arg1[%c0_18, %c0_19, %c18] : memref<1x4x342xf32, #tpu.memory_space<vmem>>, vector<1x4x288xf32>
    %20 = vector.shape_cast %19 : vector<1x4x288xf32> to vector<4x288xf32>
    %c3 = arith.constant 3 : index
    %c0_20 = arith.constant 0 : index
    %c0_21 = arith.constant 0 : index
    %21 = vector.load %arg2[%c3, %c0_20, %c0_21] : memref<9x32x4xf32, #tpu.memory_space<vmem>>, vector<1x32x4xf32>
    %22 = vector.shape_cast %21 : vector<1x32x4xf32> to vector<32x4xf32>
    %cst_22 = arith.constant dense<0.000000e+00> : vector<32x288xf32>
    %23 = tpu.matmul %22, %20, %cst_22 {dimension_numbers = #tpu.dot_dimension_numbers<[1], [0], [0], [1], [0, 0, 1, 1], [], []>} : vector<32x4xf32>, vector<4x288xf32>, vector<32x288xf32> -> vector<32x288xf32>
    %24 = arith.addf %18, %23 : vector<32x288xf32>
    %c0_23 = arith.constant 0 : index
    %c0_24 = arith.constant 0 : index
    %c19 = arith.constant 19 : index
    %25 = vector.load %arg1[%c0_23, %c0_24, %c19] : memref<1x4x342xf32, #tpu.memory_space<vmem>>, vector<1x4x288xf32>
    %26 = vector.shape_cast %25 : vector<1x4x288xf32> to vector<4x288xf32>
    %c4 = arith.constant 4 : index
    %c0_25 = arith.constant 0 : index
    %c0_26 = arith.constant 0 : index
    %27 = vector.load %arg2[%c4, %c0_25, %c0_26] : memref<9x32x4xf32, #tpu.memory_space<vmem>>, vector<1x32x4xf32>
    %28 = vector.shape_cast %27 : vector<1x32x4xf32> to vector<32x4xf32>
    %cst_27 = arith.constant dense<0.000000e+00> : vector<32x288xf32>
    %29 = tpu.matmul %28, %26, %cst_27 {dimension_numbers = #tpu.dot_dimension_numbers<[1], [0], [0], [1], [0, 0, 1, 1], [], []>} : vector<32x4xf32>, vector<4x288xf32>, vector<32x288xf32> -> vector<32x288xf32>
    %30 = arith.addf %24, %29 : vector<32x288xf32>
    %c0_28 = arith.constant 0 : index
    %c0_29 = arith.constant 0 : index
    %c20 = arith.constant 20 : index
    %31 = vector.load %arg1[%c0_28, %c0_29, %c20] : memref<1x4x342xf32, #tpu.memory_space<vmem>>, vector<1x4x288xf32>
    %32 = vector.shape_cast %31 : vector<1x4x288xf32> to vector<4x288xf32>
    %c5 = arith.constant 5 : index
    %c0_30 = arith.constant 0 : index
    %c0_31 = arith.constant 0 : index
    %33 = vector.load %arg2[%c5, %c0_30, %c0_31] : memref<9x32x4xf32, #tpu.memory_space<vmem>>, vector<1x32x4xf32>
    %34 = vector.shape_cast %33 : vector<1x32x4xf32> to vector<32x4xf32>
    %cst_32 = arith.constant dense<0.000000e+00> : vector<32x288xf32>
    %35 = tpu.matmul %34, %32, %cst_32 {dimension_numbers = #tpu.dot_dimension_numbers<[1], [0], [0], [1], [0, 0, 1, 1], [], []>} : vector<32x4xf32>, vector<4x288xf32>, vector<32x288xf32> -> vector<32x288xf32>
    %36 = arith.addf %30, %35 : vector<32x288xf32>
    %c0_33 = arith.constant 0 : index
    %c0_34 = arith.constant 0 : index
    %c36 = arith.constant 36 : index
    %37 = vector.load %arg1[%c0_33, %c0_34, %c36] : memref<1x4x342xf32, #tpu.memory_space<vmem>>, vector<1x4x288xf32>
    %38 = vector.shape_cast %37 : vector<1x4x288xf32> to vector<4x288xf32>
    %c6 = arith.constant 6 : index
    %c0_35 = arith.constant 0 : index
    %c0_36 = arith.constant 0 : index
    %39 = vector.load %arg2[%c6, %c0_35, %c0_36] : memref<9x32x4xf32, #tpu.memory_space<vmem>>, vector<1x32x4xf32>
    %40 = vector.shape_cast %39 : vector<1x32x4xf32> to vector<32x4xf32>
    %cst_37 = arith.constant dense<0.000000e+00> : vector<32x288xf32>
    %41 = tpu.matmul %40, %38, %cst_37 {dimension_numbers = #tpu.dot_dimension_numbers<[1], [0], [0], [1], [0, 0, 1, 1], [], []>} : vector<32x4xf32>, vector<4x288xf32>, vector<32x288xf32> -> vector<32x288xf32>
    %42 = arith.addf %36, %41 : vector<32x288xf32>
    %c0_38 = arith.constant 0 : index
    %c0_39 = arith.constant 0 : index
    %c37 = arith.constant 37 : index
    %43 = vector.load %arg1[%c0_38, %c0_39, %c37] : memref<1x4x342xf32, #tpu.memory_space<vmem>>, vector<1x4x288xf32>
    %44 = vector.shape_cast %43 : vector<1x4x288xf32> to vector<4x288xf32>
    %c7 = arith.constant 7 : index
    %c0_40 = arith.constant 0 : index
    %c0_41 = arith.constant 0 : index
    %45 = vector.load %arg2[%c7, %c0_40, %c0_41] : memref<9x32x4xf32, #tpu.memory_space<vmem>>, vector<1x32x4xf32>
    %46 = vector.shape_cast %45 : vector<1x32x4xf32> to vector<32x4xf32>
    %cst_42 = arith.constant dense<0.000000e+00> : vector<32x288xf32>
    %47 = tpu.matmul %46, %44, %cst_42 {dimension_numbers = #tpu.dot_dimension_numbers<[1], [0], [0], [1], [0, 0, 1, 1], [], []>} : vector<32x4xf32>, vector<4x288xf32>, vector<32x288xf32> -> vector<32x288xf32>
    %48 = arith.addf %42, %47 : vector<32x288xf32>
    %c0_43 = arith.constant 0 : index
    %c0_44 = arith.constant 0 : index
    %c38 = arith.constant 38 : index
    %49 = vector.load %arg1[%c0_43, %c0_44, %c38] : memref<1x4x342xf32, #tpu.memory_space<vmem>>, vector<1x4x288xf32>
    %50 = vector.shape_cast %49 : vector<1x4x288xf32> to vector<4x288xf32>
    %c8 = arith.constant 8 : index
    %c0_45 = arith.constant 0 : index
    %c0_46 = arith.constant 0 : index
    %51 = vector.load %arg2[%c8, %c0_45, %c0_46] : memref<9x32x4xf32, #tpu.memory_space<vmem>>, vector<1x32x4xf32>
    %52 = vector.shape_cast %51 : vector<1x32x4xf32> to vector<32x4xf32>
    %cst_47 = arith.constant dense<0.000000e+00> : vector<32x288xf32>
    %53 = tpu.matmul %52, %50, %cst_47 {dimension_numbers = #tpu.dot_dimension_numbers<[1], [0], [0], [1], [0, 0, 1, 1], [], []>} : vector<32x4xf32>, vector<4x288xf32>, vector<32x288xf32> -> vector<32x288xf32>
    %54 = arith.addf %48, %53 : vector<32x288xf32>
    %c0_48 = arith.constant 0 : index
    %c0_49 = arith.constant 0 : index
    %55 = vector.load %arg3[%c0_48, %c0_49] : memref<1x288xf32, #tpu.memory_space<vmem>>, vector<1x288xf32>
    %56 = vector.broadcast %55 : vector<1x288xf32> to vector<32x288xf32>
    %57 = arith.mulf %54, %56 : vector<32x288xf32>
    %cst_50 = arith.constant dense<0.000000e+00> : vector<32xf32>
    %58 = vector.multi_reduction <add>, %57, %cst_50 [1] : vector<32x288xf32> to vector<32xf32>
    %59 = vector.shape_cast %58 : vector<32xf32> to vector<32x1xf32>
    %c0_51 = arith.constant 0 : index
    %c0_52 = arith.constant 0 : index
    %c0_53 = arith.constant 0 : index
    %60 = vector.load %arg4[%c0_51, %c0_52, %c0_53] : memref<1x32x1xf32, #tpu.memory_space<vmem>>, vector<1x32x1xf32>
    %61 = vector.shape_cast %60 : vector<1x32x1xf32> to vector<32x1xf32>
    %62 = vector.shape_cast %59 : vector<32x1xf32> to vector<1x32x1xf32>
    tpu.vector_store %arg4[%c0_51, %c0_52, %c0_53], %62 {strides = array<i32>} : memref<1x32x1xf32, #tpu.memory_space<vmem>>, vector<1x32x1xf32>,
    %63 = arith.mulf %57, %57 : vector<32x288xf32>
    %cst_54 = arith.constant dense<0.000000e+00> : vector<32xf32>
    %64 = vector.multi_reduction <add>, %63, %cst_54 [1] : vector<32x288xf32> to vector<32xf32>
    %65 = vector.shape_cast %64 : vector<32xf32> to vector<32x1xf32>
    %c0_55 = arith.constant 0 : index
    %c0_56 = arith.constant 0 : index
    %c0_57 = arith.constant 0 : index
    %66 = vector.load %arg5[%c0_55, %c0_56, %c0_57] : memref<1x32x1xf32, #tpu.memory_space<vmem>>, vector<1x32x1xf32>
    %67 = vector.shape_cast %66 : vector<1x32x1xf32> to vector<32x1xf32>
    %68 = vector.shape_cast %65 : vector<32x1xf32> to vector<1x32x1xf32>
    tpu.vector_store %arg5[%c0_55, %c0_56, %c0_57], %68 {strides = array<i32>} : memref<1x32x1xf32, #tpu.memory_space<vmem>>, vector<1x32x1xf32>,
    return
  }
  func.func @transform_0(%arg0: i32) -> (i32, i32, i32) {
    %c0_i32 = arith.constant 0 : i32
    %c0_i32_0 = arith.constant 0 : i32
    %c0_i32_1 = arith.constant 0 : i32
    return %arg0, %c0_i32, %c0_i32_0 : i32, i32, i32
  }
  func.func @transform_1(%arg0: i32) -> (i32, i32, i32) {
    %c0_i32 = arith.constant 0 : i32
    %c0_i32_0 = arith.constant 0 : i32
    %c0_i32_1 = arith.constant 0 : i32
    %c0_i32_2 = arith.constant 0 : i32
    return %c0_i32, %c0_i32_0, %c0_i32_1 : i32, i32, i32
  }
  func.func @transform_2(%arg0: i32) -> (i32, i32) {
    %c0_i32 = arith.constant 0 : i32
    %c0_i32_0 = arith.constant 0 : i32
    %c0_i32_1 = arith.constant 0 : i32
    return %c0_i32, %c0_i32_0 : i32, i32
  }
  func.func @transform_3(%arg0: i32) -> (i32, i32, i32) {
    %c0_i32 = arith.constant 0 : i32
    %c0_i32_0 = arith.constant 0 : i32
    %c0_i32_1 = arith.constant 0 : i32
    return %arg0, %c0_i32, %c0_i32_0 : i32, i32, i32
  }
  func.func @transform_4(%arg0: i32) -> (i32, i32, i32) {
    %c0_i32 = arith.constant 0 : i32
    %c0_i32_0 = arith.constant 0 : i32
    %c0_i32_1 = arith.constant 0 : i32
    return %arg0, %c0_i32, %c0_i32_0 : i32, i32, i32
  }
}

module attributes {stable_mosaic.version = 11 : i64} {
  func.func @_conv_bn_relu_kernel(%arg0: i32, %arg1: memref<1x4x342xf32, #tpu.memory_space<vmem>>, %arg2: memref<9x32x4xf32, #tpu.memory_space<vmem>>, %arg3: memref<32x1xf32, #tpu.memory_space<vmem>>, %arg4: memref<1x32x288xf32, #tpu.memory_space<vmem>>) attributes {dimension_semantics = [#tpu.dimension_semantics<parallel>], iteration_bounds = array<i64: 2>, scalar_prefetch = 0 : i64, scratch_operands = 0 : i64, tpu.core_type = #tpu.core_type<tc>, window_params = [{transform_indices = @transform_0, window_bounds = array<i64: 1, 4, 342>}, {pipeline_mode = #tpu.pipeline_mode<synchronous>, transform_indices = @transform_1, window_bounds = array<i64: 9, 32, 4>}, {pipeline_mode = #tpu.pipeline_mode<synchronous>, transform_indices = @transform_2, window_bounds = array<i64: 32, 1>}, {transform_indices = @transform_3, window_bounds = array<i64: 1, 32, 288>}]} {
    %cst = arith.constant 0.000000e+00 : f32
    %0 = vector.broadcast %cst : f32 to vector<32x288xf32>
    %c0 = arith.constant 0 : index
    %c0_0 = arith.constant 0 : index
    %c0_1 = arith.constant 0 : index
    %1 = vector.load %arg1[%c0, %c0_0, %c0_1] : memref<1x4x342xf32, #tpu.memory_space<vmem>>, vector<1x4x288xf32>
    %2 = vector.shape_cast %1 : vector<1x4x288xf32> to vector<4x288xf32>
    %c0_2 = arith.constant 0 : index
    %c0_3 = arith.constant 0 : index
    %c0_4 = arith.constant 0 : index
    %3 = vector.load %arg2[%c0_2, %c0_3, %c0_4] : memref<9x32x4xf32, #tpu.memory_space<vmem>>, vector<1x32x4xf32>
    %4 = vector.shape_cast %3 : vector<1x32x4xf32> to vector<32x4xf32>
    %cst_5 = arith.constant dense<0.000000e+00> : vector<32x288xf32>
    %5 = tpu.matmul %4, %2, %cst_5 {dimension_numbers = #tpu.dot_dimension_numbers<[1], [0], [0], [1], [0, 0, 1, 1], [], []>} : vector<32x4xf32>, vector<4x288xf32>, vector<32x288xf32> -> vector<32x288xf32>
    %6 = arith.addf %0, %5 : vector<32x288xf32>
    %c0_6 = arith.constant 0 : index
    %c0_7 = arith.constant 0 : index
    %c1 = arith.constant 1 : index
    %7 = vector.load %arg1[%c0_6, %c0_7, %c1] : memref<1x4x342xf32, #tpu.memory_space<vmem>>, vector<1x4x288xf32>
    %8 = vector.shape_cast %7 : vector<1x4x288xf32> to vector<4x288xf32>
    %c1_8 = arith.constant 1 : index
    %c0_9 = arith.constant 0 : index
    %c0_10 = arith.constant 0 : index
    %9 = vector.load %arg2[%c1_8, %c0_9, %c0_10] : memref<9x32x4xf32, #tpu.memory_space<vmem>>, vector<1x32x4xf32>
    %10 = vector.shape_cast %9 : vector<1x32x4xf32> to vector<32x4xf32>
    %cst_11 = arith.constant dense<0.000000e+00> : vector<32x288xf32>
    %11 = tpu.matmul %10, %8, %cst_11 {dimension_numbers = #tpu.dot_dimension_numbers<[1], [0], [0], [1], [0, 0, 1, 1], [], []>} : vector<32x4xf32>, vector<4x288xf32>, vector<32x288xf32> -> vector<32x288xf32>
    %12 = arith.addf %6, %11 : vector<32x288xf32>
    %c0_12 = arith.constant 0 : index
    %c0_13 = arith.constant 0 : index
    %c2 = arith.constant 2 : index
    %13 = vector.load %arg1[%c0_12, %c0_13, %c2] : memref<1x4x342xf32, #tpu.memory_space<vmem>>, vector<1x4x288xf32>
    %14 = vector.shape_cast %13 : vector<1x4x288xf32> to vector<4x288xf32>
    %c2_14 = arith.constant 2 : index
    %c0_15 = arith.constant 0 : index
    %c0_16 = arith.constant 0 : index
    %15 = vector.load %arg2[%c2_14, %c0_15, %c0_16] : memref<9x32x4xf32, #tpu.memory_space<vmem>>, vector<1x32x4xf32>
    %16 = vector.shape_cast %15 : vector<1x32x4xf32> to vector<32x4xf32>
    %cst_17 = arith.constant dense<0.000000e+00> : vector<32x288xf32>
    %17 = tpu.matmul %16, %14, %cst_17 {dimension_numbers = #tpu.dot_dimension_numbers<[1], [0], [0], [1], [0, 0, 1, 1], [], []>} : vector<32x4xf32>, vector<4x288xf32>, vector<32x288xf32> -> vector<32x288xf32>
    %18 = arith.addf %12, %17 : vector<32x288xf32>
    %c0_18 = arith.constant 0 : index
    %c0_19 = arith.constant 0 : index
    %c18 = arith.constant 18 : index
    %19 = vector.load %arg1[%c0_18, %c0_19, %c18] : memref<1x4x342xf32, #tpu.memory_space<vmem>>, vector<1x4x288xf32>
    %20 = vector.shape_cast %19 : vector<1x4x288xf32> to vector<4x288xf32>
    %c3 = arith.constant 3 : index
    %c0_20 = arith.constant 0 : index
    %c0_21 = arith.constant 0 : index
    %21 = vector.load %arg2[%c3, %c0_20, %c0_21] : memref<9x32x4xf32, #tpu.memory_space<vmem>>, vector<1x32x4xf32>
    %22 = vector.shape_cast %21 : vector<1x32x4xf32> to vector<32x4xf32>
    %cst_22 = arith.constant dense<0.000000e+00> : vector<32x288xf32>
    %23 = tpu.matmul %22, %20, %cst_22 {dimension_numbers = #tpu.dot_dimension_numbers<[1], [0], [0], [1], [0, 0, 1, 1], [], []>} : vector<32x4xf32>, vector<4x288xf32>, vector<32x288xf32> -> vector<32x288xf32>
    %24 = arith.addf %18, %23 : vector<32x288xf32>
    %c0_23 = arith.constant 0 : index
    %c0_24 = arith.constant 0 : index
    %c19 = arith.constant 19 : index
    %25 = vector.load %arg1[%c0_23, %c0_24, %c19] : memref<1x4x342xf32, #tpu.memory_space<vmem>>, vector<1x4x288xf32>
    %26 = vector.shape_cast %25 : vector<1x4x288xf32> to vector<4x288xf32>
    %c4 = arith.constant 4 : index
    %c0_25 = arith.constant 0 : index
    %c0_26 = arith.constant 0 : index
    %27 = vector.load %arg2[%c4, %c0_25, %c0_26] : memref<9x32x4xf32, #tpu.memory_space<vmem>>, vector<1x32x4xf32>
    %28 = vector.shape_cast %27 : vector<1x32x4xf32> to vector<32x4xf32>
    %cst_27 = arith.constant dense<0.000000e+00> : vector<32x288xf32>
    %29 = tpu.matmul %28, %26, %cst_27 {dimension_numbers = #tpu.dot_dimension_numbers<[1], [0], [0], [1], [0, 0, 1, 1], [], []>} : vector<32x4xf32>, vector<4x288xf32>, vector<32x288xf32> -> vector<32x288xf32>
    %30 = arith.addf %24, %29 : vector<32x288xf32>
    %c0_28 = arith.constant 0 : index
    %c0_29 = arith.constant 0 : index
    %c20 = arith.constant 20 : index
    %31 = vector.load %arg1[%c0_28, %c0_29, %c20] : memref<1x4x342xf32, #tpu.memory_space<vmem>>, vector<1x4x288xf32>
    %32 = vector.shape_cast %31 : vector<1x4x288xf32> to vector<4x288xf32>
    %c5 = arith.constant 5 : index
    %c0_30 = arith.constant 0 : index
    %c0_31 = arith.constant 0 : index
    %33 = vector.load %arg2[%c5, %c0_30, %c0_31] : memref<9x32x4xf32, #tpu.memory_space<vmem>>, vector<1x32x4xf32>
    %34 = vector.shape_cast %33 : vector<1x32x4xf32> to vector<32x4xf32>
    %cst_32 = arith.constant dense<0.000000e+00> : vector<32x288xf32>
    %35 = tpu.matmul %34, %32, %cst_32 {dimension_numbers = #tpu.dot_dimension_numbers<[1], [0], [0], [1], [0, 0, 1, 1], [], []>} : vector<32x4xf32>, vector<4x288xf32>, vector<32x288xf32> -> vector<32x288xf32>
    %36 = arith.addf %30, %35 : vector<32x288xf32>
    %c0_33 = arith.constant 0 : index
    %c0_34 = arith.constant 0 : index
    %c36 = arith.constant 36 : index
    %37 = vector.load %arg1[%c0_33, %c0_34, %c36] : memref<1x4x342xf32, #tpu.memory_space<vmem>>, vector<1x4x288xf32>
    %38 = vector.shape_cast %37 : vector<1x4x288xf32> to vector<4x288xf32>
    %c6 = arith.constant 6 : index
    %c0_35 = arith.constant 0 : index
    %c0_36 = arith.constant 0 : index
    %39 = vector.load %arg2[%c6, %c0_35, %c0_36] : memref<9x32x4xf32, #tpu.memory_space<vmem>>, vector<1x32x4xf32>
    %40 = vector.shape_cast %39 : vector<1x32x4xf32> to vector<32x4xf32>
    %cst_37 = arith.constant dense<0.000000e+00> : vector<32x288xf32>
    %41 = tpu.matmul %40, %38, %cst_37 {dimension_numbers = #tpu.dot_dimension_numbers<[1], [0], [0], [1], [0, 0, 1, 1], [], []>} : vector<32x4xf32>, vector<4x288xf32>, vector<32x288xf32> -> vector<32x288xf32>
    %42 = arith.addf %36, %41 : vector<32x288xf32>
    %c0_38 = arith.constant 0 : index
    %c0_39 = arith.constant 0 : index
    %c37 = arith.constant 37 : index
    %43 = vector.load %arg1[%c0_38, %c0_39, %c37] : memref<1x4x342xf32, #tpu.memory_space<vmem>>, vector<1x4x288xf32>
    %44 = vector.shape_cast %43 : vector<1x4x288xf32> to vector<4x288xf32>
    %c7 = arith.constant 7 : index
    %c0_40 = arith.constant 0 : index
    %c0_41 = arith.constant 0 : index
    %45 = vector.load %arg2[%c7, %c0_40, %c0_41] : memref<9x32x4xf32, #tpu.memory_space<vmem>>, vector<1x32x4xf32>
    %46 = vector.shape_cast %45 : vector<1x32x4xf32> to vector<32x4xf32>
    %cst_42 = arith.constant dense<0.000000e+00> : vector<32x288xf32>
    %47 = tpu.matmul %46, %44, %cst_42 {dimension_numbers = #tpu.dot_dimension_numbers<[1], [0], [0], [1], [0, 0, 1, 1], [], []>} : vector<32x4xf32>, vector<4x288xf32>, vector<32x288xf32> -> vector<32x288xf32>
    %48 = arith.addf %42, %47 : vector<32x288xf32>
    %c0_43 = arith.constant 0 : index
    %c0_44 = arith.constant 0 : index
    %c38 = arith.constant 38 : index
    %49 = vector.load %arg1[%c0_43, %c0_44, %c38] : memref<1x4x342xf32, #tpu.memory_space<vmem>>, vector<1x4x288xf32>
    %50 = vector.shape_cast %49 : vector<1x4x288xf32> to vector<4x288xf32>
    %c8 = arith.constant 8 : index
    %c0_45 = arith.constant 0 : index
    %c0_46 = arith.constant 0 : index
    %51 = vector.load %arg2[%c8, %c0_45, %c0_46] : memref<9x32x4xf32, #tpu.memory_space<vmem>>, vector<1x32x4xf32>
    %52 = vector.shape_cast %51 : vector<1x32x4xf32> to vector<32x4xf32>
    %cst_47 = arith.constant dense<0.000000e+00> : vector<32x288xf32>
    %53 = tpu.matmul %52, %50, %cst_47 {dimension_numbers = #tpu.dot_dimension_numbers<[1], [0], [0], [1], [0, 0, 1, 1], [], []>} : vector<32x4xf32>, vector<4x288xf32>, vector<32x288xf32> -> vector<32x288xf32>
    %54 = arith.addf %48, %53 : vector<32x288xf32>
    %c0_48 = arith.constant 0 : index
    %c0_49 = arith.constant 0 : index
    %55 = vector.load %arg3[%c0_48, %c0_49] : memref<32x1xf32, #tpu.memory_space<vmem>>, vector<32x1xf32>
    %56 = vector.broadcast %55 : vector<32x1xf32> to vector<32x288xf32>
    %57 = arith.addf %54, %56 : vector<32x288xf32>
    %cst_50 = arith.constant 0.000000e+00 : f32
    %58 = vector.broadcast %cst_50 : f32 to vector<32x288xf32>
    %59 = arith.maximumf %57, %58 : vector<32x288xf32>
    %c0_51 = arith.constant 0 : index
    %c0_52 = arith.constant 0 : index
    %c0_53 = arith.constant 0 : index
    %60 = vector.load %arg4[%c0_51, %c0_52, %c0_53] : memref<1x32x288xf32, #tpu.memory_space<vmem>>, vector<1x32x288xf32>
    %61 = vector.shape_cast %60 : vector<1x32x288xf32> to vector<32x288xf32>
    %62 = vector.shape_cast %59 : vector<32x288xf32> to vector<1x32x288xf32>
    tpu.vector_store %arg4[%c0_51, %c0_52, %c0_53], %62 {strides = array<i32>} : memref<1x32x288xf32, #tpu.memory_space<vmem>>, vector<1x32x288xf32>,
    return
  }
  func.func @transform_0(%arg0: i32) -> (i32, i32, i32) {
    %c0_i32 = arith.constant 0 : i32
    %c0_i32_0 = arith.constant 0 : i32
    %c0_i32_1 = arith.constant 0 : i32
    return %arg0, %c0_i32, %c0_i32_0 : i32, i32, i32
  }
  func.func @transform_1(%arg0: i32) -> (i32, i32, i32) {
    %c0_i32 = arith.constant 0 : i32
    %c0_i32_0 = arith.constant 0 : i32
    %c0_i32_1 = arith.constant 0 : i32
    %c0_i32_2 = arith.constant 0 : i32
    return %c0_i32, %c0_i32_0, %c0_i32_1 : i32, i32, i32
  }
  func.func @transform_2(%arg0: i32) -> (i32, i32) {
    %c0_i32 = arith.constant 0 : i32
    %c0_i32_0 = arith.constant 0 : i32
    %c0_i32_1 = arith.constant 0 : i32
    return %c0_i32, %c0_i32_0 : i32, i32
  }
  func.func @transform_3(%arg0: i32) -> (i32, i32, i32) {
    %c0_i32 = arith.constant 0 : i32
    %c0_i32_0 = arith.constant 0 : i32
    %c0_i32_1 = arith.constant 0 : i32
    return %arg0, %c0_i32, %c0_i32_0 : i32, i32, i32
  }
}

</mosaic_0001>

<llo_original>
// kernel: tile.18
$region0: #{tile.18}
  #allocation0 [shape = 's32[1]{0}', space=sflag, size = 0x4, scoped, tag = 'scoped memory for tile.18']
  %s0 = inlined_call_operand.vmem [shape: f32[8], index: 0, kind: input, shape index: {}]
  %s1 = inlined_call_operand.vmem [shape: f32[4,8], index: 1, kind: output, shape index: {}]
  // Predicated region
  $region2: #{tile.18} parent=0 // pred_check
    _
  $region3: #{tile.18} parent=0 // pred_check_branch
    %3 = sbr.rel (0) target = $region5
  $region4: #{tile.18} parent=0 // pred_region
    _
  $region5: #{tile.18} parent=0 // pred_fallthru
    _
  %v4 = vld [vmem:[%s0] ss:$0 sm:$0xff]
  %5 = vst [vmem:[%s1] sm:$0xf] %v4

// kernel: mul.11
$region0: #{mul.11}
  %s0 = inlined_call_operand.vmem [shape: f32[4,8], index: 0, kind: input, shape index: {}]
  %s1 = inlined_call_operand.vmem [shape: f32[32], index: 1, kind: output, shape index: {}]
  $region1: #{mul.11} parent=0
    #allocation0 [shape = 'u8[4096]{0}', space=vmem, size = 0x1000, scoped, tag = 'scoped mem for output reshape']
    #allocation1 [shape = 'u8[4096]{0}', space=vmem, size = 0x1000, scoped, tag = 'scoped mem for input reshape']
    %s3 = sshll.u32 1, 4
    %s4 = ssub.s32 %s3, 1
    %v5 = vld [vmem:[%s0] sm:%s4]
    %6 = vst [vmem:[#allocation1] sm:%s4] %v5
    %v7 = vld [vmem:[#allocation1] sm:$0x1]
    %vm8 = vcmask 64512
    %9 = vst.msk [vmem:[#allocation0] sm:$0x1] %vm8, %v7
    %s10 = scalar_lea.vmem [#allocation1], 3
    %v11 = vld [vmem:[%s10] sm:$0x1]
    %12 = vrot.lane.b32.xlu0 %v11, 24
    %v13 = vpop.permute.xlu0 %12
    %vm14 = vcmask 261312
    %15 = vst.msk [vmem:[#allocation0] sm:$0x1] %vm14, %v13
    %s16 = scalar_lea.vmem [#allocation1], 2
    %v17 = vld [vmem:[%s16] sm:$0x1]
    %18 = vrot.lane.b32.xlu0 %v17, 16
    %v19 = vpop.permute.xlu0 %18
    %vm20 = vcmask 195712
    %21 = vst.msk [vmem:[#allocation0] sm:$0x1] %vm20, %v19
    %s22 = scalar_lea.vmem [#allocation1], 1
    %v23 = vld [vmem:[%s22] sm:$0x1]
    %24 = vrot.lane.b32.xlu0 %v23, 8
    %v25 = vpop.permute.xlu0 %24
    %vm26 = vcmask 130112
    %27 = vst.msk [vmem:[#allocation0] sm:$0x1] %vm26, %v25
    %s29 = sshll.u32 1, 1
    %s30 = ssub.s32 %s29, 1
    %v32 = vld [vmem:[#allocation0] sm:%s30]
    %s33 = sshll.u32 1, 1
    %s34 = ssub.s32 %s33, 1
    %35 = vst [vmem:[%s1] sm:%s34] %v32

// kernel: tile.0
$region0: #{tile.0}
  %s0 = inlined_call_operand.vmem [shape: f32[4,8], index: 0, kind: input, shape index: {}]
  %s1 = inlined_call_operand.vmem [shape: f32[32,1], index: 1, kind: output, shape index: {}]
  $region1: #{tile.0} parent=0
    #allocation0 [shape = 'u8[4096]{0}', space=vmem, size = 0x1000, scoped, tag = 'scoped mem for input reshape']
    %s3 = sshll.u32 1, 4
    %s4 = ssub.s32 %s3, 1
    %v5 = vld [vmem:[%s0] sm:%s4]
    %6 = vst [vmem:[#allocation0] sm:%s4] %v5
    %v7 = vld [vmem:[#allocation0] sm:$0xf]
    %vm8 = vcmask 7168
    %9 = vst.msk [vmem:[%s1] ss:$8 sm:$0xf] %vm8, %v7
    %v10 = vld [vmem:[#allocation0] sm:$0xf]
    %11 = vrot.lane.b32.xlu0 %v10, 127
    %v12 = vpop.permute.xlu0 %11
    %vm13 = vcmask 7168
    %s14 = scalar_lea.vmem %s1, 1
    %15 = vst.msk [vmem:[%s14] ss:$8 sm:$0xf] %vm13, %v12
    %v16 = vld [vmem:[#allocation0] sm:$0xf]
    %17 = vrot.lane.b32.xlu0 %v16, 126
    %v18 = vpop.permute.xlu0 %17
    %vm19 = vcmask 7168
    %s20 = scalar_lea.vmem %s1, 2
    %21 = vst.msk [vmem:[%s20] ss:$8 sm:$0xf] %vm19, %v18
    %v22 = vld [vmem:[#allocation0] sm:$0xf]
    %23 = vrot.lane.b32.xlu0 %v22, 125
    %v24 = vpop.permute.xlu0 %23
    %vm25 = vcmask 7168
    %s26 = scalar_lea.vmem %s1, 3
    %27 = vst.msk [vmem:[%s26] ss:$8 sm:$0xf] %vm25, %v24
    %v28 = vld [vmem:[#allocation0] sm:$0xf]
    %29 = vrot.lane.b32.xlu0 %v28, 124
    %v30 = vpop.permute.xlu0 %29
    %vm31 = vcmask 7168
    %s32 = scalar_lea.vmem %s1, 4
    %33 = vst.msk [vmem:[%s32] ss:$8 sm:$0xf] %vm31, %v30
    %v34 = vld [vmem:[#allocation0] sm:$0xf]
    %35 = vrot.lane.b32.xlu0 %v34, 123
    %v36 = vpop.permute.xlu0 %35
    %vm37 = vcmask 7168
    %s38 = scalar_lea.vmem %s1, 5
    %39 = vst.msk [vmem:[%s38] ss:$8 sm:$0xf] %vm37, %v36
    %v40 = vld [vmem:[#allocation0] sm:$0xf]
    %41 = vrot.lane.b32.xlu0 %v40, 122
    %v42 = vpop.permute.xlu0 %41
    %vm43 = vcmask 7168
    %s44 = scalar_lea.vmem %s1, 6
    %45 = vst.msk [vmem:[%s44] ss:$8 sm:$0xf] %vm43, %v42
    %v46 = vld [vmem:[#allocation0] sm:$0xf]
    %47 = vrot.lane.b32.xlu0 %v46, 121
    %v48 = vpop.permute.xlu0 %47
    %vm49 = vcmask 7168
    %s50 = scalar_lea.vmem %s1, 7
    %51 = vst.msk [vmem:[%s50] ss:$8 sm:$0xf] %vm49, %v48

// kernel: up_conv_forward.3
$region0: #{up_conv_forward.3}
  #allocation0 [shape = 'u32[]', space=smem, size = 0x4, offset = 0x4, fixed_abs, tag = 'smem constant byte address 0x4 - core index']
  #allocation1 [shape = 'u32[144,128]{1,0:T(1,128)}', space=vmem, size = 0x12000, scoped, tag = 'internal scratch']
  %s0 = inlined_call_operand.vmem [shape: f32[2,4,342], index: 0, kind: input, shape index: {}]
  %s1 = inlined_call_operand.vmem [shape: f32[9,32,4], index: 1, kind: input, shape index: {}]
  %s2 = inlined_call_operand.vmem [shape: f32[32,1], index: 2, kind: input, shape index: {}]
  %s3 = inlined_call_operand.vmem [shape: f32[2,32,288], index: 3, kind: output, shape index: {}]
  %s4 = sld [smem:[#allocation0]]
  $region45: #{up_conv_forward.3} parent=0
    _
  %s6 = ssub.s32 1, %s4
  %s7 = scalar_select 0, %s6, %s4
  loop: start=0, step=1, limit=4
  $region2: #{up_conv_forward.3} parent=0 // loop_pre_header
    _
  $region3: #{up_conv_forward.3} parent=0 // loop_header
    %s9 = sphi 0, %s13
    %p10 = scmp.ge.s32.totalorder %s9, 4
    %s19 = sphi 0, %s21
    %s22 = sphi 0, %s19
    %s23 = sphi 0, %s22
    %s39 = sphi 0, %s23
    %s43 = sphi 0, %s43
    %s45 = sphi 0, %s43
    %s46 = sphi 0, %s45
    %s60 = sphi 0, %s46
    %s64 = sphi 0, %s64
    %s66 = sphi 0, %s64
    %s67 = sphi 0, %s66
    %s81 = sphi 0, %s67
    %s87 = sphi 0, %s89
    %s90 = sphi 0, %s87
    %s91 = sphi 0, %s90
    %s107 = sphi 0, %s91
  $region4: #{up_conv_forward.3} parent=0 // loop_header_branch
    %12 = sbr.rel (%p10) target = $region8
  $region5: #{up_conv_forward.3} parent=0 // loop_body
    %s14 = ssub.s32 %s9, 1
    %s15 = ssub.s32 %s9, 2
    %s16 = sadd.s32 %s9, 1
    %s17 = ssub.s32 %s9, %s16
    %p18 = scmp.eq.s32.totalorder %s17, 0
    %s20 = sadd.s32 %s19, 1
    %s21 = scalar_select %p18, %s19, %s20
    %p24 = pneg %p18
    %p25 = scmp.eq.s32.totalorder %s9, 1
    %p26 = por %p24, %p25
    %p27 = scmp.ne.s32.totalorder %s19, %s22
    %p28 = scmp.eq.s32.totalorder %s9, 0
    %p29 = por %p27, %p28
    %p30 = scmp.ne.s32.totalorder %s19, %s22
    %p31 = scmp.eq.s32.totalorder %s14, 1
    %p32 = por %p30, %p31
    %p33 = scmp.ne.s32.totalorder %s22, %s23
    %p34 = scmp.eq.s32.totalorder %s14, 0
    %p35 = por %p33, %p34
    %p36 = scmp.ne.s32.totalorder %s22, %s23
    %p37 = scmp.eq.s32.totalorder %s15, 1
    %p38 = por %p36, %p37
    %p40 = scmp.ne.s32.totalorder %s23, %s39
    %p41 = scmp.eq.s32.totalorder %s15, 0
    %p42 = por %p40, %p41
    %s44 = sadd.s32 %s43, 1
    %p47 = scmp.eq.s32.totalorder %s9, 1
    %p48 = scmp.ne.s32.totalorder %s43, %s45
    %p49 = scmp.eq.s32.totalorder %s9, 0
    %p50 = por %p48, %p49
    %p51 = scmp.ne.s32.totalorder %s43, %s45
    %p52 = scmp.eq.s32.totalorder %s14, 1
    %p53 = por %p51, %p52
    %p54 = scmp.ne.s32.totalorder %s45, %s46
    %p55 = scmp.eq.s32.totalorder %s14, 0
    %p56 = por %p54, %p55
    %p57 = scmp.ne.s32.totalorder %s45, %s46
    %p58 = scmp.eq.s32.totalorder %s15, 1
    %p59 = por %p57, %p58
    %p61 = scmp.ne.s32.totalorder %s46, %s60
    %p62 = scmp.eq.s32.totalorder %s15, 0
    %p63 = por %p61, %p62
    %s65 = sadd.s32 %s64, 1
    %p68 = scmp.eq.s32.totalorder %s9, 1
    %p69 = scmp.ne.s32.totalorder %s64, %s66
    %p70 = scmp.eq.s32.totalorder %s9, 0
    %p71 = por %p69, %p70
    %p72 = scmp.ne.s32.totalorder %s64, %s66
    %p73 = scmp.eq.s32.totalorder %s14, 1
    %p74 = por %p72, %p73
    %p75 = scmp.ne.s32.totalorder %s66, %s67
    %p76 = scmp.eq.s32.totalorder %s14, 0
    %p77 = por %p75, %p76
    %p78 = scmp.ne.s32.totalorder %s66, %s67
    %p79 = scmp.eq.s32.totalorder %s15, 1
    %p80 = por %p78, %p79
    %p82 = scmp.ne.s32.totalorder %s67, %s81
    %p83 = scmp.eq.s32.totalorder %s15, 0
    %p84 = por %p82, %p83
    %s85 = ssub.s32 %s9, %s16
    %p86 = scmp.eq.s32.totalorder %s85, 0
    %s88 = sadd.s32 %s87, 1
    %s89 = scalar_select %p86, %s87, %s88
    %p92 = pneg %p86
    %p93 = scmp.eq.s32.totalorder %s9, 1
    %p94 = por %p92, %p93
    %p95 = scmp.ne.s32.totalorder %s87, %s90
    %p96 = scmp.eq.s32.totalorder %s9, 0
    %p97 = por %p95, %p96
    %p98 = scmp.ne.s32.totalorder %s87, %s90
    %p99 = scmp.eq.s32.totalorder %s14, 1
    %p100 = por %p98, %p99
    %p101 = scmp.ne.s32.totalorder %s90, %s91
    %p102 = scmp.eq.s32.totalorder %s14, 0
    %p103 = por %p101, %p102
    %p104 = scmp.ne.s32.totalorder %s90, %s91
    %p105 = scmp.eq.s32.totalorder %s15, 1
    %p106 = por %p104, %p105
    %p108 = scmp.ne.s32.totalorder %s91, %s107
    %p109 = scmp.eq.s32.totalorder %s15, 0
    %p110 = por %p108, %p109
    %p111 = scmp.le.s32.totalorder 1, %s9
    %p112 = scmp.lt.s32.totalorder %s9, 3
    %p113 = pnand %p111, %p112
    %p114 = pneg %p113
    // Predicated region
    $region9: #{up_conv_forward.3} parent=5 // pred_check
      _
    $region10: #{up_conv_forward.3} parent=5 // pred_check_branch
      %116 = sbr.rel (%p113) target = $region12
    $region11: #{up_conv_forward.3} parent=5 // pred_region
      %s117 = ssub.s32 %s9, 1
      // Predicated region
      $region13: #{up_conv_forward.3} parent=11 // pred_check
        %p118 = pneg %p56
      $region14: #{up_conv_forward.3} parent=11 // pred_check_branch
        %120 = sbr.rel (%p118) target = $region16
      $region15: #{up_conv_forward.3} parent=11 // pred_region
        _
      $region16: #{up_conv_forward.3} parent=11 // pred_fallthru
        _
      // Predicated region
      $region17: #{up_conv_forward.3} parent=11 // pred_check
        %p121 = pneg %p77
      $region18: #{up_conv_forward.3} parent=11 // pred_check_branch
        %123 = sbr.rel (%p121) target = $region20
      $region19: #{up_conv_forward.3} parent=11 // pred_region
        _
      $region20: #{up_conv_forward.3} parent=11 // pred_fallthru
        _
    $region12: #{up_conv_forward.3} parent=5 // pred_fallthru
      _
    %p124 = scmp.lt.s32.totalorder %s9, 2
    // Predicated region
    $region21: #{up_conv_forward.3} parent=5 // pred_check
      %p125 = pneg %p124
    $region22: #{up_conv_forward.3} parent=5 // pred_check_branch
      %127 = sbr.rel (%p125) target = $region24
    $region23: #{up_conv_forward.3} parent=5 // pred_region
      // Predicated region
      $region25: #{up_conv_forward.3} parent=23 // pred_check
        %p128 = pneg %p29
      $region26: #{up_conv_forward.3} parent=23 // pred_check_branch
        %130 = sbr.rel (%p128) target = $region28
      $region27: #{up_conv_forward.3} parent=23 // pred_region
        %p131 = scmp.lt.s32.totalorder %s9, 1
        %s132 = scalar_select %p131, %s9, 1
        %s133 = smul.addr %s132, 3
        %s134 = smul.addr %s133, 4
        %s135 = scalar_lea.vmem %s0, %s134
      $region28: #{up_conv_forward.3} parent=23 // pred_fallthru
        _
    $region24: #{up_conv_forward.3} parent=5 // pred_fallthru
      _
    %p136 = scmp.le.s32.totalorder 1, %s9
    %p137 = scmp.lt.s32.totalorder %s9, 3
    %p138 = pnand %p136, %p137
    %p139 = pneg %p138
    // Predicated region
    $region29: #{up_conv_forward.3} parent=5 // pred_check
      _
    $region30: #{up_conv_forward.3} parent=5 // pred_check_branch
      %141 = sbr.rel (%p138) target = $region32
    $region31: #{up_conv_forward.3} parent=5 // pred_region
      %s142 = ssub.s32 %s9, 1
      %p143 = scmp.lt.s32.totalorder %s14, 1
      %s144 = scalar_select %p143, %s14, 1
      %s145 = smul.addr %s144, 3
      %s146 = smul.addr %s145, 4
      %s147 = scalar_lea.vmem %s0, %s146
      %p148 = pneg %p35
      %p149 = pneg %p32
      %p150 = pneg %p56
      %p151 = pneg %p53
      %p152 = pneg %p77
      %p153 = pneg %p74
      %p154 = pneg %p103
      %p155 = pneg %p100
      %p156 = scmp.lt.s32.totalorder %s14, 1
      %s157 = scalar_select %p156, %s14, 1
      %s158 = smul.addr %s157, 12
      %s159 = smul.addr %s158, 8
      %s160 = scalar_lea.vmem %s3, %s159
      %p161 = scmp.lt.s32.totalorder %s14, 1
      %s162 = scalar_select %p161, %s14, 1
      %s163 = smul.addr %s162, 3
      %s164 = smul.addr %s163, 4
      %s165 = scalar_lea.vmem %s0, %s164
      %p166 = scmp.lt.s32.totalorder %s14, 1
      %s167 = scalar_select %p166, %s14, 1
      %s168 = smul.addr %s167, 12
      %s169 = smul.addr %s168, 8
      %s170 = scalar_lea.vmem %s3, %s169
      %v171 = vld [vmem:[%s165] sm:$0xff]
      %v172 = vld [vmem:[%s165 + $0x8] sm:$0xf]
      %v173 = vld [vmem:[%s1] sm:$0xff]
      %v174 = vld [vmem:[%s1 + $0x8] sm:$0xff]
      %v175 = vld [vmem:[%s1 + $0x10] sm:$0xff]
      %v176 = vld [vmem:[%s1 + $0x18] sm:$0xff]
      %s177 = scalar_lea.vmem %s1, 32
      %v178 = vld [vmem:[%s177] sm:$0xff]
      %v179 = vld [vmem:[%s177 + $0x8] sm:$0xff]
      %v180 = vld [vmem:[%s177 + $0x10] sm:$0xff]
      %v181 = vld [vmem:[%s177 + $0x18] sm:$0xff]
      %v184 = vcombine.high %v171, %v171
      %185 = vrot.lane.b32.xlu0 %v171, 127
      %v186 = vpop.permute.xlu0 %185
      %187 = vrot.lane.b32.xlu0 %v184, 127
      %v188 = vpop.permute.xlu0 %187
      %189 = vrot.lane.b32.xlu0 %v172, 127
      %v190 = vpop.permute.xlu0 %189
      %vm191 = vcmask 1039360
      %v192 = vsel %vm191, %v186, %v188
      %v193 = vsel %vm191, %v188, %v190
      %vm194 = vcmask 31744
      %v196 = vsel %vm194, %v178, 0
      %v199 = vsel %vm194, %v179, 0
      %v202 = vsel %vm194, %v180, 0
      %v205 = vsel %vm194, %v181, 0
      %vm207 = vcmask 1043456
      %v208 = vsel %vm207, %v192, 0
      %v210 = vsel %vm207, %v193, 0
      %v212 = vsel %vm207, %v190, 0
      %214 = vmatprep.subr.mxu0 0.0
      %215 = vmatpush1.msra.mxu0 0.0
      %216 = vmatprep.subr.mxu0 0.0
      %217 = vmatpush1.msra.mxu0 0.0
      %218 = vmatprep.subr.mxu0 0.0
      %219 = vmatpush1.msra.mxu0 0.0
      %220 = vmatprep.subr.mxu0 0.0
      %221 = vmatpush1.msra.mxu0 0.0
      %222 = vmatprep.subr.mxu0 0.0
      %223 = vmatpush1.msra.mxu0 0.0
      %224 = vmatprep.subr.mxu0 0.0
      %225 = vmatpush1.msra.mxu0 0.0
      %226 = vmatprep.subr.mxu0 0.0
      %227 = vmatpush1.msra.mxu0 0.0
      %228 = vmatprep.subr.mxu0 0.0
      %229 = vmatpush1.msra.mxu0 0.0
      %230 = vmatprep.subr.mxu0 0.0
      %231 = vmatpush1.msra.mxu0 0.0
      %232 = vmatprep.subr.mxu0 0.0
      %233 = vmatpush1.msra.mxu0 0.0
      %234 = vmatprep.subr.mxu0 0.0
      %235 = vmatpush1.msra.mxu0 0.0
      %236 = vmatprep.subr.mxu0 0.0
      %237 = vmatpush1.msra.mxu0 0.0
      %238 = vmatprep.subr.mxu0 0.0
      %239 = vmatpush1.msra.mxu0 0.0
      %240 = vmatprep.subr.mxu0 0.0
      %241 = vmatpush1.msra.mxu0 0.0
      %242 = vmatprep.subr.mxu0 0.0
      %243 = vmatpush1.msra.mxu0 0.0
      %244 = vmatprep.subr.mxu0 %v210
      %245 = vmatpush1.msra.mxu0 %v208
      %246 = vmatprep.subr.mxu0 0.0
      %247 = vmatpush2.msra.mxu0 0.0
      %248 = vmatprep.subr.mxu0 0.0
      %249 = vmatpush2.msra.mxu0 0.0
      %250 = vmatprep.subr.mxu0 0.0
      %251 = vmatpush2.msra.mxu0 0.0
      %252 = vmatprep.subr.mxu0 0.0
      %253 = vmatpush2.msra.mxu0 0.0
      %254 = vmatprep.subr.mxu0 0.0
      %255 = vmatpush2.msra.mxu0 0.0
      %256 = vmatprep.subr.mxu0 0.0
      %257 = vmatpush2.msra.mxu0 0.0
      %258 = vmatprep.subr.mxu0 0.0
      %259 = vmatpush2.msra.mxu0 0.0
      %260 = vmatprep.subr.mxu0 0.0
      %261 = vmatpush2.msra.mxu0 0.0
      %262 = vmatprep.subr.mxu0 0.0
      %263 = vmatpush2.msra.mxu0 0.0
      %264 = vmatprep.subr.mxu0 0.0
      %265 = vmatpush2.msra.mxu0 0.0
      %266 = vmatprep.subr.mxu0 0.0
      %267 = vmatpush2.msra.mxu0 0.0
      %268 = vmatprep.subr.mxu0 0.0
      %269 = vmatpush2.msra.mxu0 0.0
      %270 = vmatprep.subr.mxu0 0.0
      %271 = vmatpush2.msra.mxu0 0.0
      %272 = vmatprep.subr.mxu0 0.0
      %273 = vmatpush2.msra.mxu0 0.0
      %274 = vmatprep.subr.mxu0 0.0
      %275 = vmatpush2.msra.mxu0 0.0
      %276 = vmatprep.subr.mxu0 0.0
      %277 = vmatpush2.msra.mxu0 0.0
      %278 = vmatprep.mubr.f32.mxu0 0.0
      %279 = vmatmul.mubr.f32.gmra.mxu0 %v196
      %v280 = vpop.f32.mrf.mxu0
      %v281 = vadd.f32 0.0, %v280
      %v282 = vpop.f32.mrf.mxu0
      %v283 = vadd.f32 0.0, %v282
      %284 = vmatprep.mubr.f32.mxu0 0.0
      %285 = vmatmul.mubr.f32.gmra.mxu0 %v199
      %v286 = vpop.f32.mrf.mxu0
      %v287 = vadd.f32 0.0, %v286
      %v288 = vpop.f32.mrf.mxu0
      %v289 = vadd.f32 0.0, %v288
      %290 = vmatprep.mubr.f32.mxu0 0.0
      %291 = vmatmul.mubr.f32.gmra.mxu0 %v202
      %v292 = vpop.f32.mrf.mxu0
      %v293 = vadd.f32 0.0, %v292
      %v294 = vpop.f32.mrf.mxu0
      %v295 = vadd.f32 0.0, %v294
      %296 = vmatprep.mubr.f32.mxu0 0.0
      %297 = vmatmul.mubr.f32.gmra.mxu0 %v205
      %v298 = vpop.f32.mrf.mxu0
      %v299 = vadd.f32 0.0, %v298
      %v300 = vpop.f32.mrf.mxu0
      %v301 = vadd.f32 0.0, %v300
      %302 = vdwg.mxu0
      %303 = vmatprep.subr.mxu0 0.0
      %304 = vmatpush1.msra.mxu0 0.0
      %305 = vmatprep.subr.mxu0 0.0
      %306 = vmatpush1.msra.mxu0 0.0
      %307 = vmatprep.subr.mxu0 0.0
      %308 = vmatpush1.msra.mxu0 0.0
      %309 = vmatprep.subr.mxu0 0.0
      %310 = vmatpush1.msra.mxu0 0.0
      %311 = vmatprep.subr.mxu0 0.0
      %312 = vmatpush1.msra.mxu0 0.0
      %313 = vmatprep.subr.mxu0 0.0
      %314 = vmatpush1.msra.mxu0 0.0
      %315 = vmatprep.subr.mxu0 0.0
      %316 = vmatpush1.msra.mxu0 0.0
      %317 = vmatprep.subr.mxu0 0.0
      %318 = vmatpush1.msra.mxu0 0.0
      %319 = vmatprep.subr.mxu0 0.0
      %320 = vmatpush1.msra.mxu0 0.0
      %321 = vmatprep.subr.mxu0 0.0
      %322 = vmatpush1.msra.mxu0 0.0
      %323 = vmatprep.subr.mxu0 0.0
      %324 = vmatpush1.msra.mxu0 0.0
      %325 = vmatprep.subr.mxu0 0.0
      %326 = vmatpush1.msra.mxu0 0.0
      %327 = vmatprep.subr.mxu0 0.0
      %328 = vmatpush1.msra.mxu0 0.0
      %329 = vmatprep.subr.mxu0 0.0
      %330 = vmatpush1.msra.mxu0 0.0
      %331 = vmatprep.subr.mxu0 0.0
      %332 = vmatpush1.msra.mxu0 0.0
      %333 = vmatprep.subr.mxu0 0.0
      %334 = vmatpush1.msra.mxu0 %v212
      %335 = vmatprep.subr.mxu0 0.0
      %336 = vmatpush2.msra.mxu0 0.0
      %337 = vmatprep.subr.mxu0 0.0
      %338 = vmatpush2.msra.mxu0 0.0
      %339 = vmatprep.subr.mxu0 0.0
      %340 = vmatpush2.msra.mxu0 0.0
      %341 = vmatprep.subr.mxu0 0.0
      %342 = vmatpush2.msra.mxu0 0.0
      %343 = vmatprep.subr.mxu0 0.0
      %344 = vmatpush2.msra.mxu0 0.0
      %345 = vmatprep.subr.mxu0 0.0
      %346 = vmatpush2.msra.mxu0 0.0
      %347 = vmatprep.subr.mxu0 0.0
      %348 = vmatpush2.msra.mxu0 0.0
      %349 = vmatprep.subr.mxu0 0.0
      %350 = vmatpush2.msra.mxu0 0.0
      %351 = vmatprep.subr.mxu0 0.0
      %352 = vmatpush2.msra.mxu0 0.0
      %353 = vmatprep.subr.mxu0 0.0
      %354 = vmatpush2.msra.mxu0 0.0
      %355 = vmatprep.subr.mxu0 0.0
      %356 = vmatpush2.msra.mxu0 0.0
      %357 = vmatprep.subr.mxu0 0.0
      %358 = vmatpush2.msra.mxu0 0.0
      %359 = vmatprep.subr.mxu0 0.0
      %360 = vmatpush2.msra.mxu0 0.0
      %361 = vmatprep.subr.mxu0 0.0
      %362 = vmatpush2.msra.mxu0 0.0
      %363 = vmatprep.subr.mxu0 0.0
      %364 = vmatpush2.msra.mxu0 0.0
      %365 = vmatprep.subr.mxu0 0.0
      %366 = vmatpush2.msra.mxu0 0.0
      %367 = vmatprep.mubr.f32.mxu0 0.0
      %368 = vmatmul.mubr.f32.gmra.mxu0 %v196
      %v369 = vpop.f32.mrf.mxu0
      %v370 = vadd.f32 0.0, %v369
      %v371 = vpop.f32.mrf.mxu0
      %372 = vmatprep.mubr.f32.mxu0 0.0
      %373 = vmatmul.mubr.f32.gmra.mxu0 %v199
      %v374 = vpop.f32.mrf.mxu0
      %v375 = vadd.f32 0.0, %v374
      %v376 = vpop.f32.mrf.mxu0
      %377 = vmatprep.mubr.f32.mxu0 0.0
      %378 = vmatmul.mubr.f32.gmra.mxu0 %v202
      %v379 = vpop.f32.mrf.mxu0
      %v380 = vadd.f32 0.0, %v379
      %v381 = vpop.f32.mrf.mxu0
      %382 = vmatprep.mubr.f32.mxu0 0.0
      %383 = vmatmul.mubr.f32.gmra.mxu0 %v205
      %v384 = vpop.f32.mrf.mxu0
      %v385 = vadd.f32 0.0, %v384
      %v386 = vpop.f32.mrf.mxu0
      %387 = vdwg.mxu0
      %v389 = vsel %vm194, %v173, 0
      %v392 = vsel %vm194, %v174, 0
      %v395 = vsel %vm194, %v175, 0
      %v398 = vsel %vm194, %v176, 0
      %v400 = vsel %vm207, %v171, 0
      %v402 = vsel %vm207, %v184, 0
      %v404 = vsel %vm207, %v172, 0
      %406 = vmatprep.subr.mxu0 0.0
      %407 = vmatpush1.msra.mxu0 0.0
      %408 = vmatprep.subr.mxu0 0.0
      %409 = vmatpush1.msra.mxu0 0.0
      %410 = vmatprep.subr.mxu0 0.0
      %411 = vmatpush1.msra.mxu0 0.0
      %412 = vmatprep.subr.mxu0 0.0
      %413 = vmatpush1.msra.mxu0 0.0
      %414 = vmatprep.subr.mxu0 0.0
      %415 = vmatpush1.msra.mxu0 0.0
      %416 = vmatprep.subr.mxu0 0.0
      %417 = vmatpush1.msra.mxu0 0.0
      %418 = vmatprep.subr.mxu0 0.0
      %419 = vmatpush1.msra.mxu0 0.0
      %420 = vmatprep.subr.mxu0 0.0
      %421 = vmatpush1.msra.mxu0 0.0
      %422 = vmatprep.subr.mxu0 0.0
      %423 = vmatpush1.msra.mxu0 0.0
      %424 = vmatprep.subr.mxu0 0.0
      %425 = vmatpush1.msra.mxu0 0.0
      %426 = vmatprep.subr.mxu0 0.0
      %427 = vmatpush1.msra.mxu0 0.0
      %428 = vmatprep.subr.mxu0 0.0
      %429 = vmatpush1.msra.mxu0 0.0
      %430 = vmatprep.subr.mxu0 0.0
      %431 = vmatpush1.msra.mxu0 0.0
      %432 = vmatprep.subr.mxu0 0.0
      %433 = vmatpush1.msra.mxu0 0.0
      %434 = vmatprep.subr.mxu0 0.0
      %435 = vmatpush1.msra.mxu0 0.0
      %436 = vmatprep.subr.mxu0 %v402
      %437 = vmatpush1.msra.mxu0 %v400
      %438 = vmatprep.subr.mxu0 0.0
      %439 = vmatpush2.msra.mxu0 0.0
      %440 = vmatprep.subr.mxu0 0.0
      %441 = vmatpush2.msra.mxu0 0.0
      %442 = vmatprep.subr.mxu0 0.0
      %443 = vmatpush2.msra.mxu0 0.0
      %444 = vmatprep.subr.mxu0 0.0
      %445 = vmatpush2.msra.mxu0 0.0
      %446 = vmatprep.subr.mxu0 0.0
      %447 = vmatpush2.msra.mxu0 0.0
      %448 = vmatprep.subr.mxu0 0.0
      %449 = vmatpush2.msra.mxu0 0.0
      %450 = vmatprep.subr.mxu0 0.0
      %451 = vmatpush2.msra.mxu0 0.0
      %452 = vmatprep.subr.mxu0 0.0
      %453 = vmatpush2.msra.mxu0 0.0
      %454 = vmatprep.subr.mxu0 0.0
      %455 = vmatpush2.msra.mxu0 0.0
      %456 = vmatprep.subr.mxu0 0.0
      %457 = vmatpush2.msra.mxu0 0.0
      %458 = vmatprep.subr.mxu0 0.0
      %459 = vmatpush2.msra.mxu0 0.0
      %460 = vmatprep.subr.mxu0 0.0
      %461 = vmatpush2.msra.mxu0 0.0
      %462 = vmatprep.subr.mxu0 0.0
      %463 = vmatpush2.msra.mxu0 0.0
      %464 = vmatprep.subr.mxu0 0.0
      %465 = vmatpush2.msra.mxu0 0.0
      %466 = vmatprep.subr.mxu0 0.0
      %467 = vmatpush2.msra.mxu0 0.0
      %468 = vmatprep.subr.mxu0 0.0
      %469 = vmatpush2.msra.mxu0 0.0
      %470 = vmatprep.mubr.f32.mxu0 0.0
      %471 = vmatmul.mubr.f32.gmra.mxu0 %v389
      %v472 = vpop.f32.mrf.mxu0
      %v473 = vadd.f32 %v281, %v472
      %v474 = vpop.f32.mrf.mxu0
      %v475 = vadd.f32 %v283, %v474
      %476 = vmatprep.mubr.f32.mxu0 0.0
      %477 = vmatmul.mubr.f32.gmra.mxu0 %v392
      %v478 = vpop.f32.mrf.mxu0
      %v479 = vadd.f32 %v287, %v478
      %v480 = vpop.f32.mrf.mxu0
      %v481 = vadd.f32 %v289, %v480
      %482 = vmatprep.mubr.f32.mxu0 0.0
      %483 = vmatmul.mubr.f32.gmra.mxu0 %v395
      %v484 = vpop.f32.mrf.mxu0
      %v485 = vadd.f32 %v293, %v484
      %v486 = vpop.f32.mrf.mxu0
      %v487 = vadd.f32 %v295, %v486
      %488 = vmatprep.mubr.f32.mxu0 0.0
      %489 = vmatmul.mubr.f32.gmra.mxu0 %v398
      %v490 = vpop.f32.mrf.mxu0
      %v491 = vadd.f32 %v299, %v490
      %v492 = vpop.f32.mrf.mxu0
      %v493 = vadd.f32 %v301, %v492
      %494 = vdwg.mxu0
      %495 = vmatprep.subr.mxu0 0.0
      %496 = vmatpush1.msra.mxu0 0.0
      %497 = vmatprep.subr.mxu0 0.0
      %498 = vmatpush1.msra.mxu0 0.0
      %499 = vmatprep.subr.mxu0 0.0
      %500 = vmatpush1.msra.mxu0 0.0
      %501 = vmatprep.subr.mxu0 0.0
      %502 = vmatpush1.msra.mxu0 0.0
      %503 = vmatprep.subr.mxu0 0.0
      %504 = vmatpush1.msra.mxu0 0.0
      %505 = vmatprep.subr.mxu0 0.0
      %506 = vmatpush1.msra.mxu0 0.0
      %507 = vmatprep.subr.mxu0 0.0
      %508 = vmatpush1.msra.mxu0 0.0
      %509 = vmatprep.subr.mxu0 0.0
      %510 = vmatpush1.msra.mxu0 0.0
      %511 = vmatprep.subr.mxu0 0.0
      %512 = vmatpush1.msra.mxu0 0.0
      %513 = vmatprep.subr.mxu0 0.0
      %514 = vmatpush1.msra.mxu0 0.0
      %515 = vmatprep.subr.mxu0 0.0
      %516 = vmatpush1.msra.mxu0 0.0
      %517 = vmatprep.subr.mxu0 0.0
      %518 = vmatpush1.msra.mxu0 0.0
      %519 = vmatprep.subr.mxu0 0.0
      %520 = vmatpush1.msra.mxu0 0.0
      %521 = vmatprep.subr.mxu0 0.0
      %522 = vmatpush1.msra.mxu0 0.0
      %523 = vmatprep.subr.mxu0 0.0
      %524 = vmatpush1.msra.mxu0 0.0
      %525 = vmatprep.subr.mxu0 0.0
      %526 = vmatpush1.msra.mxu0 %v404
      %527 = vmatprep.subr.mxu0 0.0
      %528 = vmatpush2.msra.mxu0 0.0
      %529 = vmatprep.subr.mxu0 0.0
      %530 = vmatpush2.msra.mxu0 0.0
      %531 = vmatprep.subr.mxu0 0.0
      %532 = vmatpush2.msra.mxu0 0.0
      %533 = vmatprep.subr.mxu0 0.0
      %534 = vmatpush2.msra.mxu0 0.0
      %535 = vmatprep.subr.mxu0 0.0
      %536 = vmatpush2.msra.mxu0 0.0
      %537 = vmatprep.subr.mxu0 0.0
      %538 = vmatpush2.msra.mxu0 0.0
      %539 = vmatprep.subr.mxu0 0.0
      %540 = vmatpush2.msra.mxu0 0.0
      %541 = vmatprep.subr.mxu0 0.0
      %542 = vmatpush2.msra.mxu0 0.0
      %543 = vmatprep.subr.mxu0 0.0
      %544 = vmatpush2.msra.mxu0 0.0
      %545 = vmatprep.subr.mxu0 0.0
      %546 = vmatpush2.msra.mxu0 0.0
      %547 = vmatprep.subr.mxu0 0.0
      %548 = vmatpush2.msra.mxu0 0.0
      %549 = vmatprep.subr.mxu0 0.0
      %550 = vmatpush2.msra.mxu0 0.0
      %551 = vmatprep.subr.mxu0 0.0
      %552 = vmatpush2.msra.mxu0 0.0
      %553 = vmatprep.subr.mxu0 0.0
      %554 = vmatpush2.msra.mxu0 0.0
      %555 = vmatprep.subr.mxu0 0.0
      %556 = vmatpush2.msra.mxu0 0.0
      %557 = vmatprep.subr.mxu0 0.0
      %558 = vmatpush2.msra.mxu0 0.0
      %559 = vmatprep.mubr.f32.mxu0 0.0
      %560 = vmatmul.mubr.f32.gmra.mxu0 %v389
      %v561 = vpop.f32.mrf.mxu0
      %v562 = vadd.f32 %v370, %v561
      %v563 = vpop.f32.mrf.mxu0
      %564 = vmatprep.mubr.f32.mxu0 0.0
      %565 = vmatmul.mubr.f32.gmra.mxu0 %v392
      %v566 = vpop.f32.mrf.mxu0
      %v567 = vadd.f32 %v375, %v566
      %v568 = vpop.f32.mrf.mxu0
      %569 = vmatprep.mubr.f32.mxu0 0.0
      %570 = vmatmul.mubr.f32.gmra.mxu0 %v395
      %v571 = vpop.f32.mrf.mxu0
      %v572 = vadd.f32 %v380, %v571
      %v573 = vpop.f32.mrf.mxu0
      %574 = vmatprep.mubr.f32.mxu0 0.0
      %575 = vmatmul.mubr.f32.gmra.mxu0 %v398
      %v576 = vpop.f32.mrf.mxu0
      %v577 = vadd.f32 %v385, %v576
      %v578 = vpop.f32.mrf.mxu0
      %579 = vdwg.mxu0
      %v580 = vld [vmem:[%s165] sm:$0xff]
      %v581 = vld [vmem:[%s165 + $0x8] sm:$0xf]
      %s582 = scalar_lea.vmem %s1, 64
      %v583 = vld [vmem:[%s582] sm:$0xff]
      %v584 = vld [vmem:[%s582 + $0x8] sm:$0xff]
      %v585 = vld [vmem:[%s582 + $0x10] sm:$0xff]
      %v586 = vld [vmem:[%s582 + $0x18] sm:$0xff]
      %v589 = vcombine.high %v580, %v580
      %590 = vrot.lane.b32.xlu0 %v580, 126
      %v591 = vpop.permute.xlu0 %590
      %592 = vrot.lane.b32.xlu0 %v589, 126
      %v593 = vpop.permute.xlu0 %592
      %594 = vrot.lane.b32.xlu0 %v581, 126
      %v595 = vpop.permute.xlu0 %594
      %vm596 = vcmask 1031168
      %v597 = vsel %vm596, %v591, %v593
      %v598 = vsel %vm596, %v593, %v595
      %v600 = vsel %vm194, %v583, 0
      %v603 = vsel %vm194, %v584, 0
      %v606 = vsel %vm194, %v585, 0
      %v609 = vsel %vm194, %v586, 0
      %v611 = vsel %vm207, %v597, 0
      %v613 = vsel %vm207, %v598, 0
      %v615 = vsel %vm207, %v595, 0
      %617 = vmatprep.subr.mxu0 0.0
      %618 = vmatpush1.msra.mxu0 0.0
      %619 = vmatprep.subr.mxu0 0.0
      %620 = vmatpush1.msra.mxu0 0.0
      %621 = vmatprep.subr.mxu0 0.0
      %622 = vmatpush1.msra.mxu0 0.0
      %623 = vmatprep.subr.mxu0 0.0
      %624 = vmatpush1.msra.mxu0 0.0
      %625 = vmatprep.subr.mxu0 0.0
      %626 = vmatpush1.msra.mxu0 0.0
      %627 = vmatprep.subr.mxu0 0.0
      %628 = vmatpush1.msra.mxu0 0.0
      %629 = vmatprep.subr.mxu0 0.0
      %630 = vmatpush1.msra.mxu0 0.0
      %631 = vmatprep.subr.mxu0 0.0
      %632 = vmatpush1.msra.mxu0 0.0
      %633 = vmatprep.subr.mxu0 0.0
      %634 = vmatpush1.msra.mxu0 0.0
      %635 = vmatprep.subr.mxu0 0.0
      %636 = vmatpush1.msra.mxu0 0.0
      %637 = vmatprep.subr.mxu0 0.0
      %638 = vmatpush1.msra.mxu0 0.0
      %639 = vmatprep.subr.mxu0 0.0
      %640 = vmatpush1.msra.mxu0 0.0
      %641 = vmatprep.subr.mxu0 0.0
      %642 = vmatpush1.msra.mxu0 0.0
      %643 = vmatprep.subr.mxu0 0.0
      %644 = vmatpush1.msra.mxu0 0.0
      %645 = vmatprep.subr.mxu0 0.0
      %646 = vmatpush1.msra.mxu0 0.0
      %647 = vmatprep.subr.mxu0 %v613
      %648 = vmatpush1.msra.mxu0 %v611
      %649 = vmatprep.subr.mxu0 0.0
      %650 = vmatpush2.msra.mxu0 0.0
      %651 = vmatprep.subr.mxu0 0.0
      %652 = vmatpush2.msra.mxu0 0.0
      %653 = vmatprep.subr.mxu0 0.0
      %654 = vmatpush2.msra.mxu0 0.0
      %655 = vmatprep.subr.mxu0 0.0
      %656 = vmatpush2.msra.mxu0 0.0
      %657 = vmatprep.subr.mxu0 0.0
      %658 = vmatpush2.msra.mxu0 0.0
      %659 = vmatprep.subr.mxu0 0.0
      %660 = vmatpush2.msra.mxu0 0.0
      %661 = vmatprep.subr.mxu0 0.0
      %662 = vmatpush2.msra.mxu0 0.0
      %663 = vmatprep.subr.mxu0 0.0
      %664 = vmatpush2.msra.mxu0 0.0
      %665 = vmatprep.subr.mxu0 0.0
      %666 = vmatpush2.msra.mxu0 0.0
      %667 = vmatprep.subr.mxu0 0.0
      %668 = vmatpush2.msra.mxu0 0.0
      %669 = vmatprep.subr.mxu0 0.0
      %670 = vmatpush2.msra.mxu0 0.0
      %671 = vmatprep.subr.mxu0 0.0
      %672 = vmatpush2.msra.mxu0 0.0
      %673 = vmatprep.subr.mxu0 0.0
      %674 = vmatpush2.msra.mxu0 0.0
      %675 = vmatprep.subr.mxu0 0.0
      %676 = vmatpush2.msra.mxu0 0.0
      %677 = vmatprep.subr.mxu0 0.0
      %678 = vmatpush2.msra.mxu0 0.0
      %679 = vmatprep.subr.mxu0 0.0
      %680 = vmatpush2.msra.mxu0 0.0
      %681 = vmatprep.mubr.f32.mxu0 0.0
      %682 = vmatmul.mubr.f32.gmra.mxu0 %v600
      %v683 = vpop.f32.mrf.mxu0
      %v684 = vadd.f32 0.0, %v683
      %v685 = vpop.f32.mrf.mxu0
      %v686 = vadd.f32 0.0, %v685
      %687 = vmatprep.mubr.f32.mxu0 0.0
      %688 = vmatmul.mubr.f32.gmra.mxu0 %v603
      %v689 = vpop.f32.mrf.mxu0
      %v690 = vadd.f32 0.0, %v689
      %v691 = vpop.f32.mrf.mxu0
      %v692 = vadd.f32 0.0, %v691
      %693 = vmatprep.mubr.f32.mxu0 0.0
      %694 = vmatmul.mubr.f32.gmra.mxu0 %v606
      %v695 = vpop.f32.mrf.mxu0
      %v696 = vadd.f32 0.0, %v695
      %v697 = vpop.f32.mrf.mxu0
      %v698 = vadd.f32 0.0, %v697
      %699 = vmatprep.mubr.f32.mxu0 0.0
      %700 = vmatmul.mubr.f32.gmra.mxu0 %v609
      %v701 = vpop.f32.mrf.mxu0
      %v702 = vadd.f32 0.0, %v701
      %v703 = vpop.f32.mrf.mxu0
      %v704 = vadd.f32 0.0, %v703
      %705 = vdwg.mxu0
      %706 = vmatprep.subr.mxu0 0.0
      %707 = vmatpush1.msra.mxu0 0.0
      %708 = vmatprep.subr.mxu0 0.0
      %709 = vmatpush1.msra.mxu0 0.0
      %710 = vmatprep.subr.mxu0 0.0
      %711 = vmatpush1.msra.mxu0 0.0
      %712 = vmatprep.subr.mxu0 0.0
      %713 = vmatpush1.msra.mxu0 0.0
      %714 = vmatprep.subr.mxu0 0.0
      %715 = vmatpush1.msra.mxu0 0.0
      %716 = vmatprep.subr.mxu0 0.0
      %717 = vmatpush1.msra.mxu0 0.0
      %718 = vmatprep.subr.mxu0 0.0
      %719 = vmatpush1.msra.mxu0 0.0
      %720 = vmatprep.subr.mxu0 0.0
      %721 = vmatpush1.msra.mxu0 0.0
      %722 = vmatprep.subr.mxu0 0.0
      %723 = vmatpush1.msra.mxu0 0.0
      %724 = vmatprep.subr.mxu0 0.0
      %725 = vmatpush1.msra.mxu0 0.0
      %726 = vmatprep.subr.mxu0 0.0
      %727 = vmatpush1.msra.mxu0 0.0
      %728 = vmatprep.subr.mxu0 0.0
      %729 = vmatpush1.msra.mxu0 0.0
      %730 = vmatprep.subr.mxu0 0.0
      %731 = vmatpush1.msra.mxu0 0.0
      %732 = vmatprep.subr.mxu0 0.0
      %733 = vmatpush1.msra.mxu0 0.0
      %734 = vmatprep.subr.mxu0 0.0
      %735 = vmatpush1.msra.mxu0 0.0
      %736 = vmatprep.subr.mxu0 0.0
      %737 = vmatpush1.msra.mxu0 %v615
      %738 = vmatprep.subr.mxu0 0.0
      %739 = vmatpush2.msra.mxu0 0.0
      %740 = vmatprep.subr.mxu0 0.0
      %741 = vmatpush2.msra.mxu0 0.0
      %742 = vmatprep.subr.mxu0 0.0
      %743 = vmatpush2.msra.mxu0 0.0
      %744 = vmatprep.subr.mxu0 0.0
      %745 = vmatpush2.msra.mxu0 0.0
      %746 = vmatprep.subr.mxu0 0.0
      %747 = vmatpush2.msra.mxu0 0.0
      %748 = vmatprep.subr.mxu0 0.0
      %749 = vmatpush2.msra.mxu0 0.0
      %750 = vmatprep.subr.mxu0 0.0
      %751 = vmatpush2.msra.mxu0 0.0
      %752 = vmatprep.subr.mxu0 0.0
      %753 = vmatpush2.msra.mxu0 0.0
      %754 = vmatprep.subr.mxu0 0.0
      %755 = vmatpush2.msra.mxu0 0.0
      %756 = vmatprep.subr.mxu0 0.0
      %757 = vmatpush2.msra.mxu0 0.0
      %758 = vmatprep.subr.mxu0 0.0
      %759 = vmatpush2.msra.mxu0 0.0
      %760 = vmatprep.subr.mxu0 0.0
      %761 = vmatpush2.msra.mxu0 0.0
      %762 = vmatprep.subr.mxu0 0.0
      %763 = vmatpush2.msra.mxu0 0.0
      %764 = vmatprep.subr.mxu0 0.0
      %765 = vmatpush2.msra.mxu0 0.0
      %766 = vmatprep.subr.mxu0 0.0
      %767 = vmatpush2.msra.mxu0 0.0
      %768 = vmatprep.subr.mxu0 0.0
      %769 = vmatpush2.msra.mxu0 0.0
      %770 = vmatprep.mubr.f32.mxu0 0.0
      %771 = vmatmul.mubr.f32.gmra.mxu0 %v600
      %v772 = vpop.f32.mrf.mxu0
      %v773 = vadd.f32 0.0, %v772
      %v774 = vpop.f32.mrf.mxu0
      %775 = vmatprep.mubr.f32.mxu0 0.0
      %776 = vmatmul.mubr.f32.gmra.mxu0 %v603
      %v777 = vpop.f32.mrf.mxu0
      %v778 = vadd.f32 0.0, %v777
      %v779 = vpop.f32.mrf.mxu0
      %780 = vmatprep.mubr.f32.mxu0 0.0
      %781 = vmatmul.mubr.f32.gmra.mxu0 %v606
      %v782 = vpop.f32.mrf.mxu0
      %v783 = vadd.f32 0.0, %v782
      %v784 = vpop.f32.mrf.mxu0
      %785 = vmatprep.mubr.f32.mxu0 0.0
      %786 = vmatmul.mubr.f32.gmra.mxu0 %v609
      %v787 = vpop.f32.mrf.mxu0
      %v788 = vadd.f32 0.0, %v787
      %v789 = vpop.f32.mrf.mxu0
      %790 = vdwg.mxu0
      %v791 = vadd.f32 %v473, %v684
      %v792 = vadd.f32 %v475, %v686
      %v793 = vadd.f32 %v562, %v773
      %v794 = vadd.f32 %v479, %v690
      %v795 = vadd.f32 %v481, %v692
      %v796 = vadd.f32 %v567, %v778
      %v797 = vadd.f32 %v485, %v696
      %v798 = vadd.f32 %v487, %v698
      %v799 = vadd.f32 %v572, %v783
      %v800 = vadd.f32 %v491, %v702
      %v801 = vadd.f32 %v493, %v704
      %v802 = vadd.f32 %v577, %v788
      %v803 = vld [vmem:[%s165] sm:$0xff]
      %v804 = vld [vmem:[%s165 + $0x8] sm:$0xf]
      %s805 = scalar_lea.vmem %s1, 96
      %v806 = vld [vmem:[%s805] sm:$0xff]
      %v807 = vld [vmem:[%s805 + $0x8] sm:$0xff]
      %v808 = vld [vmem:[%s805 + $0x10] sm:$0xff]
      %v809 = vld [vmem:[%s805 + $0x18] sm:$0xff]
      %v812 = vcombine.high %v803, %v803
      %813 = vrot.lane.b32.xlu0 %v803, 110
      %v814 = vpop.permute.xlu0 %813
      %815 = vrot.lane.b32.xlu0 %v812, 110
      %v816 = vpop.permute.xlu0 %815
      %817 = vrot.lane.b32.xlu0 %v804, 110
      %v818 = vpop.permute.xlu0 %817
      %vm819 = vcmask 900096
      %v820 = vsel %vm819, %v814, %v816
      %v821 = vsel %vm819, %v816, %v818
      %v823 = vsel %vm194, %v806, 0
      %v826 = vsel %vm194, %v807, 0
      %v829 = vsel %vm194, %v808, 0
      %v832 = vsel %vm194, %v809, 0
      %v834 = vsel %vm207, %v820, 0
      %v836 = vsel %vm207, %v821, 0
      %v838 = vsel %vm207, %v818, 0
      %840 = vmatprep.subr.mxu0 0.0
      %841 = vmatpush1.msra.mxu0 0.0
      %842 = vmatprep.subr.mxu0 0.0
      %843 = vmatpush1.msra.mxu0 0.0
      %844 = vmatprep.subr.mxu0 0.0
      %845 = vmatpush1.msra.mxu0 0.0
      %846 = vmatprep.subr.mxu0 0.0
      %847 = vmatpush1.msra.mxu0 0.0
      %848 = vmatprep.subr.mxu0 0.0
      %849 = vmatpush1.msra.mxu0 0.0
      %850 = vmatprep.subr.mxu0 0.0
      %851 = vmatpush1.msra.mxu0 0.0
      %852 = vmatprep.subr.mxu0 0.0
      %853 = vmatpush1.msra.mxu0 0.0
      %854 = vmatprep.subr.mxu0 0.0
      %855 = vmatpush1.msra.mxu0 0.0
      %856 = vmatprep.subr.mxu0 0.0
      %857 = vmatpush1.msra.mxu0 0.0
      %858 = vmatprep.subr.mxu0 0.0
      %859 = vmatpush1.msra.mxu0 0.0
      %860 = vmatprep.subr.mxu0 0.0
      %861 = vmatpush1.msra.mxu0 0.0
      %862 = vmatprep.subr.mxu0 0.0
      %863 = vmatpush1.msra.mxu0 0.0
      %864 = vmatprep.subr.mxu0 0.0
      %865 = vmatpush1.msra.mxu0 0.0
      %866 = vmatprep.subr.mxu0 0.0
      %867 = vmatpush1.msra.mxu0 0.0
      %868 = vmatprep.subr.mxu0 0.0
      %869 = vmatpush1.msra.mxu0 0.0
      %870 = vmatprep.subr.mxu0 %v836
      %871 = vmatpush1.msra.mxu0 %v834
      %872 = vmatprep.subr.mxu0 0.0
      %873 = vmatpush2.msra.mxu0 0.0
      %874 = vmatprep.subr.mxu0 0.0
      %875 = vmatpush2.msra.mxu0 0.0
      %876 = vmatprep.subr.mxu0 0.0
      %877 = vmatpush2.msra.mxu0 0.0
      %878 = vmatprep.subr.mxu0 0.0
      %879 = vmatpush2.msra.mxu0 0.0
      %880 = vmatprep.subr.mxu0 0.0
      %881 = vmatpush2.msra.mxu0 0.0
      %882 = vmatprep.subr.mxu0 0.0
      %883 = vmatpush2.msra.mxu0 0.0
      %884 = vmatprep.subr.mxu0 0.0
      %885 = vmatpush2.msra.mxu0 0.0
      %886 = vmatprep.subr.mxu0 0.0
      %887 = vmatpush2.msra.mxu0 0.0
      %888 = vmatprep.subr.mxu0 0.0
      %889 = vmatpush2.msra.mxu0 0.0
      %890 = vmatprep.subr.mxu0 0.0
      %891 = vmatpush2.msra.mxu0 0.0
      %892 = vmatprep.subr.mxu0 0.0
      %893 = vmatpush2.msra.mxu0 0.0
      %894 = vmatprep.subr.mxu0 0.0
      %895 = vmatpush2.msra.mxu0 0.0
      %896 = vmatprep.subr.mxu0 0.0
      %897 = vmatpush2.msra.mxu0 0.0
      %898 = vmatprep.subr.mxu0 0.0
      %899 = vmatpush2.msra.mxu0 0.0
      %900 = vmatprep.subr.mxu0 0.0
      %901 = vmatpush2.msra.mxu0 0.0
      %902 = vmatprep.subr.mxu0 0.0
      %903 = vmatpush2.msra.mxu0 0.0
      %904 = vmatprep.mubr.f32.mxu0 0.0
      %905 = vmatmul.mubr.f32.gmra.mxu0 %v823
      %v906 = vpop.f32.mrf.mxu0
      %v907 = vadd.f32 0.0, %v906
      %v908 = vpop.f32.mrf.mxu0
      %v909 = vadd.f32 0.0, %v908
      %910 = vmatprep.mubr.f32.mxu0 0.0
      %911 = vmatmul.mubr.f32.gmra.mxu0 %v826
      %v912 = vpop.f32.mrf.mxu0
      %v913 = vadd.f32 0.0, %v912
      %v914 = vpop.f32.mrf.mxu0
      %v915 = vadd.f32 0.0, %v914
      %916 = vmatprep.mubr.f32.mxu0 0.0
      %917 = vmatmul.mubr.f32.gmra.mxu0 %v829
      %v918 = vpop.f32.mrf.mxu0
      %v919 = vadd.f32 0.0, %v918
      %v920 = vpop.f32.mrf.mxu0
      %v921 = vadd.f32 0.0, %v920
      %922 = vmatprep.mubr.f32.mxu0 0.0
      %923 = vmatmul.mubr.f32.gmra.mxu0 %v832
      %v924 = vpop.f32.mrf.mxu0
      %v925 = vadd.f32 0.0, %v924
      %v926 = vpop.f32.mrf.mxu0
      %v927 = vadd.f32 0.0, %v926
      %928 = vdwg.mxu0
      %929 = vmatprep.subr.mxu0 0.0
      %930 = vmatpush1.msra.mxu0 0.0
      %931 = vmatprep.subr.mxu0 0.0
      %932 = vmatpush1.msra.mxu0 0.0
      %933 = vmatprep.subr.mxu0 0.0
      %934 = vmatpush1.msra.mxu0 0.0
      %935 = vmatprep.subr.mxu0 0.0
      %936 = vmatpush1.msra.mxu0 0.0
      %937 = vmatprep.subr.mxu0 0.0
      %938 = vmatpush1.msra.mxu0 0.0
      %939 = vmatprep.subr.mxu0 0.0
      %940 = vmatpush1.msra.mxu0 0.0
      %941 = vmatprep.subr.mxu0 0.0
      %942 = vmatpush1.msra.mxu0 0.0
      %943 = vmatprep.subr.mxu0 0.0
      %944 = vmatpush1.msra.mxu0 0.0
      %945 = vmatprep.subr.mxu0 0.0
      %946 = vmatpush1.msra.mxu0 0.0
      %947 = vmatprep.subr.mxu0 0.0
      %948 = vmatpush1.msra.mxu0 0.0
      %949 = vmatprep.subr.mxu0 0.0
      %950 = vmatpush1.msra.mxu0 0.0
      %951 = vmatprep.subr.mxu0 0.0
      %952 = vmatpush1.msra.mxu0 0.0
      %953 = vmatprep.subr.mxu0 0.0
      %954 = vmatpush1.msra.mxu0 0.0
      %955 = vmatprep.subr.mxu0 0.0
      %956 = vmatpush1.msra.mxu0 0.0
      %957 = vmatprep.subr.mxu0 0.0
      %958 = vmatpush1.msra.mxu0 0.0
      %959 = vmatprep.subr.mxu0 0.0
      %960 = vmatpush1.msra.mxu0 %v838
      %961 = vmatprep.subr.mxu0 0.0
      %962 = vmatpush2.msra.mxu0 0.0
      %963 = vmatprep.subr.mxu0 0.0
      %964 = vmatpush2.msra.mxu0 0.0
      %965 = vmatprep.subr.mxu0 0.0
      %966 = vmatpush2.msra.mxu0 0.0
      %967 = vmatprep.subr.mxu0 0.0
      %968 = vmatpush2.msra.mxu0 0.0
      %969 = vmatprep.subr.mxu0 0.0
      %970 = vmatpush2.msra.mxu0 0.0
      %971 = vmatprep.subr.mxu0 0.0
      %972 = vmatpush2.msra.mxu0 0.0
      %973 = vmatprep.subr.mxu0 0.0
      %974 = vmatpush2.msra.mxu0 0.0
      %975 = vmatprep.subr.mxu0 0.0
      %976 = vmatpush2.msra.mxu0 0.0
      %977 = vmatprep.subr.mxu0 0.0
      %978 = vmatpush2.msra.mxu0 0.0
      %979 = vmatprep.subr.mxu0 0.0
      %980 = vmatpush2.msra.mxu0 0.0
      %981 = vmatprep.subr.mxu0 0.0
      %982 = vmatpush2.msra.mxu0 0.0
      %983 = vmatprep.subr.mxu0 0.0
      %984 = vmatpush2.msra.mxu0 0.0
      %985 = vmatprep.subr.mxu0 0.0
      %986 = vmatpush2.msra.mxu0 0.0
      %987 = vmatprep.subr.mxu0 0.0
      %988 = vmatpush2.msra.mxu0 0.0
      %989 = vmatprep.subr.mxu0 0.0
      %990 = vmatpush2.msra.mxu0 0.0
      %991 = vmatprep.subr.mxu0 0.0
      %992 = vmatpush2.msra.mxu0 0.0
      %993 = vmatprep.mubr.f32.mxu0 0.0
      %994 = vmatmul.mubr.f32.gmra.mxu0 %v823
      %v995 = vpop.f32.mrf.mxu0
      %v996 = vadd.f32 0.0, %v995
      %v997 = vpop.f32.mrf.mxu0
      %998 = vmatprep.mubr.f32.mxu0 0.0
      %999 = vmatmul.mubr.f32.gmra.mxu0 %v826
      %v1000 = vpop.f32.mrf.mxu0
      %v1001 = vadd.f32 0.0, %v1000
      %v1002 = vpop.f32.mrf.mxu0
      %1003 = vmatprep.mubr.f32.mxu0 0.0
      %1004 = vmatmul.mubr.f32.gmra.mxu0 %v829
      %v1005 = vpop.f32.mrf.mxu0
      %v1006 = vadd.f32 0.0, %v1005
      %v1007 = vpop.f32.mrf.mxu0
      %1008 = vmatprep.mubr.f32.mxu0 0.0
      %1009 = vmatmul.mubr.f32.gmra.mxu0 %v832
      %v1010 = vpop.f32.mrf.mxu0
      %v1011 = vadd.f32 0.0, %v1010
      %v1012 = vpop.f32.mrf.mxu0
      %1013 = vdwg.mxu0
      %v1014 = vadd.f32 %v791, %v907
      %v1015 = vadd.f32 %v792, %v909
      %v1016 = vadd.f32 %v793, %v996
      %v1017 = vadd.f32 %v794, %v913
      %v1018 = vadd.f32 %v795, %v915
      %v1019 = vadd.f32 %v796, %v1001
      %v1020 = vadd.f32 %v797, %v919
      %v1021 = vadd.f32 %v798, %v921
      %v1022 = vadd.f32 %v799, %v1006
      %v1023 = vadd.f32 %v800, %v925
      %v1024 = vadd.f32 %v801, %v927
      %v1025 = vadd.f32 %v802, %v1011
      %v1026 = vld [vmem:[%s165] sm:$0xff]
      %v1027 = vld [vmem:[%s165 + $0x8] sm:$0xf]
      %s1028 = scalar_lea.vmem %s1, 128
      %v1029 = vld [vmem:[%s1028] sm:$0xff]
      %v1030 = vld [vmem:[%s1028 + $0x8] sm:$0xff]
      %v1031 = vld [vmem:[%s1028 + $0x10] sm:$0xff]
      %v1032 = vld [vmem:[%s1028 + $0x18] sm:$0xff]
      %v1035 = vcombine.high %v1026, %v1026
      %1036 = vrot.lane.b32.xlu0 %v1026, 109
      %v1037 = vpop.permute.xlu0 %1036
      %1038 = vrot.lane.b32.xlu0 %v1035, 109
      %v1039 = vpop.permute.xlu0 %1038
      %1040 = vrot.lane.b32.xlu0 %v1027, 109
      %v1041 = vpop.permute.xlu0 %1040
      %vm1042 = vcmask 891904
      %v1043 = vsel %vm1042, %v1037, %v1039
      %v1044 = vsel %vm1042, %v1039, %v1041
      %v1046 = vsel %vm194, %v1029, 0
      %v1049 = vsel %vm194, %v1030, 0
      %v1052 = vsel %vm194, %v1031, 0
      %v1055 = vsel %vm194, %v1032, 0
      %v1057 = vsel %vm207, %v1043, 0
      %v1059 = vsel %vm207, %v1044, 0
      %v1061 = vsel %vm207, %v1041, 0
      %1063 = vmatprep.subr.mxu0 0.0
      %1064 = vmatpush1.msra.mxu0 0.0
      %1065 = vmatprep.subr.mxu0 0.0
      %1066 = vmatpush1.msra.mxu0 0.0
      %1067 = vmatprep.subr.mxu0 0.0
      %1068 = vmatpush1.msra.mxu0 0.0
      %1069 = vmatprep.subr.mxu0 0.0
      %1070 = vmatpush1.msra.mxu0 0.0
      %1071 = vmatprep.subr.mxu0 0.0
      %1072 = vmatpush1.msra.mxu0 0.0
      %1073 = vmatprep.subr.mxu0 0.0
      %1074 = vmatpush1.msra.mxu0 0.0
      %1075 = vmatprep.subr.mxu0 0.0
      %1076 = vmatpush1.msra.mxu0 0.0
      %1077 = vmatprep.subr.mxu0 0.0
      %1078 = vmatpush1.msra.mxu0 0.0
      %1079 = vmatprep.subr.mxu0 0.0
      %1080 = vmatpush1.msra.mxu0 0.0
      %1081 = vmatprep.subr.mxu0 0.0
      %1082 = vmatpush1.msra.mxu0 0.0
      %1083 = vmatprep.subr.mxu0 0.0
      %1084 = vmatpush1.msra.mxu0 0.0
      %1085 = vmatprep.subr.mxu0 0.0
      %1086 = vmatpush1.msra.mxu0 0.0
      %1087 = vmatprep.subr.mxu0 0.0
      %1088 = vmatpush1.msra.mxu0 0.0
      %1089 = vmatprep.subr.mxu0 0.0
      %1090 = vmatpush1.msra.mxu0 0.0
      %1091 = vmatprep.subr.mxu0 0.0
      %1092 = vmatpush1.msra.mxu0 0.0
      %1093 = vmatprep.subr.mxu0 %v1059
      %1094 = vmatpush1.msra.mxu0 %v1057
      %1095 = vmatprep.subr.mxu0 0.0
      %1096 = vmatpush2.msra.mxu0 0.0
      %1097 = vmatprep.subr.mxu0 0.0
      %1098 = vmatpush2.msra.mxu0 0.0
      %1099 = vmatprep.subr.mxu0 0.0
      %1100 = vmatpush2.msra.mxu0 0.0
      %1101 = vmatprep.subr.mxu0 0.0
      %1102 = vmatpush2.msra.mxu0 0.0
      %1103 = vmatprep.subr.mxu0 0.0
      %1104 = vmatpush2.msra.mxu0 0.0
      %1105 = vmatprep.subr.mxu0 0.0
      %1106 = vmatpush2.msra.mxu0 0.0
      %1107 = vmatprep.subr.mxu0 0.0
      %1108 = vmatpush2.msra.mxu0 0.0
      %1109 = vmatprep.subr.mxu0 0.0
      %1110 = vmatpush2.msra.mxu0 0.0
      %1111 = vmatprep.subr.mxu0 0.0
      %1112 = vmatpush2.msra.mxu0 0.0
      %1113 = vmatprep.subr.mxu0 0.0
      %1114 = vmatpush2.msra.mxu0 0.0
      %1115 = vmatprep.subr.mxu0 0.0
      %1116 = vmatpush2.msra.mxu0 0.0
      %1117 = vmatprep.subr.mxu0 0.0
      %1118 = vmatpush2.msra.mxu0 0.0
      %1119 = vmatprep.subr.mxu0 0.0
      %1120 = vmatpush2.msra.mxu0 0.0
      %1121 = vmatprep.subr.mxu0 0.0
      %1122 = vmatpush2.msra.mxu0 0.0
      %1123 = vmatprep.subr.mxu0 0.0
      %1124 = vmatpush2.msra.mxu0 0.0
      %1125 = vmatprep.subr.mxu0 0.0
      %1126 = vmatpush2.msra.mxu0 0.0
      %1127 = vmatprep.mubr.f32.mxu0 0.0
      %1128 = vmatmul.mubr.f32.gmra.mxu0 %v1046
      %v1129 = vpop.f32.mrf.mxu0
      %v1130 = vadd.f32 0.0, %v1129
      %v1131 = vpop.f32.mrf.mxu0
      %v1132 = vadd.f32 0.0, %v1131
      %1133 = vmatprep.mubr.f32.mxu0 0.0
      %1134 = vmatmul.mubr.f32.gmra.mxu0 %v1049
      %v1135 = vpop.f32.mrf.mxu0
      %v1136 = vadd.f32 0.0, %v1135
      %v1137 = vpop.f32.mrf.mxu0
      %v1138 = vadd.f32 0.0, %v1137
      %1139 = vmatprep.mubr.f32.mxu0 0.0
      %1140 = vmatmul.mubr.f32.gmra.mxu0 %v1052
      %v1141 = vpop.f32.mrf.mxu0
      %v1142 = vadd.f32 0.0, %v1141
      %v1143 = vpop.f32.mrf.mxu0
      %v1144 = vadd.f32 0.0, %v1143
      %1145 = vmatprep.mubr.f32.mxu0 0.0
      %1146 = vmatmul.mubr.f32.gmra.mxu0 %v1055
      %v1147 = vpop.f32.mrf.mxu0
      %v1148 = vadd.f32 0.0, %v1147
      %v1149 = vpop.f32.mrf.mxu0
      %v1150 = vadd.f32 0.0, %v1149
      %1151 = vdwg.mxu0
      %1152 = vmatprep.subr.mxu0 0.0
      %1153 = vmatpush1.msra.mxu0 0.0
      %1154 = vmatprep.subr.mxu0 0.0
      %1155 = vmatpush1.msra.mxu0 0.0
      %1156 = vmatprep.subr.mxu0 0.0
      %1157 = vmatpush1.msra.mxu0 0.0
      %1158 = vmatprep.subr.mxu0 0.0
      %1159 = vmatpush1.msra.mxu0 0.0
      %1160 = vmatprep.subr.mxu0 0.0
      %1161 = vmatpush1.msra.mxu0 0.0
      %1162 = vmatprep.subr.mxu0 0.0
      %1163 = vmatpush1.msra.mxu0 0.0
      %1164 = vmatprep.subr.mxu0 0.0
      %1165 = vmatpush1.msra.mxu0 0.0
      %1166 = vmatprep.subr.mxu0 0.0
      %1167 = vmatpush1.msra.mxu0 0.0
      %1168 = vmatprep.subr.mxu0 0.0
      %1169 = vmatpush1.msra.mxu0 0.0
      %1170 = vmatprep.subr.mxu0 0.0
      %1171 = vmatpush1.msra.mxu0 0.0
      %1172 = vmatprep.subr.mxu0 0.0
      %1173 = vmatpush1.msra.mxu0 0.0
      %1174 = vmatprep.subr.mxu0 0.0
      %1175 = vmatpush1.msra.mxu0 0.0
      %1176 = vmatprep.subr.mxu0 0.0
      %1177 = vmatpush1.msra.mxu0 0.0
      %1178 = vmatprep.subr.mxu0 0.0
      %1179 = vmatpush1.msra.mxu0 0.0
      %1180 = vmatprep.subr.mxu0 0.0
      %1181 = vmatpush1.msra.mxu0 0.0
      %1182 = vmatprep.subr.mxu0 0.0
      %1183 = vmatpush1.msra.mxu0 %v1061
      %1184 = vmatprep.subr.mxu0 0.0
      %1185 = vmatpush2.msra.mxu0 0.0
      %1186 = vmatprep.subr.mxu0 0.0
      %1187 = vmatpush2.msra.mxu0 0.0
      %1188 = vmatprep.subr.mxu0 0.0
      %1189 = vmatpush2.msra.mxu0 0.0
      %1190 = vmatprep.subr.mxu0 0.0
      %1191 = vmatpush2.msra.mxu0 0.0
      %1192 = vmatprep.subr.mxu0 0.0
      %1193 = vmatpush2.msra.mxu0 0.0
      %1194 = vmatprep.subr.mxu0 0.0
      %1195 = vmatpush2.msra.mxu0 0.0
      %1196 = vmatprep.subr.mxu0 0.0
      %1197 = vmatpush2.msra.mxu0 0.0
      %1198 = vmatprep.subr.mxu0 0.0
      %1199 = vmatpush2.msra.mxu0 0.0
      %1200 = vmatprep.subr.mxu0 0.0
      %1201 = vmatpush2.msra.mxu0 0.0
      %1202 = vmatprep.subr.mxu0 0.0
      %1203 = vmatpush2.msra.mxu0 0.0
      %1204 = vmatprep.subr.mxu0 0.0
      %1205 = vmatpush2.msra.mxu0 0.0
      %1206 = vmatprep.subr.mxu0 0.0
      %1207 = vmatpush2.msra.mxu0 0.0
      %1208 = vmatprep.subr.mxu0 0.0
      %1209 = vmatpush2.msra.mxu0 0.0
      %1210 = vmatprep.subr.mxu0 0.0
      %1211 = vmatpush2.msra.mxu0 0.0
      %1212 = vmatprep.subr.mxu0 0.0
      %1213 = vmatpush2.msra.mxu0 0.0
      %1214 = vmatprep.subr.mxu0 0.0
      %1215 = vmatpush2.msra.mxu0 0.0
      %1216 = vmatprep.mubr.f32.mxu0 0.0
      %1217 = vmatmul.mubr.f32.gmra.mxu0 %v1046
      %v1218 = vpop.f32.mrf.mxu0
      %v1219 = vadd.f32 0.0, %v1218
      %v1220 = vpop.f32.mrf.mxu0
      %1221 = vmatprep.mubr.f32.mxu0 0.0
      %1222 = vmatmul.mubr.f32.gmra.mxu0 %v1049
      %v1223 = vpop.f32.mrf.mxu0
      %v1224 = vadd.f32 0.0, %v1223
      %v1225 = vpop.f32.mrf.mxu0
      %1226 = vmatprep.mubr.f32.mxu0 0.0
      %1227 = vmatmul.mubr.f32.gmra.mxu0 %v1052
      %v1228 = vpop.f32.mrf.mxu0
      %v1229 = vadd.f32 0.0, %v1228
      %v1230 = vpop.f32.mrf.mxu0
      %1231 = vmatprep.mubr.f32.mxu0 0.0
      %1232 = vmatmul.mubr.f32.gmra.mxu0 %v1055
      %v1233 = vpop.f32.mrf.mxu0
      %v1234 = vadd.f32 0.0, %v1233
      %v1235 = vpop.f32.mrf.mxu0
      %1236 = vdwg.mxu0
      %v1237 = vadd.f32 %v1014, %v1130
      %v1238 = vadd.f32 %v1015, %v1132
      %v1239 = vadd.f32 %v1016, %v1219
      %v1240 = vadd.f32 %v1017, %v1136
      %v1241 = vadd.f32 %v1018, %v1138
      %v1242 = vadd.f32 %v1019, %v1224
      %v1243 = vadd.f32 %v1020, %v1142
      %v1244 = vadd.f32 %v1021, %v1144
      %v1245 = vadd.f32 %v1022, %v1229
      %v1246 = vadd.f32 %v1023, %v1148
      %v1247 = vadd.f32 %v1024, %v1150
      %v1248 = vadd.f32 %v1025, %v1234
      %v1249 = vld [vmem:[%s165] sm:$0xff]
      %v1250 = vld [vmem:[%s165 + $0x8] sm:$0xf]
      %s1251 = scalar_lea.vmem %s1, 160
      %v1252 = vld [vmem:[%s1251] sm:$0xff]
      %v1253 = vld [vmem:[%s1251 + $0x8] sm:$0xff]
      %v1254 = vld [vmem:[%s1251 + $0x10] sm:$0xff]
      %v1255 = vld [vmem:[%s1251 + $0x18] sm:$0xff]
      %v1258 = vcombine.high %v1249, %v1249
      %1259 = vrot.lane.b32.xlu0 %v1249, 108
      %v1260 = vpop.permute.xlu0 %1259
      %1261 = vrot.lane.b32.xlu0 %v1258, 108
      %v1262 = vpop.permute.xlu0 %1261
      %1263 = vrot.lane.b32.xlu0 %v1250, 108
      %v1264 = vpop.permute.xlu0 %1263
      %vm1265 = vcmask 883712
      %v1266 = vsel %vm1265, %v1260, %v1262
      %v1267 = vsel %vm1265, %v1262, %v1264
      %v1269 = vsel %vm194, %v1252, 0
      %v1272 = vsel %vm194, %v1253, 0
      %v1275 = vsel %vm194, %v1254, 0
      %v1278 = vsel %vm194, %v1255, 0
      %v1280 = vsel %vm207, %v1266, 0
      %v1282 = vsel %vm207, %v1267, 0
      %v1284 = vsel %vm207, %v1264, 0
      %1286 = vmatprep.subr.mxu0 0.0
      %1287 = vmatpush1.msra.mxu0 0.0
      %1288 = vmatprep.subr.mxu0 0.0
      %1289 = vmatpush1.msra.mxu0 0.0
      %1290 = vmatprep.subr.mxu0 0.0
      %1291 = vmatpush1.msra.mxu0 0.0
      %1292 = vmatprep.subr.mxu0 0.0
      %1293 = vmatpush1.msra.mxu0 0.0
      %1294 = vmatprep.subr.mxu0 0.0
      %1295 = vmatpush1.msra.mxu0 0.0
      %1296 = vmatprep.subr.mxu0 0.0
      %1297 = vmatpush1.msra.mxu0 0.0
      %1298 = vmatprep.subr.mxu0 0.0
      %1299 = vmatpush1.msra.mxu0 0.0
      %1300 = vmatprep.subr.mxu0 0.0
      %1301 = vmatpush1.msra.mxu0 0.0
      %1302 = vmatprep.subr.mxu0 0.0
      %1303 = vmatpush1.msra.mxu0 0.0
      %1304 = vmatprep.subr.mxu0 0.0
      %1305 = vmatpush1.msra.mxu0 0.0
      %1306 = vmatprep.subr.mxu0 0.0
      %1307 = vmatpush1.msra.mxu0 0.0
      %1308 = vmatprep.subr.mxu0 0.0
      %1309 = vmatpush1.msra.mxu0 0.0
      %1310 = vmatprep.subr.mxu0 0.0
      %1311 = vmatpush1.msra.mxu0 0.0
      %1312 = vmatprep.subr.mxu0 0.0
      %1313 = vmatpush1.msra.mxu0 0.0
      %1314 = vmatprep.subr.mxu0 0.0
      %1315 = vmatpush1.msra.mxu0 0.0
      %1316 = vmatprep.subr.mxu0 %v1282
      %1317 = vmatpush1.msra.mxu0 %v1280
      %1318 = vmatprep.subr.mxu0 0.0
      %1319 = vmatpush2.msra.mxu0 0.0
      %1320 = vmatprep.subr.mxu0 0.0
      %1321 = vmatpush2.msra.mxu0 0.0
      %1322 = vmatprep.subr.mxu0 0.0
      %1323 = vmatpush2.msra.mxu0 0.0
      %1324 = vmatprep.subr.mxu0 0.0
      %1325 = vmatpush2.msra.mxu0 0.0
      %1326 = vmatprep.subr.mxu0 0.0
      %1327 = vmatpush2.msra.mxu0 0.0
      %1328 = vmatprep.subr.mxu0 0.0
      %1329 = vmatpush2.msra.mxu0 0.0
      %1330 = vmatprep.subr.mxu0 0.0
      %1331 = vmatpush2.msra.mxu0 0.0
      %1332 = vmatprep.subr.mxu0 0.0
      %1333 = vmatpush2.msra.mxu0 0.0
      %1334 = vmatprep.subr.mxu0 0.0
      %1335 = vmatpush2.msra.mxu0 0.0
      %1336 = vmatprep.subr.mxu0 0.0
      %1337 = vmatpush2.msra.mxu0 0.0
      %1338 = vmatprep.subr.mxu0 0.0
      %1339 = vmatpush2.msra.mxu0 0.0
      %1340 = vmatprep.subr.mxu0 0.0
      %1341 = vmatpush2.msra.mxu0 0.0
      %1342 = vmatprep.subr.mxu0 0.0
      %1343 = vmatpush2.msra.mxu0 0.0
      %1344 = vmatprep.subr.mxu0 0.0
      %1345 = vmatpush2.msra.mxu0 0.0
      %1346 = vmatprep.subr.mxu0 0.0
      %1347 = vmatpush2.msra.mxu0 0.0
      %1348 = vmatprep.subr.mxu0 0.0
      %1349 = vmatpush2.msra.mxu0 0.0
      %1350 = vmatprep.mubr.f32.mxu0 0.0
      %1351 = vmatmul.mubr.f32.gmra.mxu0 %v1269
      %v1352 = vpop.f32.mrf.mxu0
      %v1353 = vadd.f32 0.0, %v1352
      %v1354 = vpop.f32.mrf.mxu0
      %v1355 = vadd.f32 0.0, %v1354
      %1356 = vmatprep.mubr.f32.mxu0 0.0
      %1357 = vmatmul.mubr.f32.gmra.mxu0 %v1272
      %v1358 = vpop.f32.mrf.mxu0
      %v1359 = vadd.f32 0.0, %v1358
      %v1360 = vpop.f32.mrf.mxu0
      %v1361 = vadd.f32 0.0, %v1360
      %1362 = vmatprep.mubr.f32.mxu0 0.0
      %1363 = vmatmul.mubr.f32.gmra.mxu0 %v1275
      %v1364 = vpop.f32.mrf.mxu0
      %v1365 = vadd.f32 0.0, %v1364
      %v1366 = vpop.f32.mrf.mxu0
      %v1367 = vadd.f32 0.0, %v1366
      %1368 = vmatprep.mubr.f32.mxu0 0.0
      %1369 = vmatmul.mubr.f32.gmra.mxu0 %v1278
      %v1370 = vpop.f32.mrf.mxu0
      %v1371 = vadd.f32 0.0, %v1370
      %v1372 = vpop.f32.mrf.mxu0
      %v1373 = vadd.f32 0.0, %v1372
      %1374 = vdwg.mxu0
      %1375 = vmatprep.subr.mxu0 0.0
      %1376 = vmatpush1.msra.mxu0 0.0
      %1377 = vmatprep.subr.mxu0 0.0
      %1378 = vmatpush1.msra.mxu0 0.0
      %1379 = vmatprep.subr.mxu0 0.0
      %1380 = vmatpush1.msra.mxu0 0.0
      %1381 = vmatprep.subr.mxu0 0.0
      %1382 = vmatpush1.msra.mxu0 0.0
      %1383 = vmatprep.subr.mxu0 0.0
      %1384 = vmatpush1.msra.mxu0 0.0
      %1385 = vmatprep.subr.mxu0 0.0
      %1386 = vmatpush1.msra.mxu0 0.0
      %1387 = vmatprep.subr.mxu0 0.0
      %1388 = vmatpush1.msra.mxu0 0.0
      %1389 = vmatprep.subr.mxu0 0.0
      %1390 = vmatpush1.msra.mxu0 0.0
      %1391 = vmatprep.subr.mxu0 0.0
      %1392 = vmatpush1.msra.mxu0 0.0
      %1393 = vmatprep.subr.mxu0 0.0
      %1394 = vmatpush1.msra.mxu0 0.0
      %1395 = vmatprep.subr.mxu0 0.0
      %1396 = vmatpush1.msra.mxu0 0.0
      %1397 = vmatprep.subr.mxu0 0.0
      %1398 = vmatpush1.msra.mxu0 0.0
      %1399 = vmatprep.subr.mxu0 0.0
      %1400 = vmatpush1.msra.mxu0 0.0
      %1401 = vmatprep.subr.mxu0 0.0
      %1402 = vmatpush1.msra.mxu0 0.0
      %1403 = vmatprep.subr.mxu0 0.0
      %1404 = vmatpush1.msra.mxu0 0.0
      %1405 = vmatprep.subr.mxu0 0.0
      %1406 = vmatpush1.msra.mxu0 %v1284
      %1407 = vmatprep.subr.mxu0 0.0
      %1408 = vmatpush2.msra.mxu0 0.0
      %1409 = vmatprep.subr.mxu0 0.0
      %1410 = vmatpush2.msra.mxu0 0.0
      %1411 = vmatprep.subr.mxu0 0.0
      %1412 = vmatpush2.msra.mxu0 0.0
      %1413 = vmatprep.subr.mxu0 0.0
      %1414 = vmatpush2.msra.mxu0 0.0
      %1415 = vmatprep.subr.mxu0 0.0
      %1416 = vmatpush2.msra.mxu0 0.0
      %1417 = vmatprep.subr.mxu0 0.0
      %1418 = vmatpush2.msra.mxu0 0.0
      %1419 = vmatprep.subr.mxu0 0.0
      %1420 = vmatpush2.msra.mxu0 0.0
      %1421 = vmatprep.subr.mxu0 0.0
      %1422 = vmatpush2.msra.mxu0 0.0
      %1423 = vmatprep.subr.mxu0 0.0
      %1424 = vmatpush2.msra.mxu0 0.0
      %1425 = vmatprep.subr.mxu0 0.0
      %1426 = vmatpush2.msra.mxu0 0.0
      %1427 = vmatprep.subr.mxu0 0.0
      %1428 = vmatpush2.msra.mxu0 0.0
      %1429 = vmatprep.subr.mxu0 0.0
      %1430 = vmatpush2.msra.mxu0 0.0
      %1431 = vmatprep.subr.mxu0 0.0
      %1432 = vmatpush2.msra.mxu0 0.0
      %1433 = vmatprep.subr.mxu0 0.0
      %1434 = vmatpush2.msra.mxu0 0.0
      %1435 = vmatprep.subr.mxu0 0.0
      %1436 = vmatpush2.msra.mxu0 0.0
      %1437 = vmatprep.subr.mxu0 0.0
      %1438 = vmatpush2.msra.mxu0 0.0
      %1439 = vmatprep.mubr.f32.mxu0 0.0
      %1440 = vmatmul.mubr.f32.gmra.mxu0 %v1269
      %v1441 = vpop.f32.mrf.mxu0
      %v1442 = vadd.f32 0.0, %v1441
      %v1443 = vpop.f32.mrf.mxu0
      %1444 = vmatprep.mubr.f32.mxu0 0.0
      %1445 = vmatmul.mubr.f32.gmra.mxu0 %v1272
      %v1446 = vpop.f32.mrf.mxu0
      %v1447 = vadd.f32 0.0, %v1446
      %v1448 = vpop.f32.mrf.mxu0
      %1449 = vmatprep.mubr.f32.mxu0 0.0
      %1450 = vmatmul.mubr.f32.gmra.mxu0 %v1275
      %v1451 = vpop.f32.mrf.mxu0
      %v1452 = vadd.f32 0.0, %v1451
      %v1453 = vpop.f32.mrf.mxu0
      %1454 = vmatprep.mubr.f32.mxu0 0.0
      %1455 = vmatmul.mubr.f32.gmra.mxu0 %v1278
      %v1456 = vpop.f32.mrf.mxu0
      %v1457 = vadd.f32 0.0, %v1456
      %v1458 = vpop.f32.mrf.mxu0
      %1459 = vdwg.mxu0
      %v1460 = vadd.f32 %v1237, %v1353
      %v1461 = vadd.f32 %v1238, %v1355
      %v1462 = vadd.f32 %v1239, %v1442
      %v1463 = vadd.f32 %v1240, %v1359
      %v1464 = vadd.f32 %v1241, %v1361
      %v1465 = vadd.f32 %v1242, %v1447
      %v1466 = vadd.f32 %v1243, %v1365
      %v1467 = vadd.f32 %v1244, %v1367
      %v1468 = vadd.f32 %v1245, %v1452
      %v1469 = vadd.f32 %v1246, %v1371
      %v1470 = vadd.f32 %v1247, %v1373
      %v1471 = vadd.f32 %v1248, %v1457
      %v1472 = vld [vmem:[%s165] sm:$0xff]
      %v1473 = vld [vmem:[%s165 + $0x8] sm:$0xf]
      %s1474 = scalar_lea.vmem %s1, 192
      %v1475 = vld [vmem:[%s1474] sm:$0xff]
      %v1476 = vld [vmem:[%s1474 + $0x8] sm:$0xff]
      %v1477 = vld [vmem:[%s1474 + $0x10] sm:$0xff]
      %v1478 = vld [vmem:[%s1474 + $0x18] sm:$0xff]
      %v1481 = vcombine.high %v1472, %v1472
      %1482 = vrot.lane.b32.xlu0 %v1472, 92
      %v1483 = vpop.permute.xlu0 %1482
      %1484 = vrot.lane.b32.xlu0 %v1481, 92
      %v1485 = vpop.permute.xlu0 %1484
      %1486 = vrot.lane.b32.xlu0 %v1473, 92
      %v1487 = vpop.permute.xlu0 %1486
      %vm1488 = vcmask 752640
      %v1489 = vsel %vm1488, %v1483, %v1485
      %v1490 = vsel %vm1488, %v1485, %v1487
      %v1492 = vsel %vm194, %v1475, 0
      %v1495 = vsel %vm194, %v1476, 0
      %v1498 = vsel %vm194, %v1477, 0
      %v1501 = vsel %vm194, %v1478, 0
      %v1503 = vsel %vm207, %v1489, 0
      %v1505 = vsel %vm207, %v1490, 0
      %v1507 = vsel %vm207, %v1487, 0
      %1509 = vmatprep.subr.mxu0 0.0
      %1510 = vmatpush1.msra.mxu0 0.0
      %1511 = vmatprep.subr.mxu0 0.0
      %1512 = vmatpush1.msra.mxu0 0.0
      %1513 = vmatprep.subr.mxu0 0.0
      %1514 = vmatpush1.msra.mxu0 0.0
      %1515 = vmatprep.subr.mxu0 0.0
      %1516 = vmatpush1.msra.mxu0 0.0
      %1517 = vmatprep.subr.mxu0 0.0
      %1518 = vmatpush1.msra.mxu0 0.0
      %1519 = vmatprep.subr.mxu0 0.0
      %1520 = vmatpush1.msra.mxu0 0.0
      %1521 = vmatprep.subr.mxu0 0.0
      %1522 = vmatpush1.msra.mxu0 0.0
      %1523 = vmatprep.subr.mxu0 0.0
      %1524 = vmatpush1.msra.mxu0 0.0
      %1525 = vmatprep.subr.mxu0 0.0
      %1526 = vmatpush1.msra.mxu0 0.0
      %1527 = vmatprep.subr.mxu0 0.0
      %1528 = vmatpush1.msra.mxu0 0.0
      %1529 = vmatprep.subr.mxu0 0.0
      %1530 = vmatpush1.msra.mxu0 0.0
      %1531 = vmatprep.subr.mxu0 0.0
      %1532 = vmatpush1.msra.mxu0 0.0
      %1533 = vmatprep.subr.mxu0 0.0
      %1534 = vmatpush1.msra.mxu0 0.0
      %1535 = vmatprep.subr.mxu0 0.0
      %1536 = vmatpush1.msra.mxu0 0.0
      %1537 = vmatprep.subr.mxu0 0.0
      %1538 = vmatpush1.msra.mxu0 0.0
      %1539 = vmatprep.subr.mxu0 %v1505
      %1540 = vmatpush1.msra.mxu0 %v1503
      %1541 = vmatprep.subr.mxu0 0.0
      %1542 = vmatpush2.msra.mxu0 0.0
      %1543 = vmatprep.subr.mxu0 0.0
      %1544 = vmatpush2.msra.mxu0 0.0
      %1545 = vmatprep.subr.mxu0 0.0
      %1546 = vmatpush2.msra.mxu0 0.0
      %1547 = vmatprep.subr.mxu0 0.0
      %1548 = vmatpush2.msra.mxu0 0.0
      %1549 = vmatprep.subr.mxu0 0.0
      %1550 = vmatpush2.msra.mxu0 0.0
      %1551 = vmatprep.subr.mxu0 0.0
      %1552 = vmatpush2.msra.mxu0 0.0
      %1553 = vmatprep.subr.mxu0 0.0
      %1554 = vmatpush2.msra.mxu0 0.0
      %1555 = vmatprep.subr.mxu0 0.0
      %1556 = vmatpush2.msra.mxu0 0.0
      %1557 = vmatprep.subr.mxu0 0.0
      %1558 = vmatpush2.msra.mxu0 0.0
      %1559 = vmatprep.subr.mxu0 0.0
      %1560 = vmatpush2.msra.mxu0 0.0
      %1561 = vmatprep.subr.mxu0 0.0
      %1562 = vmatpush2.msra.mxu0 0.0
      %1563 = vmatprep.subr.mxu0 0.0
      %1564 = vmatpush2.msra.mxu0 0.0
      %1565 = vmatprep.subr.mxu0 0.0
      %1566 = vmatpush2.msra.mxu0 0.0
      %1567 = vmatprep.subr.mxu0 0.0
      %1568 = vmatpush2.msra.mxu0 0.0
      %1569 = vmatprep.subr.mxu0 0.0
      %1570 = vmatpush2.msra.mxu0 0.0
      %1571 = vmatprep.subr.mxu0 0.0
      %1572 = vmatpush2.msra.mxu0 0.0
      %1573 = vmatprep.mubr.f32.mxu0 0.0
      %1574 = vmatmul.mubr.f32.gmra.mxu0 %v1492
      %v1575 = vpop.f32.mrf.mxu0
      %v1576 = vadd.f32 0.0, %v1575
      %v1577 = vpop.f32.mrf.mxu0
      %v1578 = vadd.f32 0.0, %v1577
      %1579 = vmatprep.mubr.f32.mxu0 0.0
      %1580 = vmatmul.mubr.f32.gmra.mxu0 %v1495
      %v1581 = vpop.f32.mrf.mxu0
      %v1582 = vadd.f32 0.0, %v1581
      %v1583 = vpop.f32.mrf.mxu0
      %v1584 = vadd.f32 0.0, %v1583
      %1585 = vmatprep.mubr.f32.mxu0 0.0
      %1586 = vmatmul.mubr.f32.gmra.mxu0 %v1498
      %v1587 = vpop.f32.mrf.mxu0
      %v1588 = vadd.f32 0.0, %v1587
      %v1589 = vpop.f32.mrf.mxu0
      %v1590 = vadd.f32 0.0, %v1589
      %1591 = vmatprep.mubr.f32.mxu0 0.0
      %1592 = vmatmul.mubr.f32.gmra.mxu0 %v1501
      %v1593 = vpop.f32.mrf.mxu0
      %v1594 = vadd.f32 0.0, %v1593
      %v1595 = vpop.f32.mrf.mxu0
      %v1596 = vadd.f32 0.0, %v1595
      %1597 = vdwg.mxu0
      %1598 = vmatprep.subr.mxu0 0.0
      %1599 = vmatpush1.msra.mxu0 0.0
      %1600 = vmatprep.subr.mxu0 0.0
      %1601 = vmatpush1.msra.mxu0 0.0
      %1602 = vmatprep.subr.mxu0 0.0
      %1603 = vmatpush1.msra.mxu0 0.0
      %1604 = vmatprep.subr.mxu0 0.0
      %1605 = vmatpush1.msra.mxu0 0.0
      %1606 = vmatprep.subr.mxu0 0.0
      %1607 = vmatpush1.msra.mxu0 0.0
      %1608 = vmatprep.subr.mxu0 0.0
      %1609 = vmatpush1.msra.mxu0 0.0
      %1610 = vmatprep.subr.mxu0 0.0
      %1611 = vmatpush1.msra.mxu0 0.0
      %1612 = vmatprep.subr.mxu0 0.0
      %1613 = vmatpush1.msra.mxu0 0.0
      %1614 = vmatprep.subr.mxu0 0.0
      %1615 = vmatpush1.msra.mxu0 0.0
      %1616 = vmatprep.subr.mxu0 0.0
      %1617 = vmatpush1.msra.mxu0 0.0
      %1618 = vmatprep.subr.mxu0 0.0
      %1619 = vmatpush1.msra.mxu0 0.0
      %1620 = vmatprep.subr.mxu0 0.0
      %1621 = vmatpush1.msra.mxu0 0.0
      %1622 = vmatprep.subr.mxu0 0.0
      %1623 = vmatpush1.msra.mxu0 0.0
      %1624 = vmatprep.subr.mxu0 0.0
      %1625 = vmatpush1.msra.mxu0 0.0
      %1626 = vmatprep.subr.mxu0 0.0
      %1627 = vmatpush1.msra.mxu0 0.0
      %1628 = vmatprep.subr.mxu0 0.0
      %1629 = vmatpush1.msra.mxu0 %v1507
      %1630 = vmatprep.subr.mxu0 0.0
      %1631 = vmatpush2.msra.mxu0 0.0
      %1632 = vmatprep.subr.mxu0 0.0
      %1633 = vmatpush2.msra.mxu0 0.0
      %1634 = vmatprep.subr.mxu0 0.0
      %1635 = vmatpush2.msra.mxu0 0.0
      %1636 = vmatprep.subr.mxu0 0.0
      %1637 = vmatpush2.msra.mxu0 0.0
      %1638 = vmatprep.subr.mxu0 0.0
      %1639 = vmatpush2.msra.mxu0 0.0
      %1640 = vmatprep.subr.mxu0 0.0
      %1641 = vmatpush2.msra.mxu0 0.0
      %1642 = vmatprep.subr.mxu0 0.0
      %1643 = vmatpush2.msra.mxu0 0.0
      %1644 = vmatprep.subr.mxu0 0.0
      %1645 = vmatpush2.msra.mxu0 0.0
      %1646 = vmatprep.subr.mxu0 0.0
      %1647 = vmatpush2.msra.mxu0 0.0
      %1648 = vmatprep.subr.mxu0 0.0
      %1649 = vmatpush2.msra.mxu0 0.0
      %1650 = vmatprep.subr.mxu0 0.0
      %1651 = vmatpush2.msra.mxu0 0.0
      %1652 = vmatprep.subr.mxu0 0.0
      %1653 = vmatpush2.msra.mxu0 0.0
      %1654 = vmatprep.subr.mxu0 0.0
      %1655 = vmatpush2.msra.mxu0 0.0
      %1656 = vmatprep.subr.mxu0 0.0
      %1657 = vmatpush2.msra.mxu0 0.0
      %1658 = vmatprep.subr.mxu0 0.0
      %1659 = vmatpush2.msra.mxu0 0.0
      %1660 = vmatprep.subr.mxu0 0.0
      %1661 = vmatpush2.msra.mxu0 0.0
      %1662 = vmatprep.mubr.f32.mxu0 0.0
      %1663 = vmatmul.mubr.f32.gmra.mxu0 %v1492
      %v1664 = vpop.f32.mrf.mxu0
      %v1665 = vadd.f32 0.0, %v1664
      %v1666 = vpop.f32.mrf.mxu0
      %1667 = vmatprep.mubr.f32.mxu0 0.0
      %1668 = vmatmul.mubr.f32.gmra.mxu0 %v1495
      %v1669 = vpop.f32.mrf.mxu0
      %v1670 = vadd.f32 0.0, %v1669
      %v1671 = vpop.f32.mrf.mxu0
      %1672 = vmatprep.mubr.f32.mxu0 0.0
      %1673 = vmatmul.mubr.f32.gmra.mxu0 %v1498
      %v1674 = vpop.f32.mrf.mxu0
      %v1675 = vadd.f32 0.0, %v1674
      %v1676 = vpop.f32.mrf.mxu0
      %1677 = vmatprep.mubr.f32.mxu0 0.0
      %1678 = vmatmul.mubr.f32.gmra.mxu0 %v1501
      %v1679 = vpop.f32.mrf.mxu0
      %v1680 = vadd.f32 0.0, %v1679
      %v1681 = vpop.f32.mrf.mxu0
      %1682 = vdwg.mxu0
      %v1683 = vadd.f32 %v1460, %v1576
      %v1684 = vadd.f32 %v1461, %v1578
      %v1685 = vadd.f32 %v1462, %v1665
      %v1686 = vadd.f32 %v1463, %v1582
      %v1687 = vadd.f32 %v1464, %v1584
      %v1688 = vadd.f32 %v1465, %v1670
      %v1689 = vadd.f32 %v1466, %v1588
      %v1690 = vadd.f32 %v1467, %v1590
      %v1691 = vadd.f32 %v1468, %v1675
      %v1692 = vadd.f32 %v1469, %v1594
      %v1693 = vadd.f32 %v1470, %v1596
      %v1694 = vadd.f32 %v1471, %v1680
      %v1695 = vld [vmem:[%s165] sm:$0xff]
      %v1696 = vld [vmem:[%s165 + $0x8] sm:$0xf]
      %s1697 = scalar_lea.vmem %s1, 224
      %v1698 = vld [vmem:[%s1697] sm:$0xff]
      %v1699 = vld [vmem:[%s1697 + $0x8] sm:$0xff]
      %v1700 = vld [vmem:[%s1697 + $0x10] sm:$0xff]
      %v1701 = vld [vmem:[%s1697 + $0x18] sm:$0xff]
      %v1704 = vcombine.high %v1695, %v1695
      %1705 = vrot.lane.b32.xlu0 %v1695, 91
      %v1706 = vpop.permute.xlu0 %1705
      %1707 = vrot.lane.b32.xlu0 %v1704, 91
      %v1708 = vpop.permute.xlu0 %1707
      %1709 = vrot.lane.b32.xlu0 %v1696, 91
      %v1710 = vpop.permute.xlu0 %1709
      %vm1711 = vcmask 744448
      %v1712 = vsel %vm1711, %v1706, %v1708
      %v1713 = vsel %vm1711, %v1708, %v1710
      %v1715 = vsel %vm194, %v1698, 0
      %v1718 = vsel %vm194, %v1699, 0
      %v1721 = vsel %vm194, %v1700, 0
      %v1724 = vsel %vm194, %v1701, 0
      %v1726 = vsel %vm207, %v1712, 0
      %v1728 = vsel %vm207, %v1713, 0
      %v1730 = vsel %vm207, %v1710, 0
      %1732 = vmatprep.subr.mxu0 0.0
      %1733 = vmatpush1.msra.mxu0 0.0
      %1734 = vmatprep.subr.mxu0 0.0
      %1735 = vmatpush1.msra.mxu0 0.0
      %1736 = vmatprep.subr.mxu0 0.0
      %1737 = vmatpush1.msra.mxu0 0.0
      %1738 = vmatprep.subr.mxu0 0.0
      %1739 = vmatpush1.msra.mxu0 0.0
      %1740 = vmatprep.subr.mxu0 0.0
      %1741 = vmatpush1.msra.mxu0 0.0
      %1742 = vmatprep.subr.mxu0 0.0
      %1743 = vmatpush1.msra.mxu0 0.0
      %1744 = vmatprep.subr.mxu0 0.0
      %1745 = vmatpush1.msra.mxu0 0.0
      %1746 = vmatprep.subr.mxu0 0.0
      %1747 = vmatpush1.msra.mxu0 0.0
      %1748 = vmatprep.subr.mxu0 0.0
      %1749 = vmatpush1.msra.mxu0 0.0
      %1750 = vmatprep.subr.mxu0 0.0
      %1751 = vmatpush1.msra.mxu0 0.0
      %1752 = vmatprep.subr.mxu0 0.0
      %1753 = vmatpush1.msra.mxu0 0.0
      %1754 = vmatprep.subr.mxu0 0.0
      %1755 = vmatpush1.msra.mxu0 0.0
      %1756 = vmatprep.subr.mxu0 0.0
      %1757 = vmatpush1.msra.mxu0 0.0
      %1758 = vmatprep.subr.mxu0 0.0
      %1759 = vmatpush1.msra.mxu0 0.0
      %1760 = vmatprep.subr.mxu0 0.0
      %1761 = vmatpush1.msra.mxu0 0.0
      %1762 = vmatprep.subr.mxu0 %v1728
      %1763 = vmatpush1.msra.mxu0 %v1726
      %1764 = vmatprep.subr.mxu0 0.0
      %1765 = vmatpush2.msra.mxu0 0.0
      %1766 = vmatprep.subr.mxu0 0.0
      %1767 = vmatpush2.msra.mxu0 0.0
      %1768 = vmatprep.subr.mxu0 0.0
      %1769 = vmatpush2.msra.mxu0 0.0
      %1770 = vmatprep.subr.mxu0 0.0
      %1771 = vmatpush2.msra.mxu0 0.0
      %1772 = vmatprep.subr.mxu0 0.0
      %1773 = vmatpush2.msra.mxu0 0.0
      %1774 = vmatprep.subr.mxu0 0.0
      %1775 = vmatpush2.msra.mxu0 0.0
      %1776 = vmatprep.subr.mxu0 0.0
      %1777 = vmatpush2.msra.mxu0 0.0
      %1778 = vmatprep.subr.mxu0 0.0
      %1779 = vmatpush2.msra.mxu0 0.0
      %1780 = vmatprep.subr.mxu0 0.0
      %1781 = vmatpush2.msra.mxu0 0.0
      %1782 = vmatprep.subr.mxu0 0.0
      %1783 = vmatpush2.msra.mxu0 0.0
      %1784 = vmatprep.subr.mxu0 0.0
      %1785 = vmatpush2.msra.mxu0 0.0
      %1786 = vmatprep.subr.mxu0 0.0
      %1787 = vmatpush2.msra.mxu0 0.0
      %1788 = vmatprep.subr.mxu0 0.0
      %1789 = vmatpush2.msra.mxu0 0.0
      %1790 = vmatprep.subr.mxu0 0.0
      %1791 = vmatpush2.msra.mxu0 0.0
      %1792 = vmatprep.subr.mxu0 0.0
      %1793 = vmatpush2.msra.mxu0 0.0
      %1794 = vmatprep.subr.mxu0 0.0
      %1795 = vmatpush2.msra.mxu0 0.0
      %1796 = vmatprep.mubr.f32.mxu0 0.0
      %1797 = vmatmul.mubr.f32.gmra.mxu0 %v1715
      %v1798 = vpop.f32.mrf.mxu0
      %v1799 = vadd.f32 0.0, %v1798
      %v1800 = vpop.f32.mrf.mxu0
      %v1801 = vadd.f32 0.0, %v1800
      %1802 = vmatprep.mubr.f32.mxu0 0.0
      %1803 = vmatmul.mubr.f32.gmra.mxu0 %v1718
      %v1804 = vpop.f32.mrf.mxu0
      %v1805 = vadd.f32 0.0, %v1804
      %v1806 = vpop.f32.mrf.mxu0
      %v1807 = vadd.f32 0.0, %v1806
      %1808 = vmatprep.mubr.f32.mxu0 0.0
      %1809 = vmatmul.mubr.f32.gmra.mxu0 %v1721
      %v1810 = vpop.f32.mrf.mxu0
      %v1811 = vadd.f32 0.0, %v1810
      %v1812 = vpop.f32.mrf.mxu0
      %v1813 = vadd.f32 0.0, %v1812
      %1814 = vmatprep.mubr.f32.mxu0 0.0
      %1815 = vmatmul.mubr.f32.gmra.mxu0 %v1724
      %v1816 = vpop.f32.mrf.mxu0
      %v1817 = vadd.f32 0.0, %v1816
      %v1818 = vpop.f32.mrf.mxu0
      %v1819 = vadd.f32 0.0, %v1818
      %1820 = vdwg.mxu0
      %1821 = vmatprep.subr.mxu0 0.0
      %1822 = vmatpush1.msra.mxu0 0.0
      %1823 = vmatprep.subr.mxu0 0.0
      %1824 = vmatpush1.msra.mxu0 0.0
      %1825 = vmatprep.subr.mxu0 0.0
      %1826 = vmatpush1.msra.mxu0 0.0
      %1827 = vmatprep.subr.mxu0 0.0
      %1828 = vmatpush1.msra.mxu0 0.0
      %1829 = vmatprep.subr.mxu0 0.0
      %1830 = vmatpush1.msra.mxu0 0.0
      %1831 = vmatprep.subr.mxu0 0.0
      %1832 = vmatpush1.msra.mxu0 0.0
      %1833 = vmatprep.subr.mxu0 0.0
      %1834 = vmatpush1.msra.mxu0 0.0
      %1835 = vmatprep.subr.mxu0 0.0
      %1836 = vmatpush1.msra.mxu0 0.0
      %1837 = vmatprep.subr.mxu0 0.0
      %1838 = vmatpush1.msra.mxu0 0.0
      %1839 = vmatprep.subr.mxu0 0.0
      %1840 = vmatpush1.msra.mxu0 0.0
      %1841 = vmatprep.subr.mxu0 0.0
      %1842 = vmatpush1.msra.mxu0 0.0
      %1843 = vmatprep.subr.mxu0 0.0
      %1844 = vmatpush1.msra.mxu0 0.0
      %1845 = vmatprep.subr.mxu0 0.0
      %1846 = vmatpush1.msra.mxu0 0.0
      %1847 = vmatprep.subr.mxu0 0.0
      %1848 = vmatpush1.msra.mxu0 0.0
      %1849 = vmatprep.subr.mxu0 0.0
      %1850 = vmatpush1.msra.mxu0 0.0
      %1851 = vmatprep.subr.mxu0 0.0
      %1852 = vmatpush1.msra.mxu0 %v1730
      %1853 = vmatprep.subr.mxu0 0.0
      %1854 = vmatpush2.msra.mxu0 0.0
      %1855 = vmatprep.subr.mxu0 0.0
      %1856 = vmatpush2.msra.mxu0 0.0
      %1857 = vmatprep.subr.mxu0 0.0
      %1858 = vmatpush2.msra.mxu0 0.0
      %1859 = vmatprep.subr.mxu0 0.0
      %1860 = vmatpush2.msra.mxu0 0.0
      %1861 = vmatprep.subr.mxu0 0.0
      %1862 = vmatpush2.msra.mxu0 0.0
      %1863 = vmatprep.subr.mxu0 0.0
      %1864 = vmatpush2.msra.mxu0 0.0
      %1865 = vmatprep.subr.mxu0 0.0
      %1866 = vmatpush2.msra.mxu0 0.0
      %1867 = vmatprep.subr.mxu0 0.0
      %1868 = vmatpush2.msra.mxu0 0.0
      %1869 = vmatprep.subr.mxu0 0.0
      %1870 = vmatpush2.msra.mxu0 0.0
      %1871 = vmatprep.subr.mxu0 0.0
      %1872 = vmatpush2.msra.mxu0 0.0
      %1873 = vmatprep.subr.mxu0 0.0
      %1874 = vmatpush2.msra.mxu0 0.0
      %1875 = vmatprep.subr.mxu0 0.0
      %1876 = vmatpush2.msra.mxu0 0.0
      %1877 = vmatprep.subr.mxu0 0.0
      %1878 = vmatpush2.msra.mxu0 0.0
      %1879 = vmatprep.subr.mxu0 0.0
      %1880 = vmatpush2.msra.mxu0 0.0
      %1881 = vmatprep.subr.mxu0 0.0
      %1882 = vmatpush2.msra.mxu0 0.0
      %1883 = vmatprep.subr.mxu0 0.0
      %1884 = vmatpush2.msra.mxu0 0.0
      %1885 = vmatprep.mubr.f32.mxu0 0.0
      %1886 = vmatmul.mubr.f32.gmra.mxu0 %v1715
      %v1887 = vpop.f32.mrf.mxu0
      %v1888 = vadd.f32 0.0, %v1887
      %v1889 = vpop.f32.mrf.mxu0
      %1890 = vmatprep.mubr.f32.mxu0 0.0
      %1891 = vmatmul.mubr.f32.gmra.mxu0 %v1718
      %v1892 = vpop.f32.mrf.mxu0
      %v1893 = vadd.f32 0.0, %v1892
      %v1894 = vpop.f32.mrf.mxu0
      %1895 = vmatprep.mubr.f32.mxu0 0.0
      %1896 = vmatmul.mubr.f32.gmra.mxu0 %v1721
      %v1897 = vpop.f32.mrf.mxu0
      %v1898 = vadd.f32 0.0, %v1897
      %v1899 = vpop.f32.mrf.mxu0
      %1900 = vmatprep.mubr.f32.mxu0 0.0
      %1901 = vmatmul.mubr.f32.gmra.mxu0 %v1724
      %v1902 = vpop.f32.mrf.mxu0
      %v1903 = vadd.f32 0.0, %v1902
      %v1904 = vpop.f32.mrf.mxu0
      %1905 = vdwg.mxu0
      %v1906 = vadd.f32 %v1683, %v1799
      %v1907 = vadd.f32 %v1684, %v1801
      %v1908 = vadd.f32 %v1685, %v1888
      %v1909 = vadd.f32 %v1686, %v1805
      %v1910 = vadd.f32 %v1687, %v1807
      %v1911 = vadd.f32 %v1688, %v1893
      %v1912 = vadd.f32 %v1689, %v1811
      %v1913 = vadd.f32 %v1690, %v1813
      %v1914 = vadd.f32 %v1691, %v1898
      %v1915 = vadd.f32 %v1692, %v1817
      %v1916 = vadd.f32 %v1693, %v1819
      %v1917 = vadd.f32 %v1694, %v1903
      %v1918 = vld [vmem:[%s165] sm:$0xff]
      %v1919 = vld [vmem:[%s165 + $0x8] sm:$0xf]
      %s1920 = scalar_lea.vmem %s1, 256
      %v1921 = vld [vmem:[%s1920] sm:$0xff]
      %v1922 = vld [vmem:[%s1920 + $0x8] sm:$0xff]
      %v1923 = vld [vmem:[%s1920 + $0x10] sm:$0xff]
      %v1924 = vld [vmem:[%s1920 + $0x18] sm:$0xff]
      %v1927 = vcombine.high %v1918, %v1918
      %1928 = vrot.lane.b32.xlu0 %v1918, 90
      %v1929 = vpop.permute.xlu0 %1928
      %1930 = vrot.lane.b32.xlu0 %v1927, 90
      %v1931 = vpop.permute.xlu0 %1930
      %1932 = vrot.lane.b32.xlu0 %v1919, 90
      %v1933 = vpop.permute.xlu0 %1932
      %vm1934 = vcmask 736256
      %v1935 = vsel %vm1934, %v1929, %v1931
      %v1936 = vsel %vm1934, %v1931, %v1933
      %v1938 = vsel %vm194, %v1921, 0
      %v1941 = vsel %vm194, %v1922, 0
      %v1944 = vsel %vm194, %v1923, 0
      %v1947 = vsel %vm194, %v1924, 0
      %v1949 = vsel %vm207, %v1935, 0
      %v1951 = vsel %vm207, %v1936, 0
      %v1953 = vsel %vm207, %v1933, 0
      %1955 = vmatprep.subr.mxu0 0.0
      %1956 = vmatpush1.msra.mxu0 0.0
      %1957 = vmatprep.subr.mxu0 0.0
      %1958 = vmatpush1.msra.mxu0 0.0
      %1959 = vmatprep.subr.mxu0 0.0
      %1960 = vmatpush1.msra.mxu0 0.0
      %1961 = vmatprep.subr.mxu0 0.0
      %1962 = vmatpush1.msra.mxu0 0.0
      %1963 = vmatprep.subr.mxu0 0.0
      %1964 = vmatpush1.msra.mxu0 0.0
      %1965 = vmatprep.subr.mxu0 0.0
      %1966 = vmatpush1.msra.mxu0 0.0
      %1967 = vmatprep.subr.mxu0 0.0
      %1968 = vmatpush1.msra.mxu0 0.0
      %1969 = vmatprep.subr.mxu0 0.0
      %1970 = vmatpush1.msra.mxu0 0.0
      %1971 = vmatprep.subr.mxu0 0.0
      %1972 = vmatpush1.msra.mxu0 0.0
      %1973 = vmatprep.subr.mxu0 0.0
      %1974 = vmatpush1.msra.mxu0 0.0
      %1975 = vmatprep.subr.mxu0 0.0
      %1976 = vmatpush1.msra.mxu0 0.0
      %1977 = vmatprep.subr.mxu0 0.0
      %1978 = vmatpush1.msra.mxu0 0.0
      %1979 = vmatprep.subr.mxu0 0.0
      %1980 = vmatpush1.msra.mxu0 0.0
      %1981 = vmatprep.subr.mxu0 0.0
      %1982 = vmatpush1.msra.mxu0 0.0
      %1983 = vmatprep.subr.mxu0 0.0
      %1984 = vmatpush1.msra.mxu0 0.0
      %1985 = vmatprep.subr.mxu0 %v1951
      %1986 = vmatpush1.msra.mxu0 %v1949
      %1987 = vmatprep.subr.mxu0 0.0
      %1988 = vmatpush2.msra.mxu0 0.0
      %1989 = vmatprep.subr.mxu0 0.0
      %1990 = vmatpush2.msra.mxu0 0.0
      %1991 = vmatprep.subr.mxu0 0.0
      %1992 = vmatpush2.msra.mxu0 0.0
      %1993 = vmatprep.subr.mxu0 0.0
      %1994 = vmatpush2.msra.mxu0 0.0
      %1995 = vmatprep.subr.mxu0 0.0
      %1996 = vmatpush2.msra.mxu0 0.0
      %1997 = vmatprep.subr.mxu0 0.0
      %1998 = vmatpush2.msra.mxu0 0.0
      %1999 = vmatprep.subr.mxu0 0.0
      %2000 = vmatpush2.msra.mxu0 0.0
      %2001 = vmatprep.subr.mxu0 0.0
      %2002 = vmatpush2.msra.mxu0 0.0
      %2003 = vmatprep.subr.mxu0 0.0
      %2004 = vmatpush2.msra.mxu0 0.0
      %2005 = vmatprep.subr.mxu0 0.0
      %2006 = vmatpush2.msra.mxu0 0.0
      %2007 = vmatprep.subr.mxu0 0.0
      %2008 = vmatpush2.msra.mxu0 0.0
      %2009 = vmatprep.subr.mxu0 0.0
      %2010 = vmatpush2.msra.mxu0 0.0
      %2011 = vmatprep.subr.mxu0 0.0
      %2012 = vmatpush2.msra.mxu0 0.0
      %2013 = vmatprep.subr.mxu0 0.0
      %2014 = vmatpush2.msra.mxu0 0.0
      %2015 = vmatprep.subr.mxu0 0.0
      %2016 = vmatpush2.msra.mxu0 0.0
      %2017 = vmatprep.subr.mxu0 0.0
      %2018 = vmatpush2.msra.mxu0 0.0
      %2019 = vmatprep.mubr.f32.mxu0 0.0
      %2020 = vmatmul.mubr.f32.gmra.mxu0 %v1938
      %v2021 = vpop.f32.mrf.mxu0
      %v2022 = vadd.f32 0.0, %v2021
      %v2023 = vpop.f32.mrf.mxu0
      %v2024 = vadd.f32 0.0, %v2023
      %2025 = vmatprep.mubr.f32.mxu0 0.0
      %2026 = vmatmul.mubr.f32.gmra.mxu0 %v1941
      %v2027 = vpop.f32.mrf.mxu0
      %v2028 = vadd.f32 0.0, %v2027
      %v2029 = vpop.f32.mrf.mxu0
      %v2030 = vadd.f32 0.0, %v2029
      %2031 = vmatprep.mubr.f32.mxu0 0.0
      %2032 = vmatmul.mubr.f32.gmra.mxu0 %v1944
      %v2033 = vpop.f32.mrf.mxu0
      %v2034 = vadd.f32 0.0, %v2033
      %v2035 = vpop.f32.mrf.mxu0
      %v2036 = vadd.f32 0.0, %v2035
      %2037 = vmatprep.mubr.f32.mxu0 0.0
      %2038 = vmatmul.mubr.f32.gmra.mxu0 %v1947
      %v2039 = vpop.f32.mrf.mxu0
      %v2040 = vadd.f32 0.0, %v2039
      %v2041 = vpop.f32.mrf.mxu0
      %v2042 = vadd.f32 0.0, %v2041
      %2043 = vdwg.mxu0
      %2044 = vmatprep.subr.mxu0 0.0
      %2045 = vmatpush1.msra.mxu0 0.0
      %2046 = vmatprep.subr.mxu0 0.0
      %2047 = vmatpush1.msra.mxu0 0.0
      %2048 = vmatprep.subr.mxu0 0.0
      %2049 = vmatpush1.msra.mxu0 0.0
      %2050 = vmatprep.subr.mxu0 0.0
      %2051 = vmatpush1.msra.mxu0 0.0
      %2052 = vmatprep.subr.mxu0 0.0
      %2053 = vmatpush1.msra.mxu0 0.0
      %2054 = vmatprep.subr.mxu0 0.0
      %2055 = vmatpush1.msra.mxu0 0.0
      %2056 = vmatprep.subr.mxu0 0.0
      %2057 = vmatpush1.msra.mxu0 0.0
      %2058 = vmatprep.subr.mxu0 0.0
      %2059 = vmatpush1.msra.mxu0 0.0
      %2060 = vmatprep.subr.mxu0 0.0
      %2061 = vmatpush1.msra.mxu0 0.0
      %2062 = vmatprep.subr.mxu0 0.0
      %2063 = vmatpush1.msra.mxu0 0.0
      %2064 = vmatprep.subr.mxu0 0.0
      %2065 = vmatpush1.msra.mxu0 0.0
      %2066 = vmatprep.subr.mxu0 0.0
      %2067 = vmatpush1.msra.mxu0 0.0
      %2068 = vmatprep.subr.mxu0 0.0
      %2069 = vmatpush1.msra.mxu0 0.0
      %2070 = vmatprep.subr.mxu0 0.0
      %2071 = vmatpush1.msra.mxu0 0.0
      %2072 = vmatprep.subr.mxu0 0.0
      %2073 = vmatpush1.msra.mxu0 0.0
      %2074 = vmatprep.subr.mxu0 0.0
      %2075 = vmatpush1.msra.mxu0 %v1953
      %2076 = vmatprep.subr.mxu0 0.0
      %2077 = vmatpush2.msra.mxu0 0.0
      %2078 = vmatprep.subr.mxu0 0.0
      %2079 = vmatpush2.msra.mxu0 0.0
      %2080 = vmatprep.subr.mxu0 0.0
      %2081 = vmatpush2.msra.mxu0 0.0
      %2082 = vmatprep.subr.mxu0 0.0
      %2083 = vmatpush2.msra.mxu0 0.0
      %2084 = vmatprep.subr.mxu0 0.0
      %2085 = vmatpush2.msra.mxu0 0.0
      %2086 = vmatprep.subr.mxu0 0.0
      %2087 = vmatpush2.msra.mxu0 0.0
      %2088 = vmatprep.subr.mxu0 0.0
      %2089 = vmatpush2.msra.mxu0 0.0
      %2090 = vmatprep.subr.mxu0 0.0
      %2091 = vmatpush2.msra.mxu0 0.0
      %2092 = vmatprep.subr.mxu0 0.0
      %2093 = vmatpush2.msra.mxu0 0.0
      %2094 = vmatprep.subr.mxu0 0.0
      %2095 = vmatpush2.msra.mxu0 0.0
      %2096 = vmatprep.subr.mxu0 0.0
      %2097 = vmatpush2.msra.mxu0 0.0
      %2098 = vmatprep.subr.mxu0 0.0
      %2099 = vmatpush2.msra.mxu0 0.0
      %2100 = vmatprep.subr.mxu0 0.0
      %2101 = vmatpush2.msra.mxu0 0.0
      %2102 = vmatprep.subr.mxu0 0.0
      %2103 = vmatpush2.msra.mxu0 0.0
      %2104 = vmatprep.subr.mxu0 0.0
      %2105 = vmatpush2.msra.mxu0 0.0
      %2106 = vmatprep.subr.mxu0 0.0
      %2107 = vmatpush2.msra.mxu0 0.0
      %2108 = vmatprep.mubr.f32.mxu0 0.0
      %2109 = vmatmul.mubr.f32.gmra.mxu0 %v1938
      %v2110 = vpop.f32.mrf.mxu0
      %v2111 = vadd.f32 0.0, %v2110
      %v2112 = vpop.f32.mrf.mxu0
      %2113 = vmatprep.mubr.f32.mxu0 0.0
      %2114 = vmatmul.mubr.f32.gmra.mxu0 %v1941
      %v2115 = vpop.f32.mrf.mxu0
      %v2116 = vadd.f32 0.0, %v2115
      %v2117 = vpop.f32.mrf.mxu0
      %2118 = vmatprep.mubr.f32.mxu0 0.0
      %2119 = vmatmul.mubr.f32.gmra.mxu0 %v1944
      %v2120 = vpop.f32.mrf.mxu0
      %v2121 = vadd.f32 0.0, %v2120
      %v2122 = vpop.f32.mrf.mxu0
      %2123 = vmatprep.mubr.f32.mxu0 0.0
      %2124 = vmatmul.mubr.f32.gmra.mxu0 %v1947
      %v2125 = vpop.f32.mrf.mxu0
      %v2126 = vadd.f32 0.0, %v2125
      %v2127 = vpop.f32.mrf.mxu0
      %2128 = vdwg.mxu0
      %v2129 = vadd.f32 %v1906, %v2022
      %v2130 = vadd.f32 %v1907, %v2024
      %v2131 = vadd.f32 %v1908, %v2111
      %v2132 = vadd.f32 %v1909, %v2028
      %v2133 = vadd.f32 %v1910, %v2030
      %v2134 = vadd.f32 %v1911, %v2116
      %v2135 = vadd.f32 %v1912, %v2034
      %v2136 = vadd.f32 %v1913, %v2036
      %v2137 = vadd.f32 %v1914, %v2121
      %v2138 = vadd.f32 %v1915, %v2040
      %v2139 = vadd.f32 %v1916, %v2042
      %v2140 = vadd.f32 %v1917, %v2126
      %v2141 = vld [vmem:[%s2] sm:$0xff]
      %v2142 = vld [vmem:[%s2 + $0x8] sm:$0xff]
      %v2143 = vld [vmem:[%s2 + $0x10] sm:$0xff]
      %v2144 = vld [vmem:[%s2 + $0x18] sm:$0xff]
      %2146 = vset.pattern.permute.xlu0 0
      %2147 = vperm.xlu0 %2146, %v2141
      %v2148 = vpop.permute.xlu0 %2147
      %2151 = vset.pattern.permute.xlu0 0
      %2152 = vperm.xlu0 %2151, %v2142
      %v2153 = vpop.permute.xlu0 %2152
      %2156 = vset.pattern.permute.xlu0 0
      %2157 = vperm.xlu0 %2156, %v2143
      %v2158 = vpop.permute.xlu0 %2157
      %2161 = vset.pattern.permute.xlu0 0
      %2162 = vperm.xlu0 %2161, %v2144
      %v2163 = vpop.permute.xlu0 %2162
      %v2165 = vadd.f32 %v2129, %v2148
      %v2166 = vadd.f32 %v2130, %v2148
      %v2167 = vadd.f32 %v2131, %v2148
      %v2168 = vadd.f32 %v2132, %v2153
      %v2169 = vadd.f32 %v2133, %v2153
      %v2170 = vadd.f32 %v2134, %v2153
      %v2171 = vadd.f32 %v2135, %v2158
      %v2172 = vadd.f32 %v2136, %v2158
      %v2173 = vadd.f32 %v2137, %v2158
      %v2174 = vadd.f32 %v2138, %v2163
      %v2175 = vadd.f32 %v2139, %v2163
      %v2176 = vadd.f32 %v2140, %v2163
      %v2177 = vmax.f32 %v2165, 0.0
      %v2178 = vmax.f32 %v2166, 0.0
      %v2179 = vmax.f32 %v2167, 0.0
      %v2180 = vmax.f32 %v2168, 0.0
      %v2181 = vmax.f32 %v2169, 0.0
      %v2182 = vmax.f32 %v2170, 0.0
      %v2183 = vmax.f32 %v2171, 0.0
      %v2184 = vmax.f32 %v2172, 0.0
      %v2185 = vmax.f32 %v2173, 0.0
      %v2186 = vmax.f32 %v2174, 0.0
      %v2187 = vmax.f32 %v2175, 0.0
      %v2188 = vmax.f32 %v2176, 0.0
      %2189 = vst [vmem:[%s170] sm:$0xff] %v2177
      %2190 = vst [vmem:[%s170 + $0x8] sm:$0xff] %v2178
      %vm2191 = vcmask 261120
      %2192 = vst.msk [vmem:[%s170 + $0x10] sm:$0xff] %vm2191, %v2179
      %2193 = vst [vmem:[%s170 + $0x18] sm:$0xff] %v2180
      %2194 = vst [vmem:[%s170 + $0x20] sm:$0xff] %v2181
      %2195 = vst.msk [vmem:[%s170 + $0x28] sm:$0xff] %vm2191, %v2182
      %2196 = vst [vmem:[%s170 + $0x30] sm:$0xff] %v2183
      %2197 = vst [vmem:[%s170 + $0x38] sm:$0xff] %v2184
      %2198 = vst.msk [vmem:[%s170 + $0x40] sm:$0xff] %vm2191, %v2185
      %2199 = vst [vmem:[%s170 + $0x48] sm:$0xff] %v2186
      %2200 = vst [vmem:[%s170 + $0x50] sm:$0xff] %v2187
      %2201 = vst.msk [vmem:[%s170 + $0x58] sm:$0xff] %vm2191, %v2188
      %p2202 = scmp.lt.s32.totalorder %s14, 1
      %s2203 = scalar_select %p2202, %s14, 1
      %s2204 = smul.addr %s2203, 12
      %s2205 = smul.addr %s2204, 8
      %s2206 = scalar_lea.vmem %s3, %s2205
      // Predicated region
      $region33: #{up_conv_forward.3} parent=31 // pred_check
        %p2207 = pneg %p100
      $region34: #{up_conv_forward.3} parent=31 // pred_check_branch
        %2209 = sbr.rel (%p2207) target = $region36
      $region35: #{up_conv_forward.3} parent=31 // pred_region
        _
      $region36: #{up_conv_forward.3} parent=31 // pred_fallthru
        _
    $region32: #{up_conv_forward.3} parent=5 // pred_fallthru
      _
    %p2210 = scmp.le.s32.totalorder 2, %s9
    // Predicated region
    $region37: #{up_conv_forward.3} parent=5 // pred_check
      %p2211 = pneg %p2210
    $region38: #{up_conv_forward.3} parent=5 // pred_check_branch
      %2213 = sbr.rel (%p2211) target = $region40
    $region39: #{up_conv_forward.3} parent=5 // pred_region
      %s2214 = ssub.s32 %s9, 2
      // Predicated region
      $region41: #{up_conv_forward.3} parent=39 // pred_check
        %p2215 = pneg %p106
      $region42: #{up_conv_forward.3} parent=39 // pred_check_branch
        %2217 = sbr.rel (%p2215) target = $region44
      $region43: #{up_conv_forward.3} parent=39 // pred_region
        %p2218 = scmp.lt.s32.totalorder %s15, 1
        %s2219 = scalar_select %p2218, %s15, 1
        %s2220 = smul.addr %s2219, 12
        %s2221 = smul.addr %s2220, 8
        %s2222 = scalar_lea.vmem %s3, %s2221
      $region44: #{up_conv_forward.3} parent=39 // pred_fallthru
        _
    $region40: #{up_conv_forward.3} parent=5 // pred_fallthru
      _
  $region6: #{up_conv_forward.3} parent=0 // loop_footer
    %s13 = sadd.s32 1, %s9
  $region7: #{up_conv_forward.3} parent=0 // loop_footer_branch
    %8 = sbr.rel target = $region3
  $region8: #{up_conv_forward.3} parent=0 // loop_exit
    _

// kernel: up_conv_forward.2
$region0: #{up_conv_forward.2}
  #allocation0 [shape = 'u32[]', space=smem, size = 0x4, offset = 0x4, fixed_abs, tag = 'smem constant byte address 0x4 - core index']
  #allocation1 [shape = 'u32[144,128]{1,0:T(1,128)}', space=vmem, size = 0x12000, scoped, tag = 'internal scratch']
  %s0 = inlined_call_operand.vmem [shape: f32[2,4,342], index: 0, kind: input, shape index: {}]
  %s1 = inlined_call_operand.vmem [shape: f32[9,32,4], index: 1, kind: input, shape index: {}]
  %s2 = inlined_call_operand.vmem [shape: f32[1,288], index: 2, kind: input, shape index: {}]
  %s3 = inlined_call_operand.vmem [shape: f32[2,32,1], index: 3, kind: output, shape index: {0}]
  %s4 = inlined_call_operand.vmem [shape: f32[2,32,1], index: 4, kind: output, shape index: {1}]
  %5 = xla_tuple %s3, %s4
  %s6 = sld [smem:[#allocation0]]
  $region53: #{up_conv_forward.2} parent=0
    _
  %s8 = ssub.s32 1, %s6
  %s9 = scalar_select 0, %s8, %s6
  loop: start=0, step=1, limit=4
  $region2: #{up_conv_forward.2} parent=0 // loop_pre_header
    _
  $region3: #{up_conv_forward.2} parent=0 // loop_header
    %s11 = sphi 0, %s15
    %p12 = scmp.ge.s32.totalorder %s11, 4
    %s21 = sphi 0, %s23
    %s24 = sphi 0, %s21
    %s25 = sphi 0, %s24
    %s41 = sphi 0, %s25
    %s45 = sphi 0, %s45
    %s47 = sphi 0, %s45
    %s48 = sphi 0, %s47
    %s62 = sphi 0, %s48
    %s66 = sphi 0, %s66
    %s68 = sphi 0, %s66
    %s69 = sphi 0, %s68
    %s83 = sphi 0, %s69
    %s89 = sphi 0, %s91
    %s92 = sphi 0, %s89
    %s93 = sphi 0, %s92
    %s109 = sphi 0, %s93
    %s115 = sphi 0, %s117
    %s118 = sphi 0, %s115
    %s119 = sphi 0, %s118
    %s135 = sphi 0, %s119
  $region4: #{up_conv_forward.2} parent=0 // loop_header_branch
    %14 = sbr.rel (%p12) target = $region8
  $region5: #{up_conv_forward.2} parent=0 // loop_body
    %s16 = ssub.s32 %s11, 1
    %s17 = ssub.s32 %s11, 2
    %s18 = sadd.s32 %s11, 1
    %s19 = ssub.s32 %s11, %s18
    %p20 = scmp.eq.s32.totalorder %s19, 0
    %s22 = sadd.s32 %s21, 1
    %s23 = scalar_select %p20, %s21, %s22
    %p26 = pneg %p20
    %p27 = scmp.eq.s32.totalorder %s11, 1
    %p28 = por %p26, %p27
    %p29 = scmp.ne.s32.totalorder %s21, %s24
    %p30 = scmp.eq.s32.totalorder %s11, 0
    %p31 = por %p29, %p30
    %p32 = scmp.ne.s32.totalorder %s21, %s24
    %p33 = scmp.eq.s32.totalorder %s16, 1
    %p34 = por %p32, %p33
    %p35 = scmp.ne.s32.totalorder %s24, %s25
    %p36 = scmp.eq.s32.totalorder %s16, 0
    %p37 = por %p35, %p36
    %p38 = scmp.ne.s32.totalorder %s24, %s25
    %p39 = scmp.eq.s32.totalorder %s17, 1
    %p40 = por %p38, %p39
    %p42 = scmp.ne.s32.totalorder %s25, %s41
    %p43 = scmp.eq.s32.totalorder %s17, 0
    %p44 = por %p42, %p43
    %s46 = sadd.s32 %s45, 1
    %p49 = scmp.eq.s32.totalorder %s11, 1
    %p50 = scmp.ne.s32.totalorder %s45, %s47
    %p51 = scmp.eq.s32.totalorder %s11, 0
    %p52 = por %p50, %p51
    %p53 = scmp.ne.s32.totalorder %s45, %s47
    %p54 = scmp.eq.s32.totalorder %s16, 1
    %p55 = por %p53, %p54
    %p56 = scmp.ne.s32.totalorder %s47, %s48
    %p57 = scmp.eq.s32.totalorder %s16, 0
    %p58 = por %p56, %p57
    %p59 = scmp.ne.s32.totalorder %s47, %s48
    %p60 = scmp.eq.s32.totalorder %s17, 1
    %p61 = por %p59, %p60
    %p63 = scmp.ne.s32.totalorder %s48, %s62
    %p64 = scmp.eq.s32.totalorder %s17, 0
    %p65 = por %p63, %p64
    %s67 = sadd.s32 %s66, 1
    %p70 = scmp.eq.s32.totalorder %s11, 1
    %p71 = scmp.ne.s32.totalorder %s66, %s68
    %p72 = scmp.eq.s32.totalorder %s11, 0
    %p73 = por %p71, %p72
    %p74 = scmp.ne.s32.totalorder %s66, %s68
    %p75 = scmp.eq.s32.totalorder %s16, 1
    %p76 = por %p74, %p75
    %p77 = scmp.ne.s32.totalorder %s68, %s69
    %p78 = scmp.eq.s32.totalorder %s16, 0
    %p79 = por %p77, %p78
    %p80 = scmp.ne.s32.totalorder %s68, %s69
    %p81 = scmp.eq.s32.totalorder %s17, 1
    %p82 = por %p80, %p81
    %p84 = scmp.ne.s32.totalorder %s69, %s83
    %p85 = scmp.eq.s32.totalorder %s17, 0
    %p86 = por %p84, %p85
    %s87 = ssub.s32 %s11, %s18
    %p88 = scmp.eq.s32.totalorder %s87, 0
    %s90 = sadd.s32 %s89, 1
    %s91 = scalar_select %p88, %s89, %s90
    %p94 = pneg %p88
    %p95 = scmp.eq.s32.totalorder %s11, 1
    %p96 = por %p94, %p95
    %p97 = scmp.ne.s32.totalorder %s89, %s92
    %p98 = scmp.eq.s32.totalorder %s11, 0
    %p99 = por %p97, %p98
    %p100 = scmp.ne.s32.totalorder %s89, %s92
    %p101 = scmp.eq.s32.totalorder %s16, 1
    %p102 = por %p100, %p101
    %p103 = scmp.ne.s32.totalorder %s92, %s93
    %p104 = scmp.eq.s32.totalorder %s16, 0
    %p105 = por %p103, %p104
    %p106 = scmp.ne.s32.totalorder %s92, %s93
    %p107 = scmp.eq.s32.totalorder %s17, 1
    %p108 = por %p106, %p107
    %p110 = scmp.ne.s32.totalorder %s93, %s109
    %p111 = scmp.eq.s32.totalorder %s17, 0
    %p112 = por %p110, %p111
    %s113 = ssub.s32 %s11, %s18
    %p114 = scmp.eq.s32.totalorder %s113, 0
    %s116 = sadd.s32 %s115, 1
    %s117 = scalar_select %p114, %s115, %s116
    %p120 = pneg %p114
    %p121 = scmp.eq.s32.totalorder %s11, 1
    %p122 = por %p120, %p121
    %p123 = scmp.ne.s32.totalorder %s115, %s118
    %p124 = scmp.eq.s32.totalorder %s11, 0
    %p125 = por %p123, %p124
    %p126 = scmp.ne.s32.totalorder %s115, %s118
    %p127 = scmp.eq.s32.totalorder %s16, 1
    %p128 = por %p126, %p127
    %p129 = scmp.ne.s32.totalorder %s118, %s119
    %p130 = scmp.eq.s32.totalorder %s16, 0
    %p131 = por %p129, %p130
    %p132 = scmp.ne.s32.totalorder %s118, %s119
    %p133 = scmp.eq.s32.totalorder %s17, 1
    %p134 = por %p132, %p133
    %p136 = scmp.ne.s32.totalorder %s119, %s135
    %p137 = scmp.eq.s32.totalorder %s17, 0
    %p138 = por %p136, %p137
    %p139 = scmp.le.s32.totalorder 1, %s11
    %p140 = scmp.lt.s32.totalorder %s11, 3
    %p141 = pnand %p139, %p140
    %p142 = pneg %p141
    // Predicated region
    $region9: #{up_conv_forward.2} parent=5 // pred_check
      _
    $region10: #{up_conv_forward.2} parent=5 // pred_check_branch
      %144 = sbr.rel (%p141) target = $region12
    $region11: #{up_conv_forward.2} parent=5 // pred_region
      %s145 = ssub.s32 %s11, 1
      // Predicated region
      $region13: #{up_conv_forward.2} parent=11 // pred_check
        %p146 = pneg %p58
      $region14: #{up_conv_forward.2} parent=11 // pred_check_branch
        %148 = sbr.rel (%p146) target = $region16
      $region15: #{up_conv_forward.2} parent=11 // pred_region
        _
      $region16: #{up_conv_forward.2} parent=11 // pred_fallthru
        _
      // Predicated region
      $region17: #{up_conv_forward.2} parent=11 // pred_check
        %p149 = pneg %p79
      $region18: #{up_conv_forward.2} parent=11 // pred_check_branch
        %151 = sbr.rel (%p149) target = $region20
      $region19: #{up_conv_forward.2} parent=11 // pred_region
        _
      $region20: #{up_conv_forward.2} parent=11 // pred_fallthru
        _
    $region12: #{up_conv_forward.2} parent=5 // pred_fallthru
      _
    %p152 = scmp.lt.s32.totalorder %s11, 2
    // Predicated region
    $region21: #{up_conv_forward.2} parent=5 // pred_check
      %p153 = pneg %p152
    $region22: #{up_conv_forward.2} parent=5 // pred_check_branch
      %155 = sbr.rel (%p153) target = $region24
    $region23: #{up_conv_forward.2} parent=5 // pred_region
      // Predicated region
      $region25: #{up_conv_forward.2} parent=23 // pred_check
        %p156 = pneg %p31
      $region26: #{up_conv_forward.2} parent=23 // pred_check_branch
        %158 = sbr.rel (%p156) target = $region28
      $region27: #{up_conv_forward.2} parent=23 // pred_region
        %p159 = scmp.lt.s32.totalorder %s11, 1
        %s160 = scalar_select %p159, %s11, 1
        %s161 = smul.addr %s160, 3
        %s162 = smul.addr %s161, 4
        %s163 = scalar_lea.vmem %s0, %s162
      $region28: #{up_conv_forward.2} parent=23 // pred_fallthru
        _
    $region24: #{up_conv_forward.2} parent=5 // pred_fallthru
      _
    %p164 = scmp.le.s32.totalorder 1, %s11
    %p165 = scmp.lt.s32.totalorder %s11, 3
    %p166 = pnand %p164, %p165
    %p167 = pneg %p166
    // Predicated region
    $region29: #{up_conv_forward.2} parent=5 // pred_check
      _
    $region30: #{up_conv_forward.2} parent=5 // pred_check_branch
      %169 = sbr.rel (%p166) target = $region32
    $region31: #{up_conv_forward.2} parent=5 // pred_region
      %s170 = ssub.s32 %s11, 1
      %p171 = scmp.lt.s32.totalorder %s16, 1
      %s172 = scalar_select %p171, %s16, 1
      %s173 = smul.addr %s172, 3
      %s174 = smul.addr %s173, 4
      %s175 = scalar_lea.vmem %s0, %s174
      %p176 = pneg %p37
      %p177 = pneg %p34
      %p178 = pneg %p58
      %p179 = pneg %p55
      %p180 = pneg %p79
      %p181 = pneg %p76
      %p182 = pneg %p105
      %p183 = pneg %p102
      %p184 = scmp.lt.s32.totalorder %s16, 1
      %s185 = scalar_select %p184, %s16, 1
      %s186 = smul.addr %s185, 4
      %s187 = smul.addr %s186, 8
      %s188 = scalar_lea.vmem %s3, %s187
      %p189 = pneg %p131
      %p190 = pneg %p128
      %p191 = scmp.lt.s32.totalorder %s16, 1
      %s192 = scalar_select %p191, %s16, 1
      %s193 = smul.addr %s192, 4
      %s194 = smul.addr %s193, 8
      %s195 = scalar_lea.vmem %s4, %s194
      %p196 = scmp.lt.s32.totalorder %s16, 1
      %s197 = scalar_select %p196, %s16, 1
      %s198 = smul.addr %s197, 3
      %s199 = smul.addr %s198, 4
      %s200 = scalar_lea.vmem %s0, %s199
      %p201 = scmp.lt.s32.totalorder %s16, 1
      %s202 = scalar_select %p201, %s16, 1
      %s203 = smul.addr %s202, 4
      %s204 = smul.addr %s203, 8
      %s205 = scalar_lea.vmem %s3, %s204
      %p206 = scmp.lt.s32.totalorder %s16, 1
      %s207 = scalar_select %p206, %s16, 1
      %s208 = smul.addr %s207, 4
      %s209 = smul.addr %s208, 8
      %s210 = scalar_lea.vmem %s4, %s209
      %v211 = vld [vmem:[%s200] sm:$0xff]
      %v212 = vld [vmem:[%s200 + $0x8] sm:$0xf]
      %v213 = vld [vmem:[%s1] sm:$0xff]
      %v214 = vld [vmem:[%s1 + $0x8] sm:$0xff]
      %v215 = vld [vmem:[%s1 + $0x10] sm:$0xff]
      %v216 = vld [vmem:[%s1 + $0x18] sm:$0xff]
      %s217 = scalar_lea.vmem %s1, 32
      %v218 = vld [vmem:[%s217] sm:$0xff]
      %v219 = vld [vmem:[%s217 + $0x8] sm:$0xff]
      %v220 = vld [vmem:[%s217 + $0x10] sm:$0xff]
      %v221 = vld [vmem:[%s217 + $0x18] sm:$0xff]
      %v224 = vcombine.high %v211, %v211
      %225 = vrot.lane.b32.xlu0 %v211, 127
      %v226 = vpop.permute.xlu0 %225
      %227 = vrot.lane.b32.xlu0 %v224, 127
      %v228 = vpop.permute.xlu0 %227
      %229 = vrot.lane.b32.xlu0 %v212, 127
      %v230 = vpop.permute.xlu0 %229
      %vm231 = vcmask 1039360
      %v232 = vsel %vm231, %v226, %v228
      %v233 = vsel %vm231, %v228, %v230
      %vm234 = vcmask 31744
      %v236 = vsel %vm234, %v218, 0
      %v239 = vsel %vm234, %v219, 0
      %v242 = vsel %vm234, %v220, 0
      %v245 = vsel %vm234, %v221, 0
      %vm247 = vcmask 1043456
      %v248 = vsel %vm247, %v232, 0
      %v250 = vsel %vm247, %v233, 0
      %v252 = vsel %vm247, %v230, 0
      %254 = vmatprep.subr.mxu0 0.0
      %255 = vmatpush1.msra.mxu0 0.0
      %256 = vmatprep.subr.mxu0 0.0
      %257 = vmatpush1.msra.mxu0 0.0
      %258 = vmatprep.subr.mxu0 0.0
      %259 = vmatpush1.msra.mxu0 0.0
      %260 = vmatprep.subr.mxu0 0.0
      %261 = vmatpush1.msra.mxu0 0.0
      %262 = vmatprep.subr.mxu0 0.0
      %263 = vmatpush1.msra.mxu0 0.0
      %264 = vmatprep.subr.mxu0 0.0
      %265 = vmatpush1.msra.mxu0 0.0
      %266 = vmatprep.subr.mxu0 0.0
      %267 = vmatpush1.msra.mxu0 0.0
      %268 = vmatprep.subr.mxu0 0.0
      %269 = vmatpush1.msra.mxu0 0.0
      %270 = vmatprep.subr.mxu0 0.0
      %271 = vmatpush1.msra.mxu0 0.0
      %272 = vmatprep.subr.mxu0 0.0
      %273 = vmatpush1.msra.mxu0 0.0
      %274 = vmatprep.subr.mxu0 0.0
      %275 = vmatpush1.msra.mxu0 0.0
      %276 = vmatprep.subr.mxu0 0.0
      %277 = vmatpush1.msra.mxu0 0.0
      %278 = vmatprep.subr.mxu0 0.0
      %279 = vmatpush1.msra.mxu0 0.0
      %280 = vmatprep.subr.mxu0 0.0
      %281 = vmatpush1.msra.mxu0 0.0
      %282 = vmatprep.subr.mxu0 0.0
      %283 = vmatpush1.msra.mxu0 0.0
      %284 = vmatprep.subr.mxu0 %v250
      %285 = vmatpush1.msra.mxu0 %v248
      %286 = vmatprep.subr.mxu0 0.0
      %287 = vmatpush2.msra.mxu0 0.0
      %288 = vmatprep.subr.mxu0 0.0
      %289 = vmatpush2.msra.mxu0 0.0
      %290 = vmatprep.subr.mxu0 0.0
      %291 = vmatpush2.msra.mxu0 0.0
      %292 = vmatprep.subr.mxu0 0.0
      %293 = vmatpush2.msra.mxu0 0.0
      %294 = vmatprep.subr.mxu0 0.0
      %295 = vmatpush2.msra.mxu0 0.0
      %296 = vmatprep.subr.mxu0 0.0
      %297 = vmatpush2.msra.mxu0 0.0
      %298 = vmatprep.subr.mxu0 0.0
      %299 = vmatpush2.msra.mxu0 0.0
      %300 = vmatprep.subr.mxu0 0.0
      %301 = vmatpush2.msra.mxu0 0.0
      %302 = vmatprep.subr.mxu0 0.0
      %303 = vmatpush2.msra.mxu0 0.0
      %304 = vmatprep.subr.mxu0 0.0
      %305 = vmatpush2.msra.mxu0 0.0
      %306 = vmatprep.subr.mxu0 0.0
      %307 = vmatpush2.msra.mxu0 0.0
      %308 = vmatprep.subr.mxu0 0.0
      %309 = vmatpush2.msra.mxu0 0.0
      %310 = vmatprep.subr.mxu0 0.0
      %311 = vmatpush2.msra.mxu0 0.0
      %312 = vmatprep.subr.mxu0 0.0
      %313 = vmatpush2.msra.mxu0 0.0
      %314 = vmatprep.subr.mxu0 0.0
      %315 = vmatpush2.msra.mxu0 0.0
      %316 = vmatprep.subr.mxu0 0.0
      %317 = vmatpush2.msra.mxu0 0.0
      %318 = vmatprep.mubr.f32.mxu0 0.0
      %319 = vmatmul.mubr.f32.gmra.mxu0 %v236
      %v320 = vpop.f32.mrf.mxu0
      %v321 = vadd.f32 0.0, %v320
      %v322 = vpop.f32.mrf.mxu0
      %v323 = vadd.f32 0.0, %v322
      %324 = vmatprep.mubr.f32.mxu0 0.0
      %325 = vmatmul.mubr.f32.gmra.mxu0 %v239
      %v326 = vpop.f32.mrf.mxu0
      %v327 = vadd.f32 0.0, %v326
      %v328 = vpop.f32.mrf.mxu0
      %v329 = vadd.f32 0.0, %v328
      %330 = vmatprep.mubr.f32.mxu0 0.0
      %331 = vmatmul.mubr.f32.gmra.mxu0 %v242
      %v332 = vpop.f32.mrf.mxu0
      %v333 = vadd.f32 0.0, %v332
      %v334 = vpop.f32.mrf.mxu0
      %v335 = vadd.f32 0.0, %v334
      %336 = vmatprep.mubr.f32.mxu0 0.0
      %337 = vmatmul.mubr.f32.gmra.mxu0 %v245
      %v338 = vpop.f32.mrf.mxu0
      %v339 = vadd.f32 0.0, %v338
      %v340 = vpop.f32.mrf.mxu0
      %v341 = vadd.f32 0.0, %v340
      %342 = vdwg.mxu0
      %343 = vmatprep.subr.mxu0 0.0
      %344 = vmatpush1.msra.mxu0 0.0
      %345 = vmatprep.subr.mxu0 0.0
      %346 = vmatpush1.msra.mxu0 0.0
      %347 = vmatprep.subr.mxu0 0.0
      %348 = vmatpush1.msra.mxu0 0.0
      %349 = vmatprep.subr.mxu0 0.0
      %350 = vmatpush1.msra.mxu0 0.0
      %351 = vmatprep.subr.mxu0 0.0
      %352 = vmatpush1.msra.mxu0 0.0
      %353 = vmatprep.subr.mxu0 0.0
      %354 = vmatpush1.msra.mxu0 0.0
      %355 = vmatprep.subr.mxu0 0.0
      %356 = vmatpush1.msra.mxu0 0.0
      %357 = vmatprep.subr.mxu0 0.0
      %358 = vmatpush1.msra.mxu0 0.0
      %359 = vmatprep.subr.mxu0 0.0
      %360 = vmatpush1.msra.mxu0 0.0
      %361 = vmatprep.subr.mxu0 0.0
      %362 = vmatpush1.msra.mxu0 0.0
      %363 = vmatprep.subr.mxu0 0.0
      %364 = vmatpush1.msra.mxu0 0.0
      %365 = vmatprep.subr.mxu0 0.0
      %366 = vmatpush1.msra.mxu0 0.0
      %367 = vmatprep.subr.mxu0 0.0
      %368 = vmatpush1.msra.mxu0 0.0
      %369 = vmatprep.subr.mxu0 0.0
      %370 = vmatpush1.msra.mxu0 0.0
      %371 = vmatprep.subr.mxu0 0.0
      %372 = vmatpush1.msra.mxu0 0.0
      %373 = vmatprep.subr.mxu0 0.0
      %374 = vmatpush1.msra.mxu0 %v252
      %375 = vmatprep.subr.mxu0 0.0
      %376 = vmatpush2.msra.mxu0 0.0
      %377 = vmatprep.subr.mxu0 0.0
      %378 = vmatpush2.msra.mxu0 0.0
      %379 = vmatprep.subr.mxu0 0.0
      %380 = vmatpush2.msra.mxu0 0.0
      %381 = vmatprep.subr.mxu0 0.0
      %382 = vmatpush2.msra.mxu0 0.0
      %383 = vmatprep.subr.mxu0 0.0
      %384 = vmatpush2.msra.mxu0 0.0
      %385 = vmatprep.subr.mxu0 0.0
      %386 = vmatpush2.msra.mxu0 0.0
      %387 = vmatprep.subr.mxu0 0.0
      %388 = vmatpush2.msra.mxu0 0.0
      %389 = vmatprep.subr.mxu0 0.0
      %390 = vmatpush2.msra.mxu0 0.0
      %391 = vmatprep.subr.mxu0 0.0
      %392 = vmatpush2.msra.mxu0 0.0
      %393 = vmatprep.subr.mxu0 0.0
      %394 = vmatpush2.msra.mxu0 0.0
      %395 = vmatprep.subr.mxu0 0.0
      %396 = vmatpush2.msra.mxu0 0.0
      %397 = vmatprep.subr.mxu0 0.0
      %398 = vmatpush2.msra.mxu0 0.0
      %399 = vmatprep.subr.mxu0 0.0
      %400 = vmatpush2.msra.mxu0 0.0
      %401 = vmatprep.subr.mxu0 0.0
      %402 = vmatpush2.msra.mxu0 0.0
      %403 = vmatprep.subr.mxu0 0.0
      %404 = vmatpush2.msra.mxu0 0.0
      %405 = vmatprep.subr.mxu0 0.0
      %406 = vmatpush2.msra.mxu0 0.0
      %407 = vmatprep.mubr.f32.mxu0 0.0
      %408 = vmatmul.mubr.f32.gmra.mxu0 %v236
      %v409 = vpop.f32.mrf.mxu0
      %v410 = vadd.f32 0.0, %v409
      %v411 = vpop.f32.mrf.mxu0
      %412 = vmatprep.mubr.f32.mxu0 0.0
      %413 = vmatmul.mubr.f32.gmra.mxu0 %v239
      %v414 = vpop.f32.mrf.mxu0
      %v415 = vadd.f32 0.0, %v414
      %v416 = vpop.f32.mrf.mxu0
      %417 = vmatprep.mubr.f32.mxu0 0.0
      %418 = vmatmul.mubr.f32.gmra.mxu0 %v242
      %v419 = vpop.f32.mrf.mxu0
      %v420 = vadd.f32 0.0, %v419
      %v421 = vpop.f32.mrf.mxu0
      %422 = vmatprep.mubr.f32.mxu0 0.0
      %423 = vmatmul.mubr.f32.gmra.mxu0 %v245
      %v424 = vpop.f32.mrf.mxu0
      %v425 = vadd.f32 0.0, %v424
      %v426 = vpop.f32.mrf.mxu0
      %427 = vdwg.mxu0
      %v429 = vsel %vm234, %v213, 0
      %v432 = vsel %vm234, %v214, 0
      %v435 = vsel %vm234, %v215, 0
      %v438 = vsel %vm234, %v216, 0
      %v440 = vsel %vm247, %v211, 0
      %v442 = vsel %vm247, %v224, 0
      %v444 = vsel %vm247, %v212, 0
      %446 = vmatprep.subr.mxu0 0.0
      %447 = vmatpush1.msra.mxu0 0.0
      %448 = vmatprep.subr.mxu0 0.0
      %449 = vmatpush1.msra.mxu0 0.0
      %450 = vmatprep.subr.mxu0 0.0
      %451 = vmatpush1.msra.mxu0 0.0
      %452 = vmatprep.subr.mxu0 0.0
      %453 = vmatpush1.msra.mxu0 0.0
      %454 = vmatprep.subr.mxu0 0.0
      %455 = vmatpush1.msra.mxu0 0.0
      %456 = vmatprep.subr.mxu0 0.0
      %457 = vmatpush1.msra.mxu0 0.0
      %458 = vmatprep.subr.mxu0 0.0
      %459 = vmatpush1.msra.mxu0 0.0
      %460 = vmatprep.subr.mxu0 0.0
      %461 = vmatpush1.msra.mxu0 0.0
      %462 = vmatprep.subr.mxu0 0.0
      %463 = vmatpush1.msra.mxu0 0.0
      %464 = vmatprep.subr.mxu0 0.0
      %465 = vmatpush1.msra.mxu0 0.0
      %466 = vmatprep.subr.mxu0 0.0
      %467 = vmatpush1.msra.mxu0 0.0
      %468 = vmatprep.subr.mxu0 0.0
      %469 = vmatpush1.msra.mxu0 0.0
      %470 = vmatprep.subr.mxu0 0.0
      %471 = vmatpush1.msra.mxu0 0.0
      %472 = vmatprep.subr.mxu0 0.0
      %473 = vmatpush1.msra.mxu0 0.0
      %474 = vmatprep.subr.mxu0 0.0
      %475 = vmatpush1.msra.mxu0 0.0
      %476 = vmatprep.subr.mxu0 %v442
      %477 = vmatpush1.msra.mxu0 %v440
      %478 = vmatprep.subr.mxu0 0.0
      %479 = vmatpush2.msra.mxu0 0.0
      %480 = vmatprep.subr.mxu0 0.0
      %481 = vmatpush2.msra.mxu0 0.0
      %482 = vmatprep.subr.mxu0 0.0
      %483 = vmatpush2.msra.mxu0 0.0
      %484 = vmatprep.subr.mxu0 0.0
      %485 = vmatpush2.msra.mxu0 0.0
      %486 = vmatprep.subr.mxu0 0.0
      %487 = vmatpush2.msra.mxu0 0.0
      %488 = vmatprep.subr.mxu0 0.0
      %489 = vmatpush2.msra.mxu0 0.0
      %490 = vmatprep.subr.mxu0 0.0
      %491 = vmatpush2.msra.mxu0 0.0
      %492 = vmatprep.subr.mxu0 0.0
      %493 = vmatpush2.msra.mxu0 0.0
      %494 = vmatprep.subr.mxu0 0.0
      %495 = vmatpush2.msra.mxu0 0.0
      %496 = vmatprep.subr.mxu0 0.0
      %497 = vmatpush2.msra.mxu0 0.0
      %498 = vmatprep.subr.mxu0 0.0
      %499 = vmatpush2.msra.mxu0 0.0
      %500 = vmatprep.subr.mxu0 0.0
      %501 = vmatpush2.msra.mxu0 0.0
      %502 = vmatprep.subr.mxu0 0.0
      %503 = vmatpush2.msra.mxu0 0.0
      %504 = vmatprep.subr.mxu0 0.0
      %505 = vmatpush2.msra.mxu0 0.0
      %506 = vmatprep.subr.mxu0 0.0
      %507 = vmatpush2.msra.mxu0 0.0
      %508 = vmatprep.subr.mxu0 0.0
      %509 = vmatpush2.msra.mxu0 0.0
      %510 = vmatprep.mubr.f32.mxu0 0.0
      %511 = vmatmul.mubr.f32.gmra.mxu0 %v429
      %v512 = vpop.f32.mrf.mxu0
      %v513 = vadd.f32 %v321, %v512
      %v514 = vpop.f32.mrf.mxu0
      %v515 = vadd.f32 %v323, %v514
      %516 = vmatprep.mubr.f32.mxu0 0.0
      %517 = vmatmul.mubr.f32.gmra.mxu0 %v432
      %v518 = vpop.f32.mrf.mxu0
      %v519 = vadd.f32 %v327, %v518
      %v520 = vpop.f32.mrf.mxu0
      %v521 = vadd.f32 %v329, %v520
      %522 = vmatprep.mubr.f32.mxu0 0.0
      %523 = vmatmul.mubr.f32.gmra.mxu0 %v435
      %v524 = vpop.f32.mrf.mxu0
      %v525 = vadd.f32 %v333, %v524
      %v526 = vpop.f32.mrf.mxu0
      %v527 = vadd.f32 %v335, %v526
      %528 = vmatprep.mubr.f32.mxu0 0.0
      %529 = vmatmul.mubr.f32.gmra.mxu0 %v438
      %v530 = vpop.f32.mrf.mxu0
      %v531 = vadd.f32 %v339, %v530
      %v532 = vpop.f32.mrf.mxu0
      %v533 = vadd.f32 %v341, %v532
      %534 = vdwg.mxu0
      %535 = vmatprep.subr.mxu0 0.0
      %536 = vmatpush1.msra.mxu0 0.0
      %537 = vmatprep.subr.mxu0 0.0
      %538 = vmatpush1.msra.mxu0 0.0
      %539 = vmatprep.subr.mxu0 0.0
      %540 = vmatpush1.msra.mxu0 0.0
      %541 = vmatprep.subr.mxu0 0.0
      %542 = vmatpush1.msra.mxu0 0.0
      %543 = vmatprep.subr.mxu0 0.0
      %544 = vmatpush1.msra.mxu0 0.0
      %545 = vmatprep.subr.mxu0 0.0
      %546 = vmatpush1.msra.mxu0 0.0
      %547 = vmatprep.subr.mxu0 0.0
      %548 = vmatpush1.msra.mxu0 0.0
      %549 = vmatprep.subr.mxu0 0.0
      %550 = vmatpush1.msra.mxu0 0.0
      %551 = vmatprep.subr.mxu0 0.0
      %552 = vmatpush1.msra.mxu0 0.0
      %553 = vmatprep.subr.mxu0 0.0
      %554 = vmatpush1.msra.mxu0 0.0
      %555 = vmatprep.subr.mxu0 0.0
      %556 = vmatpush1.msra.mxu0 0.0
      %557 = vmatprep.subr.mxu0 0.0
      %558 = vmatpush1.msra.mxu0 0.0
      %559 = vmatprep.subr.mxu0 0.0
      %560 = vmatpush1.msra.mxu0 0.0
      %561 = vmatprep.subr.mxu0 0.0
      %562 = vmatpush1.msra.mxu0 0.0
      %563 = vmatprep.subr.mxu0 0.0
      %564 = vmatpush1.msra.mxu0 0.0
      %565 = vmatprep.subr.mxu0 0.0
      %566 = vmatpush1.msra.mxu0 %v444
      %567 = vmatprep.subr.mxu0 0.0
      %568 = vmatpush2.msra.mxu0 0.0
      %569 = vmatprep.subr.mxu0 0.0
      %570 = vmatpush2.msra.mxu0 0.0
      %571 = vmatprep.subr.mxu0 0.0
      %572 = vmatpush2.msra.mxu0 0.0
      %573 = vmatprep.subr.mxu0 0.0
      %574 = vmatpush2.msra.mxu0 0.0
      %575 = vmatprep.subr.mxu0 0.0
      %576 = vmatpush2.msra.mxu0 0.0
      %577 = vmatprep.subr.mxu0 0.0
      %578 = vmatpush2.msra.mxu0 0.0
      %579 = vmatprep.subr.mxu0 0.0
      %580 = vmatpush2.msra.mxu0 0.0
      %581 = vmatprep.subr.mxu0 0.0
      %582 = vmatpush2.msra.mxu0 0.0
      %583 = vmatprep.subr.mxu0 0.0
      %584 = vmatpush2.msra.mxu0 0.0
      %585 = vmatprep.subr.mxu0 0.0
      %586 = vmatpush2.msra.mxu0 0.0
      %587 = vmatprep.subr.mxu0 0.0
      %588 = vmatpush2.msra.mxu0 0.0
      %589 = vmatprep.subr.mxu0 0.0
      %590 = vmatpush2.msra.mxu0 0.0
      %591 = vmatprep.subr.mxu0 0.0
      %592 = vmatpush2.msra.mxu0 0.0
      %593 = vmatprep.subr.mxu0 0.0
      %594 = vmatpush2.msra.mxu0 0.0
      %595 = vmatprep.subr.mxu0 0.0
      %596 = vmatpush2.msra.mxu0 0.0
      %597 = vmatprep.subr.mxu0 0.0
      %598 = vmatpush2.msra.mxu0 0.0
      %599 = vmatprep.mubr.f32.mxu0 0.0
      %600 = vmatmul.mubr.f32.gmra.mxu0 %v429
      %v601 = vpop.f32.mrf.mxu0
      %v602 = vadd.f32 %v410, %v601
      %v603 = vpop.f32.mrf.mxu0
      %604 = vmatprep.mubr.f32.mxu0 0.0
      %605 = vmatmul.mubr.f32.gmra.mxu0 %v432
      %v606 = vpop.f32.mrf.mxu0
      %v607 = vadd.f32 %v415, %v606
      %v608 = vpop.f32.mrf.mxu0
      %609 = vmatprep.mubr.f32.mxu0 0.0
      %610 = vmatmul.mubr.f32.gmra.mxu0 %v435
      %v611 = vpop.f32.mrf.mxu0
      %v612 = vadd.f32 %v420, %v611
      %v613 = vpop.f32.mrf.mxu0
      %614 = vmatprep.mubr.f32.mxu0 0.0
      %615 = vmatmul.mubr.f32.gmra.mxu0 %v438
      %v616 = vpop.f32.mrf.mxu0
      %v617 = vadd.f32 %v425, %v616
      %v618 = vpop.f32.mrf.mxu0
      %619 = vdwg.mxu0
      %v620 = vld [vmem:[%s200] sm:$0xff]
      %v621 = vld [vmem:[%s200 + $0x8] sm:$0xf]
      %s622 = scalar_lea.vmem %s1, 64
      %v623 = vld [vmem:[%s622] sm:$0xff]
      %v624 = vld [vmem:[%s622 + $0x8] sm:$0xff]
      %v625 = vld [vmem:[%s622 + $0x10] sm:$0xff]
      %v626 = vld [vmem:[%s622 + $0x18] sm:$0xff]
      %v629 = vcombine.high %v620, %v620
      %630 = vrot.lane.b32.xlu0 %v620, 126
      %v631 = vpop.permute.xlu0 %630
      %632 = vrot.lane.b32.xlu0 %v629, 126
      %v633 = vpop.permute.xlu0 %632
      %634 = vrot.lane.b32.xlu0 %v621, 126
      %v635 = vpop.permute.xlu0 %634
      %vm636 = vcmask 1031168
      %v637 = vsel %vm636, %v631, %v633
      %v638 = vsel %vm636, %v633, %v635
      %v640 = vsel %vm234, %v623, 0
      %v643 = vsel %vm234, %v624, 0
      %v646 = vsel %vm234, %v625, 0
      %v649 = vsel %vm234, %v626, 0
      %v651 = vsel %vm247, %v637, 0
      %v653 = vsel %vm247, %v638, 0
      %v655 = vsel %vm247, %v635, 0
      %657 = vmatprep.subr.mxu0 0.0
      %658 = vmatpush1.msra.mxu0 0.0
      %659 = vmatprep.subr.mxu0 0.0
      %660 = vmatpush1.msra.mxu0 0.0
      %661 = vmatprep.subr.mxu0 0.0
      %662 = vmatpush1.msra.mxu0 0.0
      %663 = vmatprep.subr.mxu0 0.0
      %664 = vmatpush1.msra.mxu0 0.0
      %665 = vmatprep.subr.mxu0 0.0
      %666 = vmatpush1.msra.mxu0 0.0
      %667 = vmatprep.subr.mxu0 0.0
      %668 = vmatpush1.msra.mxu0 0.0
      %669 = vmatprep.subr.mxu0 0.0
      %670 = vmatpush1.msra.mxu0 0.0
      %671 = vmatprep.subr.mxu0 0.0
      %672 = vmatpush1.msra.mxu0 0.0
      %673 = vmatprep.subr.mxu0 0.0
      %674 = vmatpush1.msra.mxu0 0.0
      %675 = vmatprep.subr.mxu0 0.0
      %676 = vmatpush1.msra.mxu0 0.0
      %677 = vmatprep.subr.mxu0 0.0
      %678 = vmatpush1.msra.mxu0 0.0
      %679 = vmatprep.subr.mxu0 0.0
      %680 = vmatpush1.msra.mxu0 0.0
      %681 = vmatprep.subr.mxu0 0.0
      %682 = vmatpush1.msra.mxu0 0.0
      %683 = vmatprep.subr.mxu0 0.0
      %684 = vmatpush1.msra.mxu0 0.0
      %685 = vmatprep.subr.mxu0 0.0
      %686 = vmatpush1.msra.mxu0 0.0
      %687 = vmatprep.subr.mxu0 %v653
      %688 = vmatpush1.msra.mxu0 %v651
      %689 = vmatprep.subr.mxu0 0.0
      %690 = vmatpush2.msra.mxu0 0.0
      %691 = vmatprep.subr.mxu0 0.0
      %692 = vmatpush2.msra.mxu0 0.0
      %693 = vmatprep.subr.mxu0 0.0
      %694 = vmatpush2.msra.mxu0 0.0
      %695 = vmatprep.subr.mxu0 0.0
      %696 = vmatpush2.msra.mxu0 0.0
      %697 = vmatprep.subr.mxu0 0.0
      %698 = vmatpush2.msra.mxu0 0.0
      %699 = vmatprep.subr.mxu0 0.0
      %700 = vmatpush2.msra.mxu0 0.0
      %701 = vmatprep.subr.mxu0 0.0
      %702 = vmatpush2.msra.mxu0 0.0
      %703 = vmatprep.subr.mxu0 0.0
      %704 = vmatpush2.msra.mxu0 0.0
      %705 = vmatprep.subr.mxu0 0.0
      %706 = vmatpush2.msra.mxu0 0.0
      %707 = vmatprep.subr.mxu0 0.0
      %708 = vmatpush2.msra.mxu0 0.0
      %709 = vmatprep.subr.mxu0 0.0
      %710 = vmatpush2.msra.mxu0 0.0
      %711 = vmatprep.subr.mxu0 0.0
      %712 = vmatpush2.msra.mxu0 0.0
      %713 = vmatprep.subr.mxu0 0.0
      %714 = vmatpush2.msra.mxu0 0.0
      %715 = vmatprep.subr.mxu0 0.0
      %716 = vmatpush2.msra.mxu0 0.0
      %717 = vmatprep.subr.mxu0 0.0
      %718 = vmatpush2.msra.mxu0 0.0
      %719 = vmatprep.subr.mxu0 0.0
      %720 = vmatpush2.msra.mxu0 0.0
      %721 = vmatprep.mubr.f32.mxu0 0.0
      %722 = vmatmul.mubr.f32.gmra.mxu0 %v640
      %v723 = vpop.f32.mrf.mxu0
      %v724 = vadd.f32 0.0, %v723
      %v725 = vpop.f32.mrf.mxu0
      %v726 = vadd.f32 0.0, %v725
      %727 = vmatprep.mubr.f32.mxu0 0.0
      %728 = vmatmul.mubr.f32.gmra.mxu0 %v643
      %v729 = vpop.f32.mrf.mxu0
      %v730 = vadd.f32 0.0, %v729
      %v731 = vpop.f32.mrf.mxu0
      %v732 = vadd.f32 0.0, %v731
      %733 = vmatprep.mubr.f32.mxu0 0.0
      %734 = vmatmul.mubr.f32.gmra.mxu0 %v646
      %v735 = vpop.f32.mrf.mxu0
      %v736 = vadd.f32 0.0, %v735
      %v737 = vpop.f32.mrf.mxu0
      %v738 = vadd.f32 0.0, %v737
      %739 = vmatprep.mubr.f32.mxu0 0.0
      %740 = vmatmul.mubr.f32.gmra.mxu0 %v649
      %v741 = vpop.f32.mrf.mxu0
      %v742 = vadd.f32 0.0, %v741
      %v743 = vpop.f32.mrf.mxu0
      %v744 = vadd.f32 0.0, %v743
      %745 = vdwg.mxu0
      %746 = vmatprep.subr.mxu0 0.0
      %747 = vmatpush1.msra.mxu0 0.0
      %748 = vmatprep.subr.mxu0 0.0
      %749 = vmatpush1.msra.mxu0 0.0
      %750 = vmatprep.subr.mxu0 0.0
      %751 = vmatpush1.msra.mxu0 0.0
      %752 = vmatprep.subr.mxu0 0.0
      %753 = vmatpush1.msra.mxu0 0.0
      %754 = vmatprep.subr.mxu0 0.0
      %755 = vmatpush1.msra.mxu0 0.0
      %756 = vmatprep.subr.mxu0 0.0
      %757 = vmatpush1.msra.mxu0 0.0
      %758 = vmatprep.subr.mxu0 0.0
      %759 = vmatpush1.msra.mxu0 0.0
      %760 = vmatprep.subr.mxu0 0.0
      %761 = vmatpush1.msra.mxu0 0.0
      %762 = vmatprep.subr.mxu0 0.0
      %763 = vmatpush1.msra.mxu0 0.0
      %764 = vmatprep.subr.mxu0 0.0
      %765 = vmatpush1.msra.mxu0 0.0
      %766 = vmatprep.subr.mxu0 0.0
      %767 = vmatpush1.msra.mxu0 0.0
      %768 = vmatprep.subr.mxu0 0.0
      %769 = vmatpush1.msra.mxu0 0.0
      %770 = vmatprep.subr.mxu0 0.0
      %771 = vmatpush1.msra.mxu0 0.0
      %772 = vmatprep.subr.mxu0 0.0
      %773 = vmatpush1.msra.mxu0 0.0
      %774 = vmatprep.subr.mxu0 0.0
      %775 = vmatpush1.msra.mxu0 0.0
      %776 = vmatprep.subr.mxu0 0.0
      %777 = vmatpush1.msra.mxu0 %v655
      %778 = vmatprep.subr.mxu0 0.0
      %779 = vmatpush2.msra.mxu0 0.0
      %780 = vmatprep.subr.mxu0 0.0
      %781 = vmatpush2.msra.mxu0 0.0
      %782 = vmatprep.subr.mxu0 0.0
      %783 = vmatpush2.msra.mxu0 0.0
      %784 = vmatprep.subr.mxu0 0.0
      %785 = vmatpush2.msra.mxu0 0.0
      %786 = vmatprep.subr.mxu0 0.0
      %787 = vmatpush2.msra.mxu0 0.0
      %788 = vmatprep.subr.mxu0 0.0
      %789 = vmatpush2.msra.mxu0 0.0
      %790 = vmatprep.subr.mxu0 0.0
      %791 = vmatpush2.msra.mxu0 0.0
      %792 = vmatprep.subr.mxu0 0.0
      %793 = vmatpush2.msra.mxu0 0.0
      %794 = vmatprep.subr.mxu0 0.0
      %795 = vmatpush2.msra.mxu0 0.0
      %796 = vmatprep.subr.mxu0 0.0
      %797 = vmatpush2.msra.mxu0 0.0
      %798 = vmatprep.subr.mxu0 0.0
      %799 = vmatpush2.msra.mxu0 0.0
      %800 = vmatprep.subr.mxu0 0.0
      %801 = vmatpush2.msra.mxu0 0.0
      %802 = vmatprep.subr.mxu0 0.0
      %803 = vmatpush2.msra.mxu0 0.0
      %804 = vmatprep.subr.mxu0 0.0
      %805 = vmatpush2.msra.mxu0 0.0
      %806 = vmatprep.subr.mxu0 0.0
      %807 = vmatpush2.msra.mxu0 0.0
      %808 = vmatprep.subr.mxu0 0.0
      %809 = vmatpush2.msra.mxu0 0.0
      %810 = vmatprep.mubr.f32.mxu0 0.0
      %811 = vmatmul.mubr.f32.gmra.mxu0 %v640
      %v812 = vpop.f32.mrf.mxu0
      %v813 = vadd.f32 0.0, %v812
      %v814 = vpop.f32.mrf.mxu0
      %815 = vmatprep.mubr.f32.mxu0 0.0
      %816 = vmatmul.mubr.f32.gmra.mxu0 %v643
      %v817 = vpop.f32.mrf.mxu0
      %v818 = vadd.f32 0.0, %v817
      %v819 = vpop.f32.mrf.mxu0
      %820 = vmatprep.mubr.f32.mxu0 0.0
      %821 = vmatmul.mubr.f32.gmra.mxu0 %v646
      %v822 = vpop.f32.mrf.mxu0
      %v823 = vadd.f32 0.0, %v822
      %v824 = vpop.f32.mrf.mxu0
      %825 = vmatprep.mubr.f32.mxu0 0.0
      %826 = vmatmul.mubr.f32.gmra.mxu0 %v649
      %v827 = vpop.f32.mrf.mxu0
      %v828 = vadd.f32 0.0, %v827
      %v829 = vpop.f32.mrf.mxu0
      %830 = vdwg.mxu0
      %v831 = vadd.f32 %v513, %v724
      %v832 = vadd.f32 %v515, %v726
      %v833 = vadd.f32 %v602, %v813
      %v834 = vadd.f32 %v519, %v730
      %v835 = vadd.f32 %v521, %v732
      %v836 = vadd.f32 %v607, %v818
      %v837 = vadd.f32 %v525, %v736
      %v838 = vadd.f32 %v527, %v738
      %v839 = vadd.f32 %v612, %v823
      %v840 = vadd.f32 %v531, %v742
      %v841 = vadd.f32 %v533, %v744
      %v842 = vadd.f32 %v617, %v828
      %v843 = vld [vmem:[%s200] sm:$0xff]
      %v844 = vld [vmem:[%s200 + $0x8] sm:$0xf]
      %s845 = scalar_lea.vmem %s1, 96
      %v846 = vld [vmem:[%s845] sm:$0xff]
      %v847 = vld [vmem:[%s845 + $0x8] sm:$0xff]
      %v848 = vld [vmem:[%s845 + $0x10] sm:$0xff]
      %v849 = vld [vmem:[%s845 + $0x18] sm:$0xff]
      %v852 = vcombine.high %v843, %v843
      %853 = vrot.lane.b32.xlu0 %v843, 110
      %v854 = vpop.permute.xlu0 %853
      %855 = vrot.lane.b32.xlu0 %v852, 110
      %v856 = vpop.permute.xlu0 %855
      %857 = vrot.lane.b32.xlu0 %v844, 110
      %v858 = vpop.permute.xlu0 %857
      %vm859 = vcmask 900096
      %v860 = vsel %vm859, %v854, %v856
      %v861 = vsel %vm859, %v856, %v858
      %v863 = vsel %vm234, %v846, 0
      %v866 = vsel %vm234, %v847, 0
      %v869 = vsel %vm234, %v848, 0
      %v872 = vsel %vm234, %v849, 0
      %v874 = vsel %vm247, %v860, 0
      %v876 = vsel %vm247, %v861, 0
      %v878 = vsel %vm247, %v858, 0
      %880 = vmatprep.subr.mxu0 0.0
      %881 = vmatpush1.msra.mxu0 0.0
      %882 = vmatprep.subr.mxu0 0.0
      %883 = vmatpush1.msra.mxu0 0.0
      %884 = vmatprep.subr.mxu0 0.0
      %885 = vmatpush1.msra.mxu0 0.0
      %886 = vmatprep.subr.mxu0 0.0
      %887 = vmatpush1.msra.mxu0 0.0
      %888 = vmatprep.subr.mxu0 0.0
      %889 = vmatpush1.msra.mxu0 0.0
      %890 = vmatprep.subr.mxu0 0.0
      %891 = vmatpush1.msra.mxu0 0.0
      %892 = vmatprep.subr.mxu0 0.0
      %893 = vmatpush1.msra.mxu0 0.0
      %894 = vmatprep.subr.mxu0 0.0
      %895 = vmatpush1.msra.mxu0 0.0
      %896 = vmatprep.subr.mxu0 0.0
      %897 = vmatpush1.msra.mxu0 0.0
      %898 = vmatprep.subr.mxu0 0.0
      %899 = vmatpush1.msra.mxu0 0.0
      %900 = vmatprep.subr.mxu0 0.0
      %901 = vmatpush1.msra.mxu0 0.0
      %902 = vmatprep.subr.mxu0 0.0
      %903 = vmatpush1.msra.mxu0 0.0
      %904 = vmatprep.subr.mxu0 0.0
      %905 = vmatpush1.msra.mxu0 0.0
      %906 = vmatprep.subr.mxu0 0.0
      %907 = vmatpush1.msra.mxu0 0.0
      %908 = vmatprep.subr.mxu0 0.0
      %909 = vmatpush1.msra.mxu0 0.0
      %910 = vmatprep.subr.mxu0 %v876
      %911 = vmatpush1.msra.mxu0 %v874
      %912 = vmatprep.subr.mxu0 0.0
      %913 = vmatpush2.msra.mxu0 0.0
      %914 = vmatprep.subr.mxu0 0.0
      %915 = vmatpush2.msra.mxu0 0.0
      %916 = vmatprep.subr.mxu0 0.0
      %917 = vmatpush2.msra.mxu0 0.0
      %918 = vmatprep.subr.mxu0 0.0
      %919 = vmatpush2.msra.mxu0 0.0
      %920 = vmatprep.subr.mxu0 0.0
      %921 = vmatpush2.msra.mxu0 0.0
      %922 = vmatprep.subr.mxu0 0.0
      %923 = vmatpush2.msra.mxu0 0.0
      %924 = vmatprep.subr.mxu0 0.0
      %925 = vmatpush2.msra.mxu0 0.0
      %926 = vmatprep.subr.mxu0 0.0
      %927 = vmatpush2.msra.mxu0 0.0
      %928 = vmatprep.subr.mxu0 0.0
      %929 = vmatpush2.msra.mxu0 0.0
      %930 = vmatprep.subr.mxu0 0.0
      %931 = vmatpush2.msra.mxu0 0.0
      %932 = vmatprep.subr.mxu0 0.0
      %933 = vmatpush2.msra.mxu0 0.0
      %934 = vmatprep.subr.mxu0 0.0
      %935 = vmatpush2.msra.mxu0 0.0
      %936 = vmatprep.subr.mxu0 0.0
      %937 = vmatpush2.msra.mxu0 0.0
      %938 = vmatprep.subr.mxu0 0.0
      %939 = vmatpush2.msra.mxu0 0.0
      %940 = vmatprep.subr.mxu0 0.0
      %941 = vmatpush2.msra.mxu0 0.0
      %942 = vmatprep.subr.mxu0 0.0
      %943 = vmatpush2.msra.mxu0 0.0
      %944 = vmatprep.mubr.f32.mxu0 0.0
      %945 = vmatmul.mubr.f32.gmra.mxu0 %v863
      %v946 = vpop.f32.mrf.mxu0
      %v947 = vadd.f32 0.0, %v946
      %v948 = vpop.f32.mrf.mxu0
      %v949 = vadd.f32 0.0, %v948
      %950 = vmatprep.mubr.f32.mxu0 0.0
      %951 = vmatmul.mubr.f32.gmra.mxu0 %v866
      %v952 = vpop.f32.mrf.mxu0
      %v953 = vadd.f32 0.0, %v952
      %v954 = vpop.f32.mrf.mxu0
      %v955 = vadd.f32 0.0, %v954
      %956 = vmatprep.mubr.f32.mxu0 0.0
      %957 = vmatmul.mubr.f32.gmra.mxu0 %v869
      %v958 = vpop.f32.mrf.mxu0
      %v959 = vadd.f32 0.0, %v958
      %v960 = vpop.f32.mrf.mxu0
      %v961 = vadd.f32 0.0, %v960
      %962 = vmatprep.mubr.f32.mxu0 0.0
      %963 = vmatmul.mubr.f32.gmra.mxu0 %v872
      %v964 = vpop.f32.mrf.mxu0
      %v965 = vadd.f32 0.0, %v964
      %v966 = vpop.f32.mrf.mxu0
      %v967 = vadd.f32 0.0, %v966
      %968 = vdwg.mxu0
      %969 = vmatprep.subr.mxu0 0.0
      %970 = vmatpush1.msra.mxu0 0.0
      %971 = vmatprep.subr.mxu0 0.0
      %972 = vmatpush1.msra.mxu0 0.0
      %973 = vmatprep.subr.mxu0 0.0
      %974 = vmatpush1.msra.mxu0 0.0
      %975 = vmatprep.subr.mxu0 0.0
      %976 = vmatpush1.msra.mxu0 0.0
      %977 = vmatprep.subr.mxu0 0.0
      %978 = vmatpush1.msra.mxu0 0.0
      %979 = vmatprep.subr.mxu0 0.0
      %980 = vmatpush1.msra.mxu0 0.0
      %981 = vmatprep.subr.mxu0 0.0
      %982 = vmatpush1.msra.mxu0 0.0
      %983 = vmatprep.subr.mxu0 0.0
      %984 = vmatpush1.msra.mxu0 0.0
      %985 = vmatprep.subr.mxu0 0.0
      %986 = vmatpush1.msra.mxu0 0.0
      %987 = vmatprep.subr.mxu0 0.0
      %988 = vmatpush1.msra.mxu0 0.0
      %989 = vmatprep.subr.mxu0 0.0
      %990 = vmatpush1.msra.mxu0 0.0
      %991 = vmatprep.subr.mxu0 0.0
      %992 = vmatpush1.msra.mxu0 0.0
      %993 = vmatprep.subr.mxu0 0.0
      %994 = vmatpush1.msra.mxu0 0.0
      %995 = vmatprep.subr.mxu0 0.0
      %996 = vmatpush1.msra.mxu0 0.0
      %997 = vmatprep.subr.mxu0 0.0
      %998 = vmatpush1.msra.mxu0 0.0
      %999 = vmatprep.subr.mxu0 0.0
      %1000 = vmatpush1.msra.mxu0 %v878
      %1001 = vmatprep.subr.mxu0 0.0
      %1002 = vmatpush2.msra.mxu0 0.0
      %1003 = vmatprep.subr.mxu0 0.0
      %1004 = vmatpush2.msra.mxu0 0.0
      %1005 = vmatprep.subr.mxu0 0.0
      %1006 = vmatpush2.msra.mxu0 0.0
      %1007 = vmatprep.subr.mxu0 0.0
      %1008 = vmatpush2.msra.mxu0 0.0
      %1009 = vmatprep.subr.mxu0 0.0
      %1010 = vmatpush2.msra.mxu0 0.0
      %1011 = vmatprep.subr.mxu0 0.0
      %1012 = vmatpush2.msra.mxu0 0.0
      %1013 = vmatprep.subr.mxu0 0.0
      %1014 = vmatpush2.msra.mxu0 0.0
      %1015 = vmatprep.subr.mxu0 0.0
      %1016 = vmatpush2.msra.mxu0 0.0
      %1017 = vmatprep.subr.mxu0 0.0
      %1018 = vmatpush2.msra.mxu0 0.0
      %1019 = vmatprep.subr.mxu0 0.0
      %1020 = vmatpush2.msra.mxu0 0.0
      %1021 = vmatprep.subr.mxu0 0.0
      %1022 = vmatpush2.msra.mxu0 0.0
      %1023 = vmatprep.subr.mxu0 0.0
      %1024 = vmatpush2.msra.mxu0 0.0
      %1025 = vmatprep.subr.mxu0 0.0
      %1026 = vmatpush2.msra.mxu0 0.0
      %1027 = vmatprep.subr.mxu0 0.0
      %1028 = vmatpush2.msra.mxu0 0.0
      %1029 = vmatprep.subr.mxu0 0.0
      %1030 = vmatpush2.msra.mxu0 0.0
      %1031 = vmatprep.subr.mxu0 0.0
      %1032 = vmatpush2.msra.mxu0 0.0
      %1033 = vmatprep.mubr.f32.mxu0 0.0
      %1034 = vmatmul.mubr.f32.gmra.mxu0 %v863
      %v1035 = vpop.f32.mrf.mxu0
      %v1036 = vadd.f32 0.0, %v1035
      %v1037 = vpop.f32.mrf.mxu0
      %1038 = vmatprep.mubr.f32.mxu0 0.0
      %1039 = vmatmul.mubr.f32.gmra.mxu0 %v866
      %v1040 = vpop.f32.mrf.mxu0
      %v1041 = vadd.f32 0.0, %v1040
      %v1042 = vpop.f32.mrf.mxu0
      %1043 = vmatprep.mubr.f32.mxu0 0.0
      %1044 = vmatmul.mubr.f32.gmra.mxu0 %v869
      %v1045 = vpop.f32.mrf.mxu0
      %v1046 = vadd.f32 0.0, %v1045
      %v1047 = vpop.f32.mrf.mxu0
      %1048 = vmatprep.mubr.f32.mxu0 0.0
      %1049 = vmatmul.mubr.f32.gmra.mxu0 %v872
      %v1050 = vpop.f32.mrf.mxu0
      %v1051 = vadd.f32 0.0, %v1050
      %v1052 = vpop.f32.mrf.mxu0
      %1053 = vdwg.mxu0
      %v1054 = vadd.f32 %v831, %v947
      %v1055 = vadd.f32 %v832, %v949
      %v1056 = vadd.f32 %v833, %v1036
      %v1057 = vadd.f32 %v834, %v953
      %v1058 = vadd.f32 %v835, %v955
      %v1059 = vadd.f32 %v836, %v1041
      %v1060 = vadd.f32 %v837, %v959
      %v1061 = vadd.f32 %v838, %v961
      %v1062 = vadd.f32 %v839, %v1046
      %v1063 = vadd.f32 %v840, %v965
      %v1064 = vadd.f32 %v841, %v967
      %v1065 = vadd.f32 %v842, %v1051
      %v1066 = vld [vmem:[%s200] sm:$0xff]
      %v1067 = vld [vmem:[%s200 + $0x8] sm:$0xf]
      %s1068 = scalar_lea.vmem %s1, 128
      %v1069 = vld [vmem:[%s1068] sm:$0xff]
      %v1070 = vld [vmem:[%s1068 + $0x8] sm:$0xff]
      %v1071 = vld [vmem:[%s1068 + $0x10] sm:$0xff]
      %v1072 = vld [vmem:[%s1068 + $0x18] sm:$0xff]
      %v1075 = vcombine.high %v1066, %v1066
      %1076 = vrot.lane.b32.xlu0 %v1066, 109
      %v1077 = vpop.permute.xlu0 %1076
      %1078 = vrot.lane.b32.xlu0 %v1075, 109
      %v1079 = vpop.permute.xlu0 %1078
      %1080 = vrot.lane.b32.xlu0 %v1067, 109
      %v1081 = vpop.permute.xlu0 %1080
      %vm1082 = vcmask 891904
      %v1083 = vsel %vm1082, %v1077, %v1079
      %v1084 = vsel %vm1082, %v1079, %v1081
      %v1086 = vsel %vm234, %v1069, 0
      %v1089 = vsel %vm234, %v1070, 0
      %v1092 = vsel %vm234, %v1071, 0
      %v1095 = vsel %vm234, %v1072, 0
      %v1097 = vsel %vm247, %v1083, 0
      %v1099 = vsel %vm247, %v1084, 0
      %v1101 = vsel %vm247, %v1081, 0
      %1103 = vmatprep.subr.mxu0 0.0
      %1104 = vmatpush1.msra.mxu0 0.0
      %1105 = vmatprep.subr.mxu0 0.0
      %1106 = vmatpush1.msra.mxu0 0.0
      %1107 = vmatprep.subr.mxu0 0.0
      %1108 = vmatpush1.msra.mxu0 0.0
      %1109 = vmatprep.subr.mxu0 0.0
      %1110 = vmatpush1.msra.mxu0 0.0
      %1111 = vmatprep.subr.mxu0 0.0
      %1112 = vmatpush1.msra.mxu0 0.0
      %1113 = vmatprep.subr.mxu0 0.0
      %1114 = vmatpush1.msra.mxu0 0.0
      %1115 = vmatprep.subr.mxu0 0.0
      %1116 = vmatpush1.msra.mxu0 0.0
      %1117 = vmatprep.subr.mxu0 0.0
      %1118 = vmatpush1.msra.mxu0 0.0
      %1119 = vmatprep.subr.mxu0 0.0
      %1120 = vmatpush1.msra.mxu0 0.0
      %1121 = vmatprep.subr.mxu0 0.0
      %1122 = vmatpush1.msra.mxu0 0.0
      %1123 = vmatprep.subr.mxu0 0.0
      %1124 = vmatpush1.msra.mxu0 0.0
      %1125 = vmatprep.subr.mxu0 0.0
      %1126 = vmatpush1.msra.mxu0 0.0
      %1127 = vmatprep.subr.mxu0 0.0
      %1128 = vmatpush1.msra.mxu0 0.0
      %1129 = vmatprep.subr.mxu0 0.0
      %1130 = vmatpush1.msra.mxu0 0.0
      %1131 = vmatprep.subr.mxu0 0.0
      %1132 = vmatpush1.msra.mxu0 0.0
      %1133 = vmatprep.subr.mxu0 %v1099
      %1134 = vmatpush1.msra.mxu0 %v1097
      %1135 = vmatprep.subr.mxu0 0.0
      %1136 = vmatpush2.msra.mxu0 0.0
      %1137 = vmatprep.subr.mxu0 0.0
      %1138 = vmatpush2.msra.mxu0 0.0
      %1139 = vmatprep.subr.mxu0 0.0
      %1140 = vmatpush2.msra.mxu0 0.0
      %1141 = vmatprep.subr.mxu0 0.0
      %1142 = vmatpush2.msra.mxu0 0.0
      %1143 = vmatprep.subr.mxu0 0.0
      %1144 = vmatpush2.msra.mxu0 0.0
      %1145 = vmatprep.subr.mxu0 0.0
      %1146 = vmatpush2.msra.mxu0 0.0
      %1147 = vmatprep.subr.mxu0 0.0
      %1148 = vmatpush2.msra.mxu0 0.0
      %1149 = vmatprep.subr.mxu0 0.0
      %1150 = vmatpush2.msra.mxu0 0.0
      %1151 = vmatprep.subr.mxu0 0.0
      %1152 = vmatpush2.msra.mxu0 0.0
      %1153 = vmatprep.subr.mxu0 0.0
      %1154 = vmatpush2.msra.mxu0 0.0
      %1155 = vmatprep.subr.mxu0 0.0
      %1156 = vmatpush2.msra.mxu0 0.0
      %1157 = vmatprep.subr.mxu0 0.0
      %1158 = vmatpush2.msra.mxu0 0.0
      %1159 = vmatprep.subr.mxu0 0.0
      %1160 = vmatpush2.msra.mxu0 0.0
      %1161 = vmatprep.subr.mxu0 0.0
      %1162 = vmatpush2.msra.mxu0 0.0
      %1163 = vmatprep.subr.mxu0 0.0
      %1164 = vmatpush2.msra.mxu0 0.0
      %1165 = vmatprep.subr.mxu0 0.0
      %1166 = vmatpush2.msra.mxu0 0.0
      %1167 = vmatprep.mubr.f32.mxu0 0.0
      %1168 = vmatmul.mubr.f32.gmra.mxu0 %v1086
      %v1169 = vpop.f32.mrf.mxu0
      %v1170 = vadd.f32 0.0, %v1169
      %v1171 = vpop.f32.mrf.mxu0
      %v1172 = vadd.f32 0.0, %v1171
      %1173 = vmatprep.mubr.f32.mxu0 0.0
      %1174 = vmatmul.mubr.f32.gmra.mxu0 %v1089
      %v1175 = vpop.f32.mrf.mxu0
      %v1176 = vadd.f32 0.0, %v1175
      %v1177 = vpop.f32.mrf.mxu0
      %v1178 = vadd.f32 0.0, %v1177
      %1179 = vmatprep.mubr.f32.mxu0 0.0
      %1180 = vmatmul.mubr.f32.gmra.mxu0 %v1092
      %v1181 = vpop.f32.mrf.mxu0
      %v1182 = vadd.f32 0.0, %v1181
      %v1183 = vpop.f32.mrf.mxu0
      %v1184 = vadd.f32 0.0, %v1183
      %1185 = vmatprep.mubr.f32.mxu0 0.0
      %1186 = vmatmul.mubr.f32.gmra.mxu0 %v1095
      %v1187 = vpop.f32.mrf.mxu0
      %v1188 = vadd.f32 0.0, %v1187
      %v1189 = vpop.f32.mrf.mxu0
      %v1190 = vadd.f32 0.0, %v1189
      %1191 = vdwg.mxu0
      %1192 = vmatprep.subr.mxu0 0.0
      %1193 = vmatpush1.msra.mxu0 0.0
      %1194 = vmatprep.subr.mxu0 0.0
      %1195 = vmatpush1.msra.mxu0 0.0
      %1196 = vmatprep.subr.mxu0 0.0
      %1197 = vmatpush1.msra.mxu0 0.0
      %1198 = vmatprep.subr.mxu0 0.0
      %1199 = vmatpush1.msra.mxu0 0.0
      %1200 = vmatprep.subr.mxu0 0.0
      %1201 = vmatpush1.msra.mxu0 0.0
      %1202 = vmatprep.subr.mxu0 0.0
      %1203 = vmatpush1.msra.mxu0 0.0
      %1204 = vmatprep.subr.mxu0 0.0
      %1205 = vmatpush1.msra.mxu0 0.0
      %1206 = vmatprep.subr.mxu0 0.0
      %1207 = vmatpush1.msra.mxu0 0.0
      %1208 = vmatprep.subr.mxu0 0.0
      %1209 = vmatpush1.msra.mxu0 0.0
      %1210 = vmatprep.subr.mxu0 0.0
      %1211 = vmatpush1.msra.mxu0 0.0
      %1212 = vmatprep.subr.mxu0 0.0
      %1213 = vmatpush1.msra.mxu0 0.0
      %1214 = vmatprep.subr.mxu0 0.0
      %1215 = vmatpush1.msra.mxu0 0.0
      %1216 = vmatprep.subr.mxu0 0.0
      %1217 = vmatpush1.msra.mxu0 0.0
      %1218 = vmatprep.subr.mxu0 0.0
      %1219 = vmatpush1.msra.mxu0 0.0
      %1220 = vmatprep.subr.mxu0 0.0
      %1221 = vmatpush1.msra.mxu0 0.0
      %1222 = vmatprep.subr.mxu0 0.0
      %1223 = vmatpush1.msra.mxu0 %v1101
      %1224 = vmatprep.subr.mxu0 0.0
      %1225 = vmatpush2.msra.mxu0 0.0
      %1226 = vmatprep.subr.mxu0 0.0
      %1227 = vmatpush2.msra.mxu0 0.0
      %1228 = vmatprep.subr.mxu0 0.0
      %1229 = vmatpush2.msra.mxu0 0.0
      %1230 = vmatprep.subr.mxu0 0.0
      %1231 = vmatpush2.msra.mxu0 0.0
      %1232 = vmatprep.subr.mxu0 0.0
      %1233 = vmatpush2.msra.mxu0 0.0
      %1234 = vmatprep.subr.mxu0 0.0
      %1235 = vmatpush2.msra.mxu0 0.0
      %1236 = vmatprep.subr.mxu0 0.0
      %1237 = vmatpush2.msra.mxu0 0.0
      %1238 = vmatprep.subr.mxu0 0.0
      %1239 = vmatpush2.msra.mxu0 0.0
      %1240 = vmatprep.subr.mxu0 0.0
      %1241 = vmatpush2.msra.mxu0 0.0
      %1242 = vmatprep.subr.mxu0 0.0
      %1243 = vmatpush2.msra.mxu0 0.0
      %1244 = vmatprep.subr.mxu0 0.0
      %1245 = vmatpush2.msra.mxu0 0.0
      %1246 = vmatprep.subr.mxu0 0.0
      %1247 = vmatpush2.msra.mxu0 0.0
      %1248 = vmatprep.subr.mxu0 0.0
      %1249 = vmatpush2.msra.mxu0 0.0
      %1250 = vmatprep.subr.mxu0 0.0
      %1251 = vmatpush2.msra.mxu0 0.0
      %1252 = vmatprep.subr.mxu0 0.0
      %1253 = vmatpush2.msra.mxu0 0.0
      %1254 = vmatprep.subr.mxu0 0.0
      %1255 = vmatpush2.msra.mxu0 0.0
      %1256 = vmatprep.mubr.f32.mxu0 0.0
      %1257 = vmatmul.mubr.f32.gmra.mxu0 %v1086
      %v1258 = vpop.f32.mrf.mxu0
      %v1259 = vadd.f32 0.0, %v1258
      %v1260 = vpop.f32.mrf.mxu0
      %1261 = vmatprep.mubr.f32.mxu0 0.0
      %1262 = vmatmul.mubr.f32.gmra.mxu0 %v1089
      %v1263 = vpop.f32.mrf.mxu0
      %v1264 = vadd.f32 0.0, %v1263
      %v1265 = vpop.f32.mrf.mxu0
      %1266 = vmatprep.mubr.f32.mxu0 0.0
      %1267 = vmatmul.mubr.f32.gmra.mxu0 %v1092
      %v1268 = vpop.f32.mrf.mxu0
      %v1269 = vadd.f32 0.0, %v1268
      %v1270 = vpop.f32.mrf.mxu0
      %1271 = vmatprep.mubr.f32.mxu0 0.0
      %1272 = vmatmul.mubr.f32.gmra.mxu0 %v1095
      %v1273 = vpop.f32.mrf.mxu0
      %v1274 = vadd.f32 0.0, %v1273
      %v1275 = vpop.f32.mrf.mxu0
      %1276 = vdwg.mxu0
      %v1277 = vadd.f32 %v1054, %v1170
      %v1278 = vadd.f32 %v1055, %v1172
      %v1279 = vadd.f32 %v1056, %v1259
      %v1280 = vadd.f32 %v1057, %v1176
      %v1281 = vadd.f32 %v1058, %v1178
      %v1282 = vadd.f32 %v1059, %v1264
      %v1283 = vadd.f32 %v1060, %v1182
      %v1284 = vadd.f32 %v1061, %v1184
      %v1285 = vadd.f32 %v1062, %v1269
      %v1286 = vadd.f32 %v1063, %v1188
      %v1287 = vadd.f32 %v1064, %v1190
      %v1288 = vadd.f32 %v1065, %v1274
      %v1289 = vld [vmem:[%s200] sm:$0xff]
      %v1290 = vld [vmem:[%s200 + $0x8] sm:$0xf]
      %s1291 = scalar_lea.vmem %s1, 160
      %v1292 = vld [vmem:[%s1291] sm:$0xff]
      %v1293 = vld [vmem:[%s1291 + $0x8] sm:$0xff]
      %v1294 = vld [vmem:[%s1291 + $0x10] sm:$0xff]
      %v1295 = vld [vmem:[%s1291 + $0x18] sm:$0xff]
      %v1298 = vcombine.high %v1289, %v1289
      %1299 = vrot.lane.b32.xlu0 %v1289, 108
      %v1300 = vpop.permute.xlu0 %1299
      %1301 = vrot.lane.b32.xlu0 %v1298, 108
      %v1302 = vpop.permute.xlu0 %1301
      %1303 = vrot.lane.b32.xlu0 %v1290, 108
      %v1304 = vpop.permute.xlu0 %1303
      %vm1305 = vcmask 883712
      %v1306 = vsel %vm1305, %v1300, %v1302
      %v1307 = vsel %vm1305, %v1302, %v1304
      %v1309 = vsel %vm234, %v1292, 0
      %v1312 = vsel %vm234, %v1293, 0
      %v1315 = vsel %vm234, %v1294, 0
      %v1318 = vsel %vm234, %v1295, 0
      %v1320 = vsel %vm247, %v1306, 0
      %v1322 = vsel %vm247, %v1307, 0
      %v1324 = vsel %vm247, %v1304, 0
      %1326 = vmatprep.subr.mxu0 0.0
      %1327 = vmatpush1.msra.mxu0 0.0
      %1328 = vmatprep.subr.mxu0 0.0
      %1329 = vmatpush1.msra.mxu0 0.0
      %1330 = vmatprep.subr.mxu0 0.0
      %1331 = vmatpush1.msra.mxu0 0.0
      %1332 = vmatprep.subr.mxu0 0.0
      %1333 = vmatpush1.msra.mxu0 0.0
      %1334 = vmatprep.subr.mxu0 0.0
      %1335 = vmatpush1.msra.mxu0 0.0
      %1336 = vmatprep.subr.mxu0 0.0
      %1337 = vmatpush1.msra.mxu0 0.0
      %1338 = vmatprep.subr.mxu0 0.0
      %1339 = vmatpush1.msra.mxu0 0.0
      %1340 = vmatprep.subr.mxu0 0.0
      %1341 = vmatpush1.msra.mxu0 0.0
      %1342 = vmatprep.subr.mxu0 0.0
      %1343 = vmatpush1.msra.mxu0 0.0
      %1344 = vmatprep.subr.mxu0 0.0
      %1345 = vmatpush1.msra.mxu0 0.0
      %1346 = vmatprep.subr.mxu0 0.0
      %1347 = vmatpush1.msra.mxu0 0.0
      %1348 = vmatprep.subr.mxu0 0.0
      %1349 = vmatpush1.msra.mxu0 0.0
      %1350 = vmatprep.subr.mxu0 0.0
      %1351 = vmatpush1.msra.mxu0 0.0
      %1352 = vmatprep.subr.mxu0 0.0
      %1353 = vmatpush1.msra.mxu0 0.0
      %1354 = vmatprep.subr.mxu0 0.0
      %1355 = vmatpush1.msra.mxu0 0.0
      %1356 = vmatprep.subr.mxu0 %v1322
      %1357 = vmatpush1.msra.mxu0 %v1320
      %1358 = vmatprep.subr.mxu0 0.0
      %1359 = vmatpush2.msra.mxu0 0.0
      %1360 = vmatprep.subr.mxu0 0.0
      %1361 = vmatpush2.msra.mxu0 0.0
      %1362 = vmatprep.subr.mxu0 0.0
      %1363 = vmatpush2.msra.mxu0 0.0
      %1364 = vmatprep.subr.mxu0 0.0
      %1365 = vmatpush2.msra.mxu0 0.0
      %1366 = vmatprep.subr.mxu0 0.0
      %1367 = vmatpush2.msra.mxu0 0.0
      %1368 = vmatprep.subr.mxu0 0.0
      %1369 = vmatpush2.msra.mxu0 0.0
      %1370 = vmatprep.subr.mxu0 0.0
      %1371 = vmatpush2.msra.mxu0 0.0
      %1372 = vmatprep.subr.mxu0 0.0
      %1373 = vmatpush2.msra.mxu0 0.0
      %1374 = vmatprep.subr.mxu0 0.0
      %1375 = vmatpush2.msra.mxu0 0.0
      %1376 = vmatprep.subr.mxu0 0.0
      %1377 = vmatpush2.msra.mxu0 0.0
      %1378 = vmatprep.subr.mxu0 0.0
      %1379 = vmatpush2.msra.mxu0 0.0
      %1380 = vmatprep.subr.mxu0 0.0
      %1381 = vmatpush2.msra.mxu0 0.0
      %1382 = vmatprep.subr.mxu0 0.0
      %1383 = vmatpush2.msra.mxu0 0.0
      %1384 = vmatprep.subr.mxu0 0.0
      %1385 = vmatpush2.msra.mxu0 0.0
      %1386 = vmatprep.subr.mxu0 0.0
      %1387 = vmatpush2.msra.mxu0 0.0
      %1388 = vmatprep.subr.mxu0 0.0
      %1389 = vmatpush2.msra.mxu0 0.0
      %1390 = vmatprep.mubr.f32.mxu0 0.0
      %1391 = vmatmul.mubr.f32.gmra.mxu0 %v1309
      %v1392 = vpop.f32.mrf.mxu0
      %v1393 = vadd.f32 0.0, %v1392
      %v1394 = vpop.f32.mrf.mxu0
      %v1395 = vadd.f32 0.0, %v1394
      %1396 = vmatprep.mubr.f32.mxu0 0.0
      %1397 = vmatmul.mubr.f32.gmra.mxu0 %v1312
      %v1398 = vpop.f32.mrf.mxu0
      %v1399 = vadd.f32 0.0, %v1398
      %v1400 = vpop.f32.mrf.mxu0
      %v1401 = vadd.f32 0.0, %v1400
      %1402 = vmatprep.mubr.f32.mxu0 0.0
      %1403 = vmatmul.mubr.f32.gmra.mxu0 %v1315
      %v1404 = vpop.f32.mrf.mxu0
      %v1405 = vadd.f32 0.0, %v1404
      %v1406 = vpop.f32.mrf.mxu0
      %v1407 = vadd.f32 0.0, %v1406
      %1408 = vmatprep.mubr.f32.mxu0 0.0
      %1409 = vmatmul.mubr.f32.gmra.mxu0 %v1318
      %v1410 = vpop.f32.mrf.mxu0
      %v1411 = vadd.f32 0.0, %v1410
      %v1412 = vpop.f32.mrf.mxu0
      %v1413 = vadd.f32 0.0, %v1412
      %1414 = vdwg.mxu0
      %1415 = vmatprep.subr.mxu0 0.0
      %1416 = vmatpush1.msra.mxu0 0.0
      %1417 = vmatprep.subr.mxu0 0.0
      %1418 = vmatpush1.msra.mxu0 0.0
      %1419 = vmatprep.subr.mxu0 0.0
      %1420 = vmatpush1.msra.mxu0 0.0
      %1421 = vmatprep.subr.mxu0 0.0
      %1422 = vmatpush1.msra.mxu0 0.0
      %1423 = vmatprep.subr.mxu0 0.0
      %1424 = vmatpush1.msra.mxu0 0.0
      %1425 = vmatprep.subr.mxu0 0.0
      %1426 = vmatpush1.msra.mxu0 0.0
      %1427 = vmatprep.subr.mxu0 0.0
      %1428 = vmatpush1.msra.mxu0 0.0
      %1429 = vmatprep.subr.mxu0 0.0
      %1430 = vmatpush1.msra.mxu0 0.0
      %1431 = vmatprep.subr.mxu0 0.0
      %1432 = vmatpush1.msra.mxu0 0.0
      %1433 = vmatprep.subr.mxu0 0.0
      %1434 = vmatpush1.msra.mxu0 0.0
      %1435 = vmatprep.subr.mxu0 0.0
      %1436 = vmatpush1.msra.mxu0 0.0
      %1437 = vmatprep.subr.mxu0 0.0
      %1438 = vmatpush1.msra.mxu0 0.0
      %1439 = vmatprep.subr.mxu0 0.0
      %1440 = vmatpush1.msra.mxu0 0.0
      %1441 = vmatprep.subr.mxu0 0.0
      %1442 = vmatpush1.msra.mxu0 0.0
      %1443 = vmatprep.subr.mxu0 0.0
      %1444 = vmatpush1.msra.mxu0 0.0
      %1445 = vmatprep.subr.mxu0 0.0
      %1446 = vmatpush1.msra.mxu0 %v1324
      %1447 = vmatprep.subr.mxu0 0.0
      %1448 = vmatpush2.msra.mxu0 0.0
      %1449 = vmatprep.subr.mxu0 0.0
      %1450 = vmatpush2.msra.mxu0 0.0
      %1451 = vmatprep.subr.mxu0 0.0
      %1452 = vmatpush2.msra.mxu0 0.0
      %1453 = vmatprep.subr.mxu0 0.0
      %1454 = vmatpush2.msra.mxu0 0.0
      %1455 = vmatprep.subr.mxu0 0.0
      %1456 = vmatpush2.msra.mxu0 0.0
      %1457 = vmatprep.subr.mxu0 0.0
      %1458 = vmatpush2.msra.mxu0 0.0
      %1459 = vmatprep.subr.mxu0 0.0
      %1460 = vmatpush2.msra.mxu0 0.0
      %1461 = vmatprep.subr.mxu0 0.0
      %1462 = vmatpush2.msra.mxu0 0.0
      %1463 = vmatprep.subr.mxu0 0.0
      %1464 = vmatpush2.msra.mxu0 0.0
      %1465 = vmatprep.subr.mxu0 0.0
      %1466 = vmatpush2.msra.mxu0 0.0
      %1467 = vmatprep.subr.mxu0 0.0
      %1468 = vmatpush2.msra.mxu0 0.0
      %1469 = vmatprep.subr.mxu0 0.0
      %1470 = vmatpush2.msra.mxu0 0.0
      %1471 = vmatprep.subr.mxu0 0.0
      %1472 = vmatpush2.msra.mxu0 0.0
      %1473 = vmatprep.subr.mxu0 0.0
      %1474 = vmatpush2.msra.mxu0 0.0
      %1475 = vmatprep.subr.mxu0 0.0
      %1476 = vmatpush2.msra.mxu0 0.0
      %1477 = vmatprep.subr.mxu0 0.0
      %1478 = vmatpush2.msra.mxu0 0.0
      %1479 = vmatprep.mubr.f32.mxu0 0.0
      %1480 = vmatmul.mubr.f32.gmra.mxu0 %v1309
      %v1481 = vpop.f32.mrf.mxu0
      %v1482 = vadd.f32 0.0, %v1481
      %v1483 = vpop.f32.mrf.mxu0
      %1484 = vmatprep.mubr.f32.mxu0 0.0
      %1485 = vmatmul.mubr.f32.gmra.mxu0 %v1312
      %v1486 = vpop.f32.mrf.mxu0
      %v1487 = vadd.f32 0.0, %v1486
      %v1488 = vpop.f32.mrf.mxu0
      %1489 = vmatprep.mubr.f32.mxu0 0.0
      %1490 = vmatmul.mubr.f32.gmra.mxu0 %v1315
      %v1491 = vpop.f32.mrf.mxu0
      %v1492 = vadd.f32 0.0, %v1491
      %v1493 = vpop.f32.mrf.mxu0
      %1494 = vmatprep.mubr.f32.mxu0 0.0
      %1495 = vmatmul.mubr.f32.gmra.mxu0 %v1318
      %v1496 = vpop.f32.mrf.mxu0
      %v1497 = vadd.f32 0.0, %v1496
      %v1498 = vpop.f32.mrf.mxu0
      %1499 = vdwg.mxu0
      %v1500 = vadd.f32 %v1277, %v1393
      %v1501 = vadd.f32 %v1278, %v1395
      %v1502 = vadd.f32 %v1279, %v1482
      %v1503 = vadd.f32 %v1280, %v1399
      %v1504 = vadd.f32 %v1281, %v1401
      %v1505 = vadd.f32 %v1282, %v1487
      %v1506 = vadd.f32 %v1283, %v1405
      %v1507 = vadd.f32 %v1284, %v1407
      %v1508 = vadd.f32 %v1285, %v1492
      %v1509 = vadd.f32 %v1286, %v1411
      %v1510 = vadd.f32 %v1287, %v1413
      %v1511 = vadd.f32 %v1288, %v1497
      %v1512 = vld [vmem:[%s200] sm:$0xff]
      %v1513 = vld [vmem:[%s200 + $0x8] sm:$0xf]
      %s1514 = scalar_lea.vmem %s1, 192
      %v1515 = vld [vmem:[%s1514] sm:$0xff]
      %v1516 = vld [vmem:[%s1514 + $0x8] sm:$0xff]
      %v1517 = vld [vmem:[%s1514 + $0x10] sm:$0xff]
      %v1518 = vld [vmem:[%s1514 + $0x18] sm:$0xff]
      %v1521 = vcombine.high %v1512, %v1512
      %1522 = vrot.lane.b32.xlu0 %v1512, 92
      %v1523 = vpop.permute.xlu0 %1522
      %1524 = vrot.lane.b32.xlu0 %v1521, 92
      %v1525 = vpop.permute.xlu0 %1524
      %1526 = vrot.lane.b32.xlu0 %v1513, 92
      %v1527 = vpop.permute.xlu0 %1526
      %vm1528 = vcmask 752640
      %v1529 = vsel %vm1528, %v1523, %v1525
      %v1530 = vsel %vm1528, %v1525, %v1527
      %v1532 = vsel %vm234, %v1515, 0
      %v1535 = vsel %vm234, %v1516, 0
      %v1538 = vsel %vm234, %v1517, 0
      %v1541 = vsel %vm234, %v1518, 0
      %v1543 = vsel %vm247, %v1529, 0
      %v1545 = vsel %vm247, %v1530, 0
      %v1547 = vsel %vm247, %v1527, 0
      %1549 = vmatprep.subr.mxu0 0.0
      %1550 = vmatpush1.msra.mxu0 0.0
      %1551 = vmatprep.subr.mxu0 0.0
      %1552 = vmatpush1.msra.mxu0 0.0
      %1553 = vmatprep.subr.mxu0 0.0
      %1554 = vmatpush1.msra.mxu0 0.0
      %1555 = vmatprep.subr.mxu0 0.0
      %1556 = vmatpush1.msra.mxu0 0.0
      %1557 = vmatprep.subr.mxu0 0.0
      %1558 = vmatpush1.msra.mxu0 0.0
      %1559 = vmatprep.subr.mxu0 0.0
      %1560 = vmatpush1.msra.mxu0 0.0
      %1561 = vmatprep.subr.mxu0 0.0
      %1562 = vmatpush1.msra.mxu0 0.0
      %1563 = vmatprep.subr.mxu0 0.0
      %1564 = vmatpush1.msra.mxu0 0.0
      %1565 = vmatprep.subr.mxu0 0.0
      %1566 = vmatpush1.msra.mxu0 0.0
      %1567 = vmatprep.subr.mxu0 0.0
      %1568 = vmatpush1.msra.mxu0 0.0
      %1569 = vmatprep.subr.mxu0 0.0
      %1570 = vmatpush1.msra.mxu0 0.0
      %1571 = vmatprep.subr.mxu0 0.0
      %1572 = vmatpush1.msra.mxu0 0.0
      %1573 = vmatprep.subr.mxu0 0.0
      %1574 = vmatpush1.msra.mxu0 0.0
      %1575 = vmatprep.subr.mxu0 0.0
      %1576 = vmatpush1.msra.mxu0 0.0
      %1577 = vmatprep.subr.mxu0 0.0
      %1578 = vmatpush1.msra.mxu0 0.0
      %1579 = vmatprep.subr.mxu0 %v1545
      %1580 = vmatpush1.msra.mxu0 %v1543
      %1581 = vmatprep.subr.mxu0 0.0
      %1582 = vmatpush2.msra.mxu0 0.0
      %1583 = vmatprep.subr.mxu0 0.0
      %1584 = vmatpush2.msra.mxu0 0.0
      %1585 = vmatprep.subr.mxu0 0.0
      %1586 = vmatpush2.msra.mxu0 0.0
      %1587 = vmatprep.subr.mxu0 0.0
      %1588 = vmatpush2.msra.mxu0 0.0
      %1589 = vmatprep.subr.mxu0 0.0
      %1590 = vmatpush2.msra.mxu0 0.0
      %1591 = vmatprep.subr.mxu0 0.0
      %1592 = vmatpush2.msra.mxu0 0.0
      %1593 = vmatprep.subr.mxu0 0.0
      %1594 = vmatpush2.msra.mxu0 0.0
      %1595 = vmatprep.subr.mxu0 0.0
      %1596 = vmatpush2.msra.mxu0 0.0
      %1597 = vmatprep.subr.mxu0 0.0
      %1598 = vmatpush2.msra.mxu0 0.0
      %1599 = vmatprep.subr.mxu0 0.0
      %1600 = vmatpush2.msra.mxu0 0.0
      %1601 = vmatprep.subr.mxu0 0.0
      %1602 = vmatpush2.msra.mxu0 0.0
      %1603 = vmatprep.subr.mxu0 0.0
      %1604 = vmatpush2.msra.mxu0 0.0
      %1605 = vmatprep.subr.mxu0 0.0
      %1606 = vmatpush2.msra.mxu0 0.0
      %1607 = vmatprep.subr.mxu0 0.0
      %1608 = vmatpush2.msra.mxu0 0.0
      %1609 = vmatprep.subr.mxu0 0.0
      %1610 = vmatpush2.msra.mxu0 0.0
      %1611 = vmatprep.subr.mxu0 0.0
      %1612 = vmatpush2.msra.mxu0 0.0
      %1613 = vmatprep.mubr.f32.mxu0 0.0
      %1614 = vmatmul.mubr.f32.gmra.mxu0 %v1532
      %v1615 = vpop.f32.mrf.mxu0
      %v1616 = vadd.f32 0.0, %v1615
      %v1617 = vpop.f32.mrf.mxu0
      %v1618 = vadd.f32 0.0, %v1617
      %1619 = vmatprep.mubr.f32.mxu0 0.0
      %1620 = vmatmul.mubr.f32.gmra.mxu0 %v1535
      %v1621 = vpop.f32.mrf.mxu0
      %v1622 = vadd.f32 0.0, %v1621
      %v1623 = vpop.f32.mrf.mxu0
      %v1624 = vadd.f32 0.0, %v1623
      %1625 = vmatprep.mubr.f32.mxu0 0.0
      %1626 = vmatmul.mubr.f32.gmra.mxu0 %v1538
      %v1627 = vpop.f32.mrf.mxu0
      %v1628 = vadd.f32 0.0, %v1627
      %v1629 = vpop.f32.mrf.mxu0
      %v1630 = vadd.f32 0.0, %v1629
      %1631 = vmatprep.mubr.f32.mxu0 0.0
      %1632 = vmatmul.mubr.f32.gmra.mxu0 %v1541
      %v1633 = vpop.f32.mrf.mxu0
      %v1634 = vadd.f32 0.0, %v1633
      %v1635 = vpop.f32.mrf.mxu0
      %v1636 = vadd.f32 0.0, %v1635
      %1637 = vdwg.mxu0
      %1638 = vmatprep.subr.mxu0 0.0
      %1639 = vmatpush1.msra.mxu0 0.0
      %1640 = vmatprep.subr.mxu0 0.0
      %1641 = vmatpush1.msra.mxu0 0.0
      %1642 = vmatprep.subr.mxu0 0.0
      %1643 = vmatpush1.msra.mxu0 0.0
      %1644 = vmatprep.subr.mxu0 0.0
      %1645 = vmatpush1.msra.mxu0 0.0
      %1646 = vmatprep.subr.mxu0 0.0
      %1647 = vmatpush1.msra.mxu0 0.0
      %1648 = vmatprep.subr.mxu0 0.0
      %1649 = vmatpush1.msra.mxu0 0.0
      %1650 = vmatprep.subr.mxu0 0.0
      %1651 = vmatpush1.msra.mxu0 0.0
      %1652 = vmatprep.subr.mxu0 0.0
      %1653 = vmatpush1.msra.mxu0 0.0
      %1654 = vmatprep.subr.mxu0 0.0
      %1655 = vmatpush1.msra.mxu0 0.0
      %1656 = vmatprep.subr.mxu0 0.0
      %1657 = vmatpush1.msra.mxu0 0.0
      %1658 = vmatprep.subr.mxu0 0.0
      %1659 = vmatpush1.msra.mxu0 0.0
      %1660 = vmatprep.subr.mxu0 0.0
      %1661 = vmatpush1.msra.mxu0 0.0
      %1662 = vmatprep.subr.mxu0 0.0
      %1663 = vmatpush1.msra.mxu0 0.0
      %1664 = vmatprep.subr.mxu0 0.0
      %1665 = vmatpush1.msra.mxu0 0.0
      %1666 = vmatprep.subr.mxu0 0.0
      %1667 = vmatpush1.msra.mxu0 0.0
      %1668 = vmatprep.subr.mxu0 0.0
      %1669 = vmatpush1.msra.mxu0 %v1547
      %1670 = vmatprep.subr.mxu0 0.0
      %1671 = vmatpush2.msra.mxu0 0.0
      %1672 = vmatprep.subr.mxu0 0.0
      %1673 = vmatpush2.msra.mxu0 0.0
      %1674 = vmatprep.subr.mxu0 0.0
      %1675 = vmatpush2.msra.mxu0 0.0
      %1676 = vmatprep.subr.mxu0 0.0
      %1677 = vmatpush2.msra.mxu0 0.0
      %1678 = vmatprep.subr.mxu0 0.0
      %1679 = vmatpush2.msra.mxu0 0.0
      %1680 = vmatprep.subr.mxu0 0.0
      %1681 = vmatpush2.msra.mxu0 0.0
      %1682 = vmatprep.subr.mxu0 0.0
      %1683 = vmatpush2.msra.mxu0 0.0
      %1684 = vmatprep.subr.mxu0 0.0
      %1685 = vmatpush2.msra.mxu0 0.0
      %1686 = vmatprep.subr.mxu0 0.0
      %1687 = vmatpush2.msra.mxu0 0.0
      %1688 = vmatprep.subr.mxu0 0.0
      %1689 = vmatpush2.msra.mxu0 0.0
      %1690 = vmatprep.subr.mxu0 0.0
      %1691 = vmatpush2.msra.mxu0 0.0
      %1692 = vmatprep.subr.mxu0 0.0
      %1693 = vmatpush2.msra.mxu0 0.0
      %1694 = vmatprep.subr.mxu0 0.0
      %1695 = vmatpush2.msra.mxu0 0.0
      %1696 = vmatprep.subr.mxu0 0.0
      %1697 = vmatpush2.msra.mxu0 0.0
      %1698 = vmatprep.subr.mxu0 0.0
      %1699 = vmatpush2.msra.mxu0 0.0
      %1700 = vmatprep.subr.mxu0 0.0
      %1701 = vmatpush2.msra.mxu0 0.0
      %1702 = vmatprep.mubr.f32.mxu0 0.0
      %1703 = vmatmul.mubr.f32.gmra.mxu0 %v1532
      %v1704 = vpop.f32.mrf.mxu0
      %v1705 = vadd.f32 0.0, %v1704
      %v1706 = vpop.f32.mrf.mxu0
      %1707 = vmatprep.mubr.f32.mxu0 0.0
      %1708 = vmatmul.mubr.f32.gmra.mxu0 %v1535
      %v1709 = vpop.f32.mrf.mxu0
      %v1710 = vadd.f32 0.0, %v1709
      %v1711 = vpop.f32.mrf.mxu0
      %1712 = vmatprep.mubr.f32.mxu0 0.0
      %1713 = vmatmul.mubr.f32.gmra.mxu0 %v1538
      %v1714 = vpop.f32.mrf.mxu0
      %v1715 = vadd.f32 0.0, %v1714
      %v1716 = vpop.f32.mrf.mxu0
      %1717 = vmatprep.mubr.f32.mxu0 0.0
      %1718 = vmatmul.mubr.f32.gmra.mxu0 %v1541
      %v1719 = vpop.f32.mrf.mxu0
      %v1720 = vadd.f32 0.0, %v1719
      %v1721 = vpop.f32.mrf.mxu0
      %1722 = vdwg.mxu0
      %v1723 = vadd.f32 %v1500, %v1616
      %v1724 = vadd.f32 %v1501, %v1618
      %v1725 = vadd.f32 %v1502, %v1705
      %v1726 = vadd.f32 %v1503, %v1622
      %v1727 = vadd.f32 %v1504, %v1624
      %v1728 = vadd.f32 %v1505, %v1710
      %v1729 = vadd.f32 %v1506, %v1628
      %v1730 = vadd.f32 %v1507, %v1630
      %v1731 = vadd.f32 %v1508, %v1715
      %v1732 = vadd.f32 %v1509, %v1634
      %v1733 = vadd.f32 %v1510, %v1636
      %v1734 = vadd.f32 %v1511, %v1720
      %v1735 = vld [vmem:[%s200] sm:$0xff]
      %v1736 = vld [vmem:[%s200 + $0x8] sm:$0xf]
      %s1737 = scalar_lea.vmem %s1, 224
      %v1738 = vld [vmem:[%s1737] sm:$0xff]
      %v1739 = vld [vmem:[%s1737 + $0x8] sm:$0xff]
      %v1740 = vld [vmem:[%s1737 + $0x10] sm:$0xff]
      %v1741 = vld [vmem:[%s1737 + $0x18] sm:$0xff]
      %v1744 = vcombine.high %v1735, %v1735
      %1745 = vrot.lane.b32.xlu0 %v1735, 91
      %v1746 = vpop.permute.xlu0 %1745
      %1747 = vrot.lane.b32.xlu0 %v1744, 91
      %v1748 = vpop.permute.xlu0 %1747
      %1749 = vrot.lane.b32.xlu0 %v1736, 91
      %v1750 = vpop.permute.xlu0 %1749
      %vm1751 = vcmask 744448
      %v1752 = vsel %vm1751, %v1746, %v1748
      %v1753 = vsel %vm1751, %v1748, %v1750
      %v1755 = vsel %vm234, %v1738, 0
      %v1758 = vsel %vm234, %v1739, 0
      %v1761 = vsel %vm234, %v1740, 0
      %v1764 = vsel %vm234, %v1741, 0
      %v1766 = vsel %vm247, %v1752, 0
      %v1768 = vsel %vm247, %v1753, 0
      %v1770 = vsel %vm247, %v1750, 0
      %1772 = vmatprep.subr.mxu0 0.0
      %1773 = vmatpush1.msra.mxu0 0.0
      %1774 = vmatprep.subr.mxu0 0.0
      %1775 = vmatpush1.msra.mxu0 0.0
      %1776 = vmatprep.subr.mxu0 0.0
      %1777 = vmatpush1.msra.mxu0 0.0
      %1778 = vmatprep.subr.mxu0 0.0
      %1779 = vmatpush1.msra.mxu0 0.0
      %1780 = vmatprep.subr.mxu0 0.0
      %1781 = vmatpush1.msra.mxu0 0.0
      %1782 = vmatprep.subr.mxu0 0.0
      %1783 = vmatpush1.msra.mxu0 0.0
      %1784 = vmatprep.subr.mxu0 0.0
      %1785 = vmatpush1.msra.mxu0 0.0
      %1786 = vmatprep.subr.mxu0 0.0
      %1787 = vmatpush1.msra.mxu0 0.0
      %1788 = vmatprep.subr.mxu0 0.0
      %1789 = vmatpush1.msra.mxu0 0.0
      %1790 = vmatprep.subr.mxu0 0.0
      %1791 = vmatpush1.msra.mxu0 0.0
      %1792 = vmatprep.subr.mxu0 0.0
      %1793 = vmatpush1.msra.mxu0 0.0
      %1794 = vmatprep.subr.mxu0 0.0
      %1795 = vmatpush1.msra.mxu0 0.0
      %1796 = vmatprep.subr.mxu0 0.0
      %1797 = vmatpush1.msra.mxu0 0.0
      %1798 = vmatprep.subr.mxu0 0.0
      %1799 = vmatpush1.msra.mxu0 0.0
      %1800 = vmatprep.subr.mxu0 0.0
      %1801 = vmatpush1.msra.mxu0 0.0
      %1802 = vmatprep.subr.mxu0 %v1768
      %1803 = vmatpush1.msra.mxu0 %v1766
      %1804 = vmatprep.subr.mxu0 0.0
      %1805 = vmatpush2.msra.mxu0 0.0
      %1806 = vmatprep.subr.mxu0 0.0
      %1807 = vmatpush2.msra.mxu0 0.0
      %1808 = vmatprep.subr.mxu0 0.0
      %1809 = vmatpush2.msra.mxu0 0.0
      %1810 = vmatprep.subr.mxu0 0.0
      %1811 = vmatpush2.msra.mxu0 0.0
      %1812 = vmatprep.subr.mxu0 0.0
      %1813 = vmatpush2.msra.mxu0 0.0
      %1814 = vmatprep.subr.mxu0 0.0
      %1815 = vmatpush2.msra.mxu0 0.0
      %1816 = vmatprep.subr.mxu0 0.0
      %1817 = vmatpush2.msra.mxu0 0.0
      %1818 = vmatprep.subr.mxu0 0.0
      %1819 = vmatpush2.msra.mxu0 0.0
      %1820 = vmatprep.subr.mxu0 0.0
      %1821 = vmatpush2.msra.mxu0 0.0
      %1822 = vmatprep.subr.mxu0 0.0
      %1823 = vmatpush2.msra.mxu0 0.0
      %1824 = vmatprep.subr.mxu0 0.0
      %1825 = vmatpush2.msra.mxu0 0.0
      %1826 = vmatprep.subr.mxu0 0.0
      %1827 = vmatpush2.msra.mxu0 0.0
      %1828 = vmatprep.subr.mxu0 0.0
      %1829 = vmatpush2.msra.mxu0 0.0
      %1830 = vmatprep.subr.mxu0 0.0
      %1831 = vmatpush2.msra.mxu0 0.0
      %1832 = vmatprep.subr.mxu0 0.0
      %1833 = vmatpush2.msra.mxu0 0.0
      %1834 = vmatprep.subr.mxu0 0.0
      %1835 = vmatpush2.msra.mxu0 0.0
      %1836 = vmatprep.mubr.f32.mxu0 0.0
      %1837 = vmatmul.mubr.f32.gmra.mxu0 %v1755
      %v1838 = vpop.f32.mrf.mxu0
      %v1839 = vadd.f32 0.0, %v1838
      %v1840 = vpop.f32.mrf.mxu0
      %v1841 = vadd.f32 0.0, %v1840
      %1842 = vmatprep.mubr.f32.mxu0 0.0
      %1843 = vmatmul.mubr.f32.gmra.mxu0 %v1758
      %v1844 = vpop.f32.mrf.mxu0
      %v1845 = vadd.f32 0.0, %v1844
      %v1846 = vpop.f32.mrf.mxu0
      %v1847 = vadd.f32 0.0, %v1846
      %1848 = vmatprep.mubr.f32.mxu0 0.0
      %1849 = vmatmul.mubr.f32.gmra.mxu0 %v1761
      %v1850 = vpop.f32.mrf.mxu0
      %v1851 = vadd.f32 0.0, %v1850
      %v1852 = vpop.f32.mrf.mxu0
      %v1853 = vadd.f32 0.0, %v1852
      %1854 = vmatprep.mubr.f32.mxu0 0.0
      %1855 = vmatmul.mubr.f32.gmra.mxu0 %v1764
      %v1856 = vpop.f32.mrf.mxu0
      %v1857 = vadd.f32 0.0, %v1856
      %v1858 = vpop.f32.mrf.mxu0
      %v1859 = vadd.f32 0.0, %v1858
      %1860 = vdwg.mxu0
      %1861 = vmatprep.subr.mxu0 0.0
      %1862 = vmatpush1.msra.mxu0 0.0
      %1863 = vmatprep.subr.mxu0 0.0
      %1864 = vmatpush1.msra.mxu0 0.0
      %1865 = vmatprep.subr.mxu0 0.0
      %1866 = vmatpush1.msra.mxu0 0.0
      %1867 = vmatprep.subr.mxu0 0.0
      %1868 = vmatpush1.msra.mxu0 0.0
      %1869 = vmatprep.subr.mxu0 0.0
      %1870 = vmatpush1.msra.mxu0 0.0
      %1871 = vmatprep.subr.mxu0 0.0
      %1872 = vmatpush1.msra.mxu0 0.0
      %1873 = vmatprep.subr.mxu0 0.0
      %1874 = vmatpush1.msra.mxu0 0.0
      %1875 = vmatprep.subr.mxu0 0.0
      %1876 = vmatpush1.msra.mxu0 0.0
      %1877 = vmatprep.subr.mxu0 0.0
      %1878 = vmatpush1.msra.mxu0 0.0
      %1879 = vmatprep.subr.mxu0 0.0
      %1880 = vmatpush1.msra.mxu0 0.0
      %1881 = vmatprep.subr.mxu0 0.0
      %1882 = vmatpush1.msra.mxu0 0.0
      %1883 = vmatprep.subr.mxu0 0.0
      %1884 = vmatpush1.msra.mxu0 0.0
      %1885 = vmatprep.subr.mxu0 0.0
      %1886 = vmatpush1.msra.mxu0 0.0
      %1887 = vmatprep.subr.mxu0 0.0
      %1888 = vmatpush1.msra.mxu0 0.0
      %1889 = vmatprep.subr.mxu0 0.0
      %1890 = vmatpush1.msra.mxu0 0.0
      %1891 = vmatprep.subr.mxu0 0.0
      %1892 = vmatpush1.msra.mxu0 %v1770
      %1893 = vmatprep.subr.mxu0 0.0
      %1894 = vmatpush2.msra.mxu0 0.0
      %1895 = vmatprep.subr.mxu0 0.0
      %1896 = vmatpush2.msra.mxu0 0.0
      %1897 = vmatprep.subr.mxu0 0.0
      %1898 = vmatpush2.msra.mxu0 0.0
      %1899 = vmatprep.subr.mxu0 0.0
      %1900 = vmatpush2.msra.mxu0 0.0
      %1901 = vmatprep.subr.mxu0 0.0
      %1902 = vmatpush2.msra.mxu0 0.0
      %1903 = vmatprep.subr.mxu0 0.0
      %1904 = vmatpush2.msra.mxu0 0.0
      %1905 = vmatprep.subr.mxu0 0.0
      %1906 = vmatpush2.msra.mxu0 0.0
      %1907 = vmatprep.subr.mxu0 0.0
      %1908 = vmatpush2.msra.mxu0 0.0
      %1909 = vmatprep.subr.mxu0 0.0
      %1910 = vmatpush2.msra.mxu0 0.0
      %1911 = vmatprep.subr.mxu0 0.0
      %1912 = vmatpush2.msra.mxu0 0.0
      %1913 = vmatprep.subr.mxu0 0.0
      %1914 = vmatpush2.msra.mxu0 0.0
      %1915 = vmatprep.subr.mxu0 0.0
      %1916 = vmatpush2.msra.mxu0 0.0
      %1917 = vmatprep.subr.mxu0 0.0
      %1918 = vmatpush2.msra.mxu0 0.0
      %1919 = vmatprep.subr.mxu0 0.0
      %1920 = vmatpush2.msra.mxu0 0.0
      %1921 = vmatprep.subr.mxu0 0.0
      %1922 = vmatpush2.msra.mxu0 0.0
      %1923 = vmatprep.subr.mxu0 0.0
      %1924 = vmatpush2.msra.mxu0 0.0
      %1925 = vmatprep.mubr.f32.mxu0 0.0
      %1926 = vmatmul.mubr.f32.gmra.mxu0 %v1755
      %v1927 = vpop.f32.mrf.mxu0
      %v1928 = vadd.f32 0.0, %v1927
      %v1929 = vpop.f32.mrf.mxu0
      %1930 = vmatprep.mubr.f32.mxu0 0.0
      %1931 = vmatmul.mubr.f32.gmra.mxu0 %v1758
      %v1932 = vpop.f32.mrf.mxu0
      %v1933 = vadd.f32 0.0, %v1932
      %v1934 = vpop.f32.mrf.mxu0
      %1935 = vmatprep.mubr.f32.mxu0 0.0
      %1936 = vmatmul.mubr.f32.gmra.mxu0 %v1761
      %v1937 = vpop.f32.mrf.mxu0
      %v1938 = vadd.f32 0.0, %v1937
      %v1939 = vpop.f32.mrf.mxu0
      %1940 = vmatprep.mubr.f32.mxu0 0.0
      %1941 = vmatmul.mubr.f32.gmra.mxu0 %v1764
      %v1942 = vpop.f32.mrf.mxu0
      %v1943 = vadd.f32 0.0, %v1942
      %v1944 = vpop.f32.mrf.mxu0
      %1945 = vdwg.mxu0
      %v1946 = vadd.f32 %v1723, %v1839
      %v1947 = vadd.f32 %v1724, %v1841
      %v1948 = vadd.f32 %v1725, %v1928
      %v1949 = vadd.f32 %v1726, %v1845
      %v1950 = vadd.f32 %v1727, %v1847
      %v1951 = vadd.f32 %v1728, %v1933
      %v1952 = vadd.f32 %v1729, %v1851
      %v1953 = vadd.f32 %v1730, %v1853
      %v1954 = vadd.f32 %v1731, %v1938
      %v1955 = vadd.f32 %v1732, %v1857
      %v1956 = vadd.f32 %v1733, %v1859
      %v1957 = vadd.f32 %v1734, %v1943
      %v1958 = vld [vmem:[%s200] sm:$0xff]
      %v1959 = vld [vmem:[%s200 + $0x8] sm:$0xf]
      %s1960 = scalar_lea.vmem %s1, 256
      %v1961 = vld [vmem:[%s1960] sm:$0xff]
      %v1962 = vld [vmem:[%s1960 + $0x8] sm:$0xff]
      %v1963 = vld [vmem:[%s1960 + $0x10] sm:$0xff]
      %v1964 = vld [vmem:[%s1960 + $0x18] sm:$0xff]
      %v1967 = vcombine.high %v1958, %v1958
      %1968 = vrot.lane.b32.xlu0 %v1958, 90
      %v1969 = vpop.permute.xlu0 %1968
      %1970 = vrot.lane.b32.xlu0 %v1967, 90
      %v1971 = vpop.permute.xlu0 %1970
      %1972 = vrot.lane.b32.xlu0 %v1959, 90
      %v1973 = vpop.permute.xlu0 %1972
      %vm1974 = vcmask 736256
      %v1975 = vsel %vm1974, %v1969, %v1971
      %v1976 = vsel %vm1974, %v1971, %v1973
      %v1978 = vsel %vm234, %v1961, 0
      %v1981 = vsel %vm234, %v1962, 0
      %v1984 = vsel %vm234, %v1963, 0
      %v1987 = vsel %vm234, %v1964, 0
      %v1989 = vsel %vm247, %v1975, 0
      %v1991 = vsel %vm247, %v1976, 0
      %v1993 = vsel %vm247, %v1973, 0
      %1995 = vmatprep.subr.mxu0 0.0
      %1996 = vmatpush1.msra.mxu0 0.0
      %1997 = vmatprep.subr.mxu0 0.0
      %1998 = vmatpush1.msra.mxu0 0.0
      %1999 = vmatprep.subr.mxu0 0.0
      %2000 = vmatpush1.msra.mxu0 0.0
      %2001 = vmatprep.subr.mxu0 0.0
      %2002 = vmatpush1.msra.mxu0 0.0
      %2003 = vmatprep.subr.mxu0 0.0
      %2004 = vmatpush1.msra.mxu0 0.0
      %2005 = vmatprep.subr.mxu0 0.0
      %2006 = vmatpush1.msra.mxu0 0.0
      %2007 = vmatprep.subr.mxu0 0.0
      %2008 = vmatpush1.msra.mxu0 0.0
      %2009 = vmatprep.subr.mxu0 0.0
      %2010 = vmatpush1.msra.mxu0 0.0
      %2011 = vmatprep.subr.mxu0 0.0
      %2012 = vmatpush1.msra.mxu0 0.0
      %2013 = vmatprep.subr.mxu0 0.0
      %2014 = vmatpush1.msra.mxu0 0.0
      %2015 = vmatprep.subr.mxu0 0.0
      %2016 = vmatpush1.msra.mxu0 0.0
      %2017 = vmatprep.subr.mxu0 0.0
      %2018 = vmatpush1.msra.mxu0 0.0
      %2019 = vmatprep.subr.mxu0 0.0
      %2020 = vmatpush1.msra.mxu0 0.0
      %2021 = vmatprep.subr.mxu0 0.0
      %2022 = vmatpush1.msra.mxu0 0.0
      %2023 = vmatprep.subr.mxu0 0.0
      %2024 = vmatpush1.msra.mxu0 0.0
      %2025 = vmatprep.subr.mxu0 %v1991
      %2026 = vmatpush1.msra.mxu0 %v1989
      %2027 = vmatprep.subr.mxu0 0.0
      %2028 = vmatpush2.msra.mxu0 0.0
      %2029 = vmatprep.subr.mxu0 0.0
      %2030 = vmatpush2.msra.mxu0 0.0
      %2031 = vmatprep.subr.mxu0 0.0
      %2032 = vmatpush2.msra.mxu0 0.0
      %2033 = vmatprep.subr.mxu0 0.0
      %2034 = vmatpush2.msra.mxu0 0.0
      %2035 = vmatprep.subr.mxu0 0.0
      %2036 = vmatpush2.msra.mxu0 0.0
      %2037 = vmatprep.subr.mxu0 0.0
      %2038 = vmatpush2.msra.mxu0 0.0
      %2039 = vmatprep.subr.mxu0 0.0
      %2040 = vmatpush2.msra.mxu0 0.0
      %2041 = vmatprep.subr.mxu0 0.0
      %2042 = vmatpush2.msra.mxu0 0.0
      %2043 = vmatprep.subr.mxu0 0.0
      %2044 = vmatpush2.msra.mxu0 0.0
      %2045 = vmatprep.subr.mxu0 0.0
      %2046 = vmatpush2.msra.mxu0 0.0
      %2047 = vmatprep.subr.mxu0 0.0
      %2048 = vmatpush2.msra.mxu0 0.0
      %2049 = vmatprep.subr.mxu0 0.0
      %2050 = vmatpush2.msra.mxu0 0.0
      %2051 = vmatprep.subr.mxu0 0.0
      %2052 = vmatpush2.msra.mxu0 0.0
      %2053 = vmatprep.subr.mxu0 0.0
      %2054 = vmatpush2.msra.mxu0 0.0
      %2055 = vmatprep.subr.mxu0 0.0
      %2056 = vmatpush2.msra.mxu0 0.0
      %2057 = vmatprep.subr.mxu0 0.0
      %2058 = vmatpush2.msra.mxu0 0.0
      %2059 = vmatprep.mubr.f32.mxu0 0.0
      %2060 = vmatmul.mubr.f32.gmra.mxu0 %v1978
      %v2061 = vpop.f32.mrf.mxu0
      %v2062 = vadd.f32 0.0, %v2061
      %v2063 = vpop.f32.mrf.mxu0
      %v2064 = vadd.f32 0.0, %v2063
      %2065 = vmatprep.mubr.f32.mxu0 0.0
      %2066 = vmatmul.mubr.f32.gmra.mxu0 %v1981
      %v2067 = vpop.f32.mrf.mxu0
      %v2068 = vadd.f32 0.0, %v2067
      %v2069 = vpop.f32.mrf.mxu0
      %v2070 = vadd.f32 0.0, %v2069
      %2071 = vmatprep.mubr.f32.mxu0 0.0
      %2072 = vmatmul.mubr.f32.gmra.mxu0 %v1984
      %v2073 = vpop.f32.mrf.mxu0
      %v2074 = vadd.f32 0.0, %v2073
      %v2075 = vpop.f32.mrf.mxu0
      %v2076 = vadd.f32 0.0, %v2075
      %2077 = vmatprep.mubr.f32.mxu0 0.0
      %2078 = vmatmul.mubr.f32.gmra.mxu0 %v1987
      %v2079 = vpop.f32.mrf.mxu0
      %v2080 = vadd.f32 0.0, %v2079
      %v2081 = vpop.f32.mrf.mxu0
      %v2082 = vadd.f32 0.0, %v2081
      %2083 = vdwg.mxu0
      %2084 = vmatprep.subr.mxu0 0.0
      %2085 = vmatpush1.msra.mxu0 0.0
      %2086 = vmatprep.subr.mxu0 0.0
      %2087 = vmatpush1.msra.mxu0 0.0
      %2088 = vmatprep.subr.mxu0 0.0
      %2089 = vmatpush1.msra.mxu0 0.0
      %2090 = vmatprep.subr.mxu0 0.0
      %2091 = vmatpush1.msra.mxu0 0.0
      %2092 = vmatprep.subr.mxu0 0.0
      %2093 = vmatpush1.msra.mxu0 0.0
      %2094 = vmatprep.subr.mxu0 0.0
      %2095 = vmatpush1.msra.mxu0 0.0
      %2096 = vmatprep.subr.mxu0 0.0
      %2097 = vmatpush1.msra.mxu0 0.0
      %2098 = vmatprep.subr.mxu0 0.0
      %2099 = vmatpush1.msra.mxu0 0.0
      %2100 = vmatprep.subr.mxu0 0.0
      %2101 = vmatpush1.msra.mxu0 0.0
      %2102 = vmatprep.subr.mxu0 0.0
      %2103 = vmatpush1.msra.mxu0 0.0
      %2104 = vmatprep.subr.mxu0 0.0
      %2105 = vmatpush1.msra.mxu0 0.0
      %2106 = vmatprep.subr.mxu0 0.0
      %2107 = vmatpush1.msra.mxu0 0.0
      %2108 = vmatprep.subr.mxu0 0.0
      %2109 = vmatpush1.msra.mxu0 0.0
      %2110 = vmatprep.subr.mxu0 0.0
      %2111 = vmatpush1.msra.mxu0 0.0
      %2112 = vmatprep.subr.mxu0 0.0
      %2113 = vmatpush1.msra.mxu0 0.0
      %2114 = vmatprep.subr.mxu0 0.0
      %2115 = vmatpush1.msra.mxu0 %v1993
      %2116 = vmatprep.subr.mxu0 0.0
      %2117 = vmatpush2.msra.mxu0 0.0
      %2118 = vmatprep.subr.mxu0 0.0
      %2119 = vmatpush2.msra.mxu0 0.0
      %2120 = vmatprep.subr.mxu0 0.0
      %2121 = vmatpush2.msra.mxu0 0.0
      %2122 = vmatprep.subr.mxu0 0.0
      %2123 = vmatpush2.msra.mxu0 0.0
      %2124 = vmatprep.subr.mxu0 0.0
      %2125 = vmatpush2.msra.mxu0 0.0
      %2126 = vmatprep.subr.mxu0 0.0
      %2127 = vmatpush2.msra.mxu0 0.0
      %2128 = vmatprep.subr.mxu0 0.0
      %2129 = vmatpush2.msra.mxu0 0.0
      %2130 = vmatprep.subr.mxu0 0.0
      %2131 = vmatpush2.msra.mxu0 0.0
      %2132 = vmatprep.subr.mxu0 0.0
      %2133 = vmatpush2.msra.mxu0 0.0
      %2134 = vmatprep.subr.mxu0 0.0
      %2135 = vmatpush2.msra.mxu0 0.0
      %2136 = vmatprep.subr.mxu0 0.0
      %2137 = vmatpush2.msra.mxu0 0.0
      %2138 = vmatprep.subr.mxu0 0.0
      %2139 = vmatpush2.msra.mxu0 0.0
      %2140 = vmatprep.subr.mxu0 0.0
      %2141 = vmatpush2.msra.mxu0 0.0
      %2142 = vmatprep.subr.mxu0 0.0
      %2143 = vmatpush2.msra.mxu0 0.0
      %2144 = vmatprep.subr.mxu0 0.0
      %2145 = vmatpush2.msra.mxu0 0.0
      %2146 = vmatprep.subr.mxu0 0.0
      %2147 = vmatpush2.msra.mxu0 0.0
      %2148 = vmatprep.mubr.f32.mxu0 0.0
      %2149 = vmatmul.mubr.f32.gmra.mxu0 %v1978
      %v2150 = vpop.f32.mrf.mxu0
      %v2151 = vadd.f32 0.0, %v2150
      %v2152 = vpop.f32.mrf.mxu0
      %2153 = vmatprep.mubr.f32.mxu0 0.0
      %2154 = vmatmul.mubr.f32.gmra.mxu0 %v1981
      %v2155 = vpop.f32.mrf.mxu0
      %v2156 = vadd.f32 0.0, %v2155
      %v2157 = vpop.f32.mrf.mxu0
      %2158 = vmatprep.mubr.f32.mxu0 0.0
      %2159 = vmatmul.mubr.f32.gmra.mxu0 %v1984
      %v2160 = vpop.f32.mrf.mxu0
      %v2161 = vadd.f32 0.0, %v2160
      %v2162 = vpop.f32.mrf.mxu0
      %2163 = vmatprep.mubr.f32.mxu0 0.0
      %2164 = vmatmul.mubr.f32.gmra.mxu0 %v1987
      %v2165 = vpop.f32.mrf.mxu0
      %v2166 = vadd.f32 0.0, %v2165
      %v2167 = vpop.f32.mrf.mxu0
      %2168 = vdwg.mxu0
      %v2169 = vadd.f32 %v1946, %v2062
      %v2170 = vadd.f32 %v1947, %v2064
      %v2171 = vadd.f32 %v1948, %v2151
      %v2172 = vadd.f32 %v1949, %v2068
      %v2173 = vadd.f32 %v1950, %v2070
      %v2174 = vadd.f32 %v1951, %v2156
      %v2175 = vadd.f32 %v1952, %v2074
      %v2176 = vadd.f32 %v1953, %v2076
      %v2177 = vadd.f32 %v1954, %v2161
      %v2178 = vadd.f32 %v1955, %v2080
      %v2179 = vadd.f32 %v1956, %v2082
      %v2180 = vadd.f32 %v1957, %v2166
      %v2181 = vld [vmem:[%s2] sm:$0x7]
      %v2183 = vlaneseq
      %v2184 = vshrl.u32 %v2183, 7
      %v2185 = vsub.s32 0, %v2184
      %v2186 = vrot.slane %v2181, %v2185
      %v2187 = vlaneseq
      %v2188 = vshrl.u32 %v2187, 7
      %v2189 = vsub.s32 1, %v2188
      %v2190 = vrot.slane %v2181, %v2189
      %v2191 = vlaneseq
      %v2192 = vshrl.u32 %v2191, 7
      %v2193 = vsub.s32 2, %v2192
      %v2194 = vrot.slane %v2181, %v2193
      %v2198 = vmul.f32 %v2169, %v2186
      %v2199 = vmul.f32 %v2170, %v2190
      %v2200 = vmul.f32 %v2171, %v2194
      %v2201 = vmul.f32 %v2172, %v2186
      %v2202 = vmul.f32 %v2173, %v2190
      %v2203 = vmul.f32 %v2174, %v2194
      %v2204 = vmul.f32 %v2175, %v2186
      %v2205 = vmul.f32 %v2176, %v2190
      %v2206 = vmul.f32 %v2177, %v2194
      %v2207 = vmul.f32 %v2178, %v2186
      %v2208 = vmul.f32 %v2179, %v2190
      %v2209 = vmul.f32 %v2180, %v2194
      %v2210 = vadd.f32 %v2198, %v2199
      %vm2211 = vcmask 261120
      %v2212 = vsel %vm2211, %v2200, 0.0
      %v2213 = vadd.f32 %v2210, %v2212
      %2214 = vadd.xlane.f32.xlu0 %v2213
      %v2215 = vpop.xlane.xlu0 %2214
      %v2216 = vadd.f32 %v2201, %v2202
      %v2217 = vsel %vm2211, %v2203, 0.0
      %v2218 = vadd.f32 %v2216, %v2217
      %2219 = vadd.xlane.f32.xlu0 %v2218
      %v2220 = vpop.xlane.xlu0 %2219
      %v2221 = vadd.f32 %v2204, %v2205
      %v2222 = vsel %vm2211, %v2206, 0.0
      %v2223 = vadd.f32 %v2221, %v2222
      %2224 = vadd.xlane.f32.xlu0 %v2223
      %v2225 = vpop.xlane.xlu0 %2224
      %v2226 = vadd.f32 %v2207, %v2208
      %v2227 = vsel %vm2211, %v2209, 0.0
      %v2228 = vadd.f32 %v2226, %v2227
      %2229 = vadd.xlane.f32.xlu0 %v2228
      %v2230 = vpop.xlane.xlu0 %2229
      %vm2231 = vcmask 7168
      %2232 = vst.msk [vmem:[%s205] sm:$0xff] %vm2231, %v2215
      %2233 = vst.msk [vmem:[%s205 + $0x8] sm:$0xff] %vm2231, %v2220
      %2234 = vst.msk [vmem:[%s205 + $0x10] sm:$0xff] %vm2231, %v2225
      %2235 = vst.msk [vmem:[%s205 + $0x18] sm:$0xff] %vm2231, %v2230
      %v2236 = vmul.f32 %v2198, %v2198
      %v2237 = vmul.f32 %v2199, %v2199
      %v2238 = vmul.f32 %v2200, %v2200
      %v2239 = vmul.f32 %v2201, %v2201
      %v2240 = vmul.f32 %v2202, %v2202
      %v2241 = vmul.f32 %v2203, %v2203
      %v2242 = vmul.f32 %v2204, %v2204
      %v2243 = vmul.f32 %v2205, %v2205
      %v2244 = vmul.f32 %v2206, %v2206
      %v2245 = vmul.f32 %v2207, %v2207
      %v2246 = vmul.f32 %v2208, %v2208
      %v2247 = vmul.f32 %v2209, %v2209
      %v2248 = vadd.f32 %v2236, %v2237
      %v2249 = vsel %vm2211, %v2238, 0.0
      %v2250 = vadd.f32 %v2248, %v2249
      %2251 = vadd.xlane.f32.xlu0 %v2250
      %v2252 = vpop.xlane.xlu0 %2251
      %v2253 = vadd.f32 %v2239, %v2240
      %v2254 = vsel %vm2211, %v2241, 0.0
      %v2255 = vadd.f32 %v2253, %v2254
      %2256 = vadd.xlane.f32.xlu0 %v2255
      %v2257 = vpop.xlane.xlu0 %2256
      %v2258 = vadd.f32 %v2242, %v2243
      %v2259 = vsel %vm2211, %v2244, 0.0
      %v2260 = vadd.f32 %v2258, %v2259
      %2261 = vadd.xlane.f32.xlu0 %v2260
      %v2262 = vpop.xlane.xlu0 %2261
      %v2263 = vadd.f32 %v2245, %v2246
      %v2264 = vsel %vm2211, %v2247, 0.0
      %v2265 = vadd.f32 %v2263, %v2264
      %2266 = vadd.xlane.f32.xlu0 %v2265
      %v2267 = vpop.xlane.xlu0 %2266
      %2268 = vst.msk [vmem:[%s210] sm:$0xff] %vm2231, %v2252
      %2269 = vst.msk [vmem:[%s210 + $0x8] sm:$0xff] %vm2231, %v2257
      %2270 = vst.msk [vmem:[%s210 + $0x10] sm:$0xff] %vm2231, %v2262
      %2271 = vst.msk [vmem:[%s210 + $0x18] sm:$0xff] %vm2231, %v2267
      %p2272 = scmp.lt.s32.totalorder %s16, 1
      %s2273 = scalar_select %p2272, %s16, 1
      %s2274 = smul.addr %s2273, 4
      %s2275 = smul.addr %s2274, 8
      %s2276 = scalar_lea.vmem %s3, %s2275
      %p2277 = scmp.lt.s32.totalorder %s16, 1
      %s2278 = scalar_select %p2277, %s16, 1
      %s2279 = smul.addr %s2278, 4
      %s2280 = smul.addr %s2279, 8
      %s2281 = scalar_lea.vmem %s4, %s2280
      // Predicated region
      $region33: #{up_conv_forward.2} parent=31 // pred_check
        %p2282 = pneg %p102
      $region34: #{up_conv_forward.2} parent=31 // pred_check_branch
        %2284 = sbr.rel (%p2282) target = $region36
      $region35: #{up_conv_forward.2} parent=31 // pred_region
        _
      $region36: #{up_conv_forward.2} parent=31 // pred_fallthru
        _
      // Predicated region
      $region37: #{up_conv_forward.2} parent=31 // pred_check
        %p2285 = pneg %p128
      $region38: #{up_conv_forward.2} parent=31 // pred_check_branch
        %2287 = sbr.rel (%p2285) target = $region40
      $region39: #{up_conv_forward.2} parent=31 // pred_region
        _
      $region40: #{up_conv_forward.2} parent=31 // pred_fallthru
        _
    $region32: #{up_conv_forward.2} parent=5 // pred_fallthru
      _
    %p2288 = scmp.le.s32.totalorder 2, %s11
    // Predicated region
    $region41: #{up_conv_forward.2} parent=5 // pred_check
      %p2289 = pneg %p2288
    $region42: #{up_conv_forward.2} parent=5 // pred_check_branch
      %2291 = sbr.rel (%p2289) target = $region44
    $region43: #{up_conv_forward.2} parent=5 // pred_region
      %s2292 = ssub.s32 %s11, 2
      // Predicated region
      $region45: #{up_conv_forward.2} parent=43 // pred_check
        %p2293 = pneg %p108
      $region46: #{up_conv_forward.2} parent=43 // pred_check_branch
        %2295 = sbr.rel (%p2293) target = $region48
      $region47: #{up_conv_forward.2} parent=43 // pred_region
        %p2296 = scmp.lt.s32.totalorder %s17, 1
        %s2297 = scalar_select %p2296, %s17, 1
        %s2298 = smul.addr %s2297, 4
        %s2299 = smul.addr %s2298, 8
        %s2300 = scalar_lea.vmem %s3, %s2299
      $region48: #{up_conv_forward.2} parent=43 // pred_fallthru
        _
      // Predicated region
      $region49: #{up_conv_forward.2} parent=43 // pred_check
        %p2301 = pneg %p134
      $region50: #{up_conv_forward.2} parent=43 // pred_check_branch
        %2303 = sbr.rel (%p2301) target = $region52
      $region51: #{up_conv_forward.2} parent=43 // pred_region
        %p2304 = scmp.lt.s32.totalorder %s17, 1
        %s2305 = scalar_select %p2304, %s17, 1
        %s2306 = smul.addr %s2305, 4
        %s2307 = smul.addr %s2306, 8
        %s2308 = scalar_lea.vmem %s4, %s2307
      $region52: #{up_conv_forward.2} parent=43 // pred_fallthru
        _
    $region44: #{up_conv_forward.2} parent=5 // pred_fallthru
      _
  $region6: #{up_conv_forward.2} parent=0 // loop_footer
    %s15 = sadd.s32 1, %s11
  $region7: #{up_conv_forward.2} parent=0 // loop_footer_branch
    %10 = sbr.rel target = $region3
  $region8: #{up_conv_forward.2} parent=0 // loop_exit
    _

</llo_original>
